<compile_context>
chip_gen: v7x
topology: tpu7x:2x2x1
jax: 0.10.0
libtpu: 0.0.40
codegen_flags: <defaults>
</compile_context>

<pallas_src>
import functools

import jax
import jax.numpy as jnp
from jax.experimental import pallas as pl
from jax.experimental.pallas import tpu as pltpu


LANE = 128  # TPU lane width; all kernel lane dims are padded to this.


# ----------------------------------------------------------------------------
# Pallas kernel: everything after the encoder, fused.
# ----------------------------------------------------------------------------
def spert_kernel(
    # --- scalar prefetch (SMEM) ---
    sid_ref,            # (B_pad, S) i32  subject span token positions
    oid_ref,            # (B_pad, S) i32  object  span token positions
    cid_ref,            # (B_pad, S) i32  relation/context span token positions
    # --- VMEM tensors ---
    emb_ref,            # (TB, L, H) f32  token-embedding batch tile
    wproj_ref,          # (4, H, LANE) f32  [Ws@E, Wo@E, Wo@T, Wc@T]
    wbil_ref,           # (3, LANE, LANE) f32  flattened+padded bilinear weights
    wfc_ref,            # (3*LANE, LANE) f32  merged, padded fc weight
    bias_ref,           # (8, LANE) f32  packed biases
    # --- output ---
    out_ref,            # (TB, LANE) f32  lane-padded logits
):
    TB, L, H = emb_ref.shape
    S = sid_ref.shape[1]
    b0 = pl.program_id(0) * TB

    bias = bias_ref[...]                                      # (8, LANE)

    def pool(ids_ref):
        # Masked max-pool over span positions: direct row gather via dynamic
        # sublane slices (indices come from SMEM), then mask id==0 with -inf.
        rows = []
        for bb in range(TB):
            acc = jnp.full((1, H), -jnp.inf, dtype=jnp.float32)
            for s in range(S):
                idx = ids_ref[b0 + bb, s]
                row = emb_ref[bb, pl.ds(idx, 1), :].astype(jnp.float32)  # (1,H)
                acc = jnp.where(idx != 0, jnp.maximum(acc, row), acc)
            rows.append(acc)
        return jnp.concatenate(rows, axis=0)                  # (TB, H)

    pooled_s = pool(sid_ref)
    pooled_o = pool(oid_ref)
    pooled_c = pool(cid_ref)

    def proj(pooled, w_idx, b_idx):
        # (TB, H) @ (H, LANE).  The projection weight was pre-composed with the
        # expand (E: lane k -> x[k // R]) or tile (T: lane k -> x[k % R])
        # matrix in the wrapper, so its output is already laid out for the
        # single-matmul bilinear below.  Pad lanes (k >= R*R) are exactly 0.
        return (jnp.dot(pooled, wproj_ref[w_idx],
                        preferred_element_type=jnp.float32)
                + bias[b_idx:b_idx + 1, :])

    xs_rep = proj(pooled_s, 0, 0)   # xs[b, k // R]
    xo_rep = proj(pooled_o, 1, 1)   # xo[b, k // R]
    xo_til = proj(pooled_o, 2, 2)   # xo[b, k %  R]
    xc_til = proj(pooled_c, 3, 3)   # xc[b, k %  R]

    def bilinear_tanh(a_rep, b_til, w_idx, b_idx):
        # out[b,p] = tanh( sum_{i,j} x1[b,i] W[i,j,p] x2[b,j] + b[p] )
        # z[b, i*R+j] = x1[b,i] * x2[b,j]   (VPU), then ONE MXU matmul with the
        # (R*R, P) flattened weight (zero-padded to (LANE, LANE)).
        z = a_rep * b_til                                     # (TB, LANE)
        pre = (jnp.dot(z, wbil_ref[w_idx],
                       preferred_element_type=jnp.float32)
               + bias[b_idx:b_idx + 1, :])
        return jnp.tanh(pre)                                  # (TB, LANE)

    i_so = bilinear_tanh(xs_rep, xo_til, 0, 4)
    i_sc = bilinear_tanh(xs_rep, xc_til, 1, 5)
    i_oc = bilinear_tanh(xo_rep, xc_til, 2, 6)

    # fc over concat([so, sc, oc]) as a single lane-dense matmul.
    interact = jnp.concatenate([i_so, i_sc, i_oc], axis=-1)   # (TB, 3*LANE)
    logits = (jnp.dot(interact, wfc_ref[...],
                      preferred_element_type=jnp.float32)
              + bias[7:8, :])
    out_ref[...] = logits


# ----------------------------------------------------------------------------
# Parameter folding / packing (plain JAX, done once in the wrapper)
# ----------------------------------------------------------------------------
def _pack_params(params):
    H, R = params["w_s"].shape
    P = params["b_so"].shape[1]
    NL = params["b_fc"].shape[1]
    RR = R * R
    assert RR <= LANE and P <= LANE and NL <= LANE

    # E[i, k] = [k // R == i], T[j, k] = [k % R == j]  for k < R*R, else 0.
    k = jnp.arange(LANE)
    in_range = k < RR
    E = (((k[None, :] // R) == jnp.arange(R)[:, None]) & in_range[None, :]
         ).astype(jnp.float32)                                # (R, LANE)
    T = (((k[None, :] % R) == jnp.arange(R)[:, None]) & in_range[None, :]
         ).astype(jnp.float32)                                # (R, LANE)

    w_proj = jnp.stack([params["w_s"] @ E, params["w_o"] @ E,
                        params["w_o"] @ T, params["w_c"] @ T], axis=0)

    def flat_pad_bil(w):          # (R, R, P) -> (LANE, LANE), zero padded
        return jnp.zeros((LANE, LANE), jnp.float32).at[:RR, :P].set(
            w.reshape(RR, P))

    w_bil = jnp.stack([flat_pad_bil(params["w_so"]),
                       flat_pad_bil(params["w_sc"]),
                       flat_pad_bil(params["w_oc"])], axis=0)

    def pad_row(b):               # (1, n) -> (1, LANE)
        return jnp.zeros((1, LANE), jnp.float32).at[:, :b.shape[1]].set(b)

    bias = jnp.concatenate(
        [params["b_s"] @ E, params["b_o"] @ E,
         params["b_o"] @ T, params["b_c"] @ T,
         pad_row(params["b_so"]), pad_row(params["b_sc"]),
         pad_row(params["b_oc"]), pad_row(params["b_fc"])], axis=0)  # (8, LANE)

    w_fc = jnp.zeros((3 * LANE, LANE), jnp.float32)
    w_fc = w_fc.at[0 * LANE:0 * LANE + P, :NL].set(params["w_fc_so"])
    w_fc = w_fc.at[1 * LANE:1 * LANE + P, :NL].set(params["w_fc_sc"])
    w_fc = w_fc.at[2 * LANE:2 * LANE + P, :NL].set(params["w_fc_oc"])
    return w_proj, w_bil, w_fc, bias


# ----------------------------------------------------------------------------
# Wrapper
# ----------------------------------------------------------------------------
@functools.partial(jax.jit, static_argnames=("batch_tile",))
def spert_pallas(token_embeddings, sid, oid, cid, params, batch_tile=8):
    B, L, H = token_embeddings.shape
    S = sid.shape[1]
    NL = params["b_fc"].shape[1]
    TB = batch_tile
    B_pad = ((B + TB - 1) // TB) * TB

    emb = jnp.zeros((B_pad, L, H), token_embeddings.dtype).at[:B].set(
        token_embeddings)

    def pad_ids(x):
        return jnp.zeros((B_pad, S), jnp.int32).at[:B].set(x.astype(jnp.int32))

    sid_p, oid_p, cid_p = pad_ids(sid), pad_ids(oid), pad_ids(cid)

    w_proj, w_bil, w_fc, bias = _pack_params(params)

    inv3 = lambda i, *_: (0, 0, 0)   # grid-invariant weight blocks
    inv2 = lambda i, *_: (0, 0)

    out_padded = pl.pallas_call(
        spert_kernel,
        out_shape=jax.ShapeDtypeStruct((B_pad, LANE), jnp.float32),
        grid_spec=pltpu.PrefetchScalarGridSpec(
            num_scalar_prefetch=3,                 # sid / oid / cid -> SMEM
            grid=(B_pad // TB,),
            in_specs=[
                pl.BlockSpec((TB, L, H), lambda i, *_: (i, 0, 0)),   # emb tile
                pl.BlockSpec((4, H, LANE), inv3),                    # w_proj
                pl.BlockSpec((3, LANE, LANE), inv3),                 # w_bil
                pl.BlockSpec((3 * LANE, LANE), inv2),                # w_fc
                pl.BlockSpec((8, LANE), inv2),                       # biases
            ],
            out_specs=pl.BlockSpec((TB, LANE), lambda i, *_: (i, 0)),
        ),
        compiler_params=pltpu.CompilerParams(
            dimension_semantics=("parallel",),     # megacore on v7x
            # Budget explicitly: 2 (double-buffer) * TB*L*H*4B + weights must
            # stay under this; safe on v5e/v6e (128 MiB) and v7x (64 MiB).
            vmem_limit_bytes=32 * 1024 * 1024,
        ),
    )(sid_p, oid_p, cid_p, emb, w_proj, w_bil, w_fc, bias)

    return out_padded[:B, :NL]


# ----------------------------------------------------------------------------
# Pure-JAX reference (same math, for a correctness check)
# ----------------------------------------------------------------------------
def spert_reference(token_embeddings, sid, oid, cid, params):
    def pool(ids):
        B, S = ids.shape
        H = token_embeddings.shape[-1]
        idx = jnp.broadcast_to(ids[:, :, None], (B, S, H))
        span = jnp.take_along_axis(token_embeddings, idx, axis=1)
        span = jnp.where(ids[:, :, None] == 0, -jnp.inf, span)
        return jnp.max(span, axis=1)

    xs = pool(sid) @ params["w_s"] + params["b_s"]
    xo = pool(oid) @ params["w_o"] + params["b_o"]
    xc = pool(cid) @ params["w_c"] + params["b_c"]

    def bilin(x1, x2, w, b):
        return jnp.tanh(jnp.einsum("bi,ijp,bj->bp", x1, w, x2) + b)

    i_so = bilin(xs, xo, params["w_so"], params["b_so"])
    i_sc = bilin(xs, xc, params["w_sc"], params["b_sc"])
    i_oc = bilin(xo, xc, params["w_oc"], params["b_oc"])
    return (i_so @ params["w_fc_so"] + i_sc @ params["w_fc_sc"]
            + i_oc @ params["w_fc_oc"] + params["b_fc"])


# ----------------------------------------------------------------------------
# Main
# ----------------------------------------------------------------------------
if __name__ == "__main__":
    B, L, H = 12, 16, 32         # relation candidates, seq len, hidden_size
    S = 4                        # span length (token-id slots per span)
    R = 10                       # red_dim
    P = 100                      # prelogits_dim
    NL = 2                       # num_labels
    VOCAB = 64

    key = jax.random.PRNGKey(0)
    keys = jax.random.split(key, 20)

    # Encoder stand-in (see TODO above): deterministic embedding lookup.
    embed_table = 0.1 * jax.random.normal(keys[0], (VOCAB, H), jnp.float32)
    input_ids = jax.random.randint(keys[1], (B, L), 1, VOCAB, dtype=jnp.int32)
    attention_mask = jnp.ones((B, L), jnp.float32)
    token_embeddings = embed_table[input_ids] * attention_mask[..., None]

    # Span token positions; 0 == padding slot.  Each row keeps at least one
    # nonzero position (matches the torch-side assert).
    def make_ids(k):
        ids = jax.random.randint(k, (B, S), 0, L, dtype=jnp.int32)
        return ids.at[:, 0].set(jnp.clip(ids[:, 0], 1, L - 1))

    subject_token_ids = make_ids(keys[2])
    object_token_ids = make_ids(keys[3])
    relation_token_ids = make_ids(keys[4])

    def normal(k, shape, scale=0.1):
        return scale * jax.random.normal(k, shape, jnp.float32)

    params = {
        # projections stored as (in, out): x @ W
        "w_s": normal(keys[5], (H, R)), "b_s": normal(keys[6], (1, R)),
        "w_o": normal(keys[7], (H, R)), "b_o": normal(keys[8], (1, R)),
        "w_c": normal(keys[9], (H, R)), "b_c": normal(keys[10], (1, R)),
        # bilinear weights stored as (R, R, P): w[i, j, p] == W_torch[p, i, j]
        "w_so": normal(keys[11], (R, R, P)), "b_so": normal(keys[12], (1, P)),
        "w_sc": normal(keys[13], (R, R, P)), "b_sc": normal(keys[14], (1, P)),
        "w_oc": normal(keys[15], (R, R, P)), "b_oc": normal(keys[16], (1, P)),
        # fc over concat([so, sc, oc]) split into its three matching slices
        "w_fc_so": normal(keys[17], (P, NL)),
        "w_fc_sc": normal(keys[18], (P, NL)),
        "w_fc_oc": normal(keys[19], (P, NL)),
        "b_fc": normal(jax.random.fold_in(key, 100), (1, NL)),
    }

    logits = spert_pallas(token_embeddings, subject_token_ids,
                          object_token_ids, relation_token_ids, params)
    logits = jax.block_until_ready(logits)

    ref = spert_reference(token_embeddings, subject_token_ids,
                          object_token_ids, relation_token_ids, params)
    assert logits.shape == (B, NL)
    assert jnp.allclose(logits, ref, rtol=1e-3, atol=1e-4), (logits, ref)

    print("KERNEL_OK")
</pallas_src>

<mosaic_0001>
module attributes {stable_mosaic.version = 11 : i64} {
  func.func @spert_kernel(%arg0: i32, %arg1: memref<16x4xi32, #tpu.memory_space<smem>>, %arg2: memref<16x4xi32, #tpu.memory_space<smem>>, %arg3: memref<16x4xi32, #tpu.memory_space<smem>>, %arg4: memref<8x16x32xf32, #tpu.memory_space<vmem>>, %arg5: memref<4x32x128xf32, #tpu.memory_space<vmem>>, %arg6: memref<3x128x128xf32, #tpu.memory_space<vmem>>, %arg7: memref<384x128xf32, #tpu.memory_space<vmem>>, %arg8: memref<8x128xf32, #tpu.memory_space<vmem>>, %arg9: memref<8x128xf32, #tpu.memory_space<vmem>>) attributes {dimension_semantics = [#tpu.dimension_semantics<parallel>], iteration_bounds = array<i64: 2>, scalar_prefetch = 3 : i64, scratch_operands = 0 : i64, tpu.core_type = #tpu.core_type<tc>, window_params = [{transform_indices = @transform_0, window_bounds = array<i64: 8, 16, 32>}, {pipeline_mode = #tpu.pipeline_mode<synchronous>, transform_indices = @transform_1, window_bounds = array<i64: 4, 32, 128>}, {pipeline_mode = #tpu.pipeline_mode<synchronous>, transform_indices = @transform_2, window_bounds = array<i64: 3, 128, 128>}, {pipeline_mode = #tpu.pipeline_mode<synchronous>, transform_indices = @transform_3, window_bounds = array<i64: 384, 128>}, {pipeline_mode = #tpu.pipeline_mode<synchronous>, transform_indices = @transform_4, window_bounds = array<i64: 8, 128>}, {transform_indices = @transform_5, window_bounds = array<i64: 8, 128>}]} {
    %c8_i32 = arith.constant 8 : i32
    %0 = arith.muli %arg0, %c8_i32 : i32
    %c0 = arith.constant 0 : index
    %c0_0 = arith.constant 0 : index
    %1 = vector.load %arg8[%c0, %c0_0] : memref<8x128xf32, #tpu.memory_space<vmem>>, vector<8x128xf32>
    %cst = arith.constant 0xFF800000 : f32
    %2 = vector.broadcast %cst : f32 to vector<1x32xf32>
    %c0_i32 = arith.constant 0 : i32
    %3 = arith.addi %0, %c0_i32 : i32
    %4 = arith.index_cast %3 : i32 to index
    %c0_1 = arith.constant 0 : index
    %5 = memref.load %arg1[%4, %c0_1] : memref<16x4xi32, #tpu.memory_space<smem>>
    %c0_2 = arith.constant 0 : index
    %6 = arith.index_cast %5 : i32 to index
    %c0_3 = arith.constant 0 : index
    %7 = vector.load %arg4[%c0_2, %6, %c0_3] : memref<8x16x32xf32, #tpu.memory_space<vmem>>, vector<1x1x32xf32>
    %8 = vector.shape_cast %7 : vector<1x1x32xf32> to vector<1x32xf32>
    %c0_i32_4 = arith.constant 0 : i32
    %9 = arith.cmpi ne, %5, %c0_i32_4 : i32
    %10 = arith.maximumf %2, %8 : vector<1x32xf32>
    %11 = arith.select %9, %10, %2 : vector<1x32xf32>
    %c0_i32_5 = arith.constant 0 : i32
    %12 = arith.addi %0, %c0_i32_5 : i32
    %13 = arith.index_cast %12 : i32 to index
    %c1 = arith.constant 1 : index
    %14 = memref.load %arg1[%13, %c1] : memref<16x4xi32, #tpu.memory_space<smem>>
    %c0_6 = arith.constant 0 : index
    %15 = arith.index_cast %14 : i32 to index
    %c0_7 = arith.constant 0 : index
    %16 = vector.load %arg4[%c0_6, %15, %c0_7] : memref<8x16x32xf32, #tpu.memory_space<vmem>>, vector<1x1x32xf32>
    %17 = vector.shape_cast %16 : vector<1x1x32xf32> to vector<1x32xf32>
    %c0_i32_8 = arith.constant 0 : i32
    %18 = arith.cmpi ne, %14, %c0_i32_8 : i32
    %19 = arith.maximumf %11, %17 : vector<1x32xf32>
    %20 = arith.select %18, %19, %11 : vector<1x32xf32>
    %c0_i32_9 = arith.constant 0 : i32
    %21 = arith.addi %0, %c0_i32_9 : i32
    %22 = arith.index_cast %21 : i32 to index
    %c2 = arith.constant 2 : index
    %23 = memref.load %arg1[%22, %c2] : memref<16x4xi32, #tpu.memory_space<smem>>
    %c0_10 = arith.constant 0 : index
    %24 = arith.index_cast %23 : i32 to index
    %c0_11 = arith.constant 0 : index
    %25 = vector.load %arg4[%c0_10, %24, %c0_11] : memref<8x16x32xf32, #tpu.memory_space<vmem>>, vector<1x1x32xf32>
    %26 = vector.shape_cast %25 : vector<1x1x32xf32> to vector<1x32xf32>
    %c0_i32_12 = arith.constant 0 : i32
    %27 = arith.cmpi ne, %23, %c0_i32_12 : i32
    %28 = arith.maximumf %20, %26 : vector<1x32xf32>
    %29 = arith.select %27, %28, %20 : vector<1x32xf32>
    %c0_i32_13 = arith.constant 0 : i32
    %30 = arith.addi %0, %c0_i32_13 : i32
    %31 = arith.index_cast %30 : i32 to index
    %c3 = arith.constant 3 : index
    %32 = memref.load %arg1[%31, %c3] : memref<16x4xi32, #tpu.memory_space<smem>>
    %c0_14 = arith.constant 0 : index
    %33 = arith.index_cast %32 : i32 to index
    %c0_15 = arith.constant 0 : index
    %34 = vector.load %arg4[%c0_14, %33, %c0_15] : memref<8x16x32xf32, #tpu.memory_space<vmem>>, vector<1x1x32xf32>
    %35 = vector.shape_cast %34 : vector<1x1x32xf32> to vector<1x32xf32>
    %c0_i32_16 = arith.constant 0 : i32
    %36 = arith.cmpi ne, %32, %c0_i32_16 : i32
    %37 = arith.maximumf %29, %35 : vector<1x32xf32>
    %38 = arith.select %36, %37, %29 : vector<1x32xf32>
    %cst_17 = arith.constant 0xFF800000 : f32
    %39 = vector.broadcast %cst_17 : f32 to vector<1x32xf32>
    %c1_i32 = arith.constant 1 : i32
    %40 = arith.addi %0, %c1_i32 : i32
    %41 = arith.index_cast %40 : i32 to index
    %c0_18 = arith.constant 0 : index
    %42 = memref.load %arg1[%41, %c0_18] : memref<16x4xi32, #tpu.memory_space<smem>>
    %c1_19 = arith.constant 1 : index
    %43 = arith.index_cast %42 : i32 to index
    %c0_20 = arith.constant 0 : index
    %44 = vector.load %arg4[%c1_19, %43, %c0_20] : memref<8x16x32xf32, #tpu.memory_space<vmem>>, vector<1x1x32xf32>
    %45 = vector.shape_cast %44 : vector<1x1x32xf32> to vector<1x32xf32>
    %c0_i32_21 = arith.constant 0 : i32
    %46 = arith.cmpi ne, %42, %c0_i32_21 : i32
    %47 = arith.maximumf %39, %45 : vector<1x32xf32>
    %48 = arith.select %46, %47, %39 : vector<1x32xf32>
    %c1_i32_22 = arith.constant 1 : i32
    %49 = arith.addi %0, %c1_i32_22 : i32
    %50 = arith.index_cast %49 : i32 to index
    %c1_23 = arith.constant 1 : index
    %51 = memref.load %arg1[%50, %c1_23] : memref<16x4xi32, #tpu.memory_space<smem>>
    %c1_24 = arith.constant 1 : index
    %52 = arith.index_cast %51 : i32 to index
    %c0_25 = arith.constant 0 : index
    %53 = vector.load %arg4[%c1_24, %52, %c0_25] : memref<8x16x32xf32, #tpu.memory_space<vmem>>, vector<1x1x32xf32>
    %54 = vector.shape_cast %53 : vector<1x1x32xf32> to vector<1x32xf32>
    %c0_i32_26 = arith.constant 0 : i32
    %55 = arith.cmpi ne, %51, %c0_i32_26 : i32
    %56 = arith.maximumf %48, %54 : vector<1x32xf32>
    %57 = arith.select %55, %56, %48 : vector<1x32xf32>
    %c1_i32_27 = arith.constant 1 : i32
    %58 = arith.addi %0, %c1_i32_27 : i32
    %59 = arith.index_cast %58 : i32 to index
    %c2_28 = arith.constant 2 : index
    %60 = memref.load %arg1[%59, %c2_28] : memref<16x4xi32, #tpu.memory_space<smem>>
    %c1_29 = arith.constant 1 : index
    %61 = arith.index_cast %60 : i32 to index
    %c0_30 = arith.constant 0 : index
    %62 = vector.load %arg4[%c1_29, %61, %c0_30] : memref<8x16x32xf32, #tpu.memory_space<vmem>>, vector<1x1x32xf32>
    %63 = vector.shape_cast %62 : vector<1x1x32xf32> to vector<1x32xf32>
    %c0_i32_31 = arith.constant 0 : i32
    %64 = arith.cmpi ne, %60, %c0_i32_31 : i32
    %65 = arith.maximumf %57, %63 : vector<1x32xf32>
    %66 = arith.select %64, %65, %57 : vector<1x32xf32>
    %c1_i32_32 = arith.constant 1 : i32
    %67 = arith.addi %0, %c1_i32_32 : i32
    %68 = arith.index_cast %67 : i32 to index
    %c3_33 = arith.constant 3 : index
    %69 = memref.load %arg1[%68, %c3_33] : memref<16x4xi32, #tpu.memory_space<smem>>
    %c1_34 = arith.constant 1 : index
    %70 = arith.index_cast %69 : i32 to index
    %c0_35 = arith.constant 0 : index
    %71 = vector.load %arg4[%c1_34, %70, %c0_35] : memref<8x16x32xf32, #tpu.memory_space<vmem>>, vector<1x1x32xf32>
    %72 = vector.shape_cast %71 : vector<1x1x32xf32> to vector<1x32xf32>
    %c0_i32_36 = arith.constant 0 : i32
    %73 = arith.cmpi ne, %69, %c0_i32_36 : i32
    %74 = arith.maximumf %66, %72 : vector<1x32xf32>
    %75 = arith.select %73, %74, %66 : vector<1x32xf32>
    %cst_37 = arith.constant 0xFF800000 : f32
    %76 = vector.broadcast %cst_37 : f32 to vector<1x32xf32>
    %c2_i32 = arith.constant 2 : i32
    %77 = arith.addi %0, %c2_i32 : i32
    %78 = arith.index_cast %77 : i32 to index
    %c0_38 = arith.constant 0 : index
    %79 = memref.load %arg1[%78, %c0_38] : memref<16x4xi32, #tpu.memory_space<smem>>
    %c2_39 = arith.constant 2 : index
    %80 = arith.index_cast %79 : i32 to index
    %c0_40 = arith.constant 0 : index
    %81 = vector.load %arg4[%c2_39, %80, %c0_40] : memref<8x16x32xf32, #tpu.memory_space<vmem>>, vector<1x1x32xf32>
    %82 = vector.shape_cast %81 : vector<1x1x32xf32> to vector<1x32xf32>
    %c0_i32_41 = arith.constant 0 : i32
    %83 = arith.cmpi ne, %79, %c0_i32_41 : i32
    %84 = arith.maximumf %76, %82 : vector<1x32xf32>
    %85 = arith.select %83, %84, %76 : vector<1x32xf32>
    %c2_i32_42 = arith.constant 2 : i32
    %86 = arith.addi %0, %c2_i32_42 : i32
    %87 = arith.index_cast %86 : i32 to index
    %c1_43 = arith.constant 1 : index
    %88 = memref.load %arg1[%87, %c1_43] : memref<16x4xi32, #tpu.memory_space<smem>>
    %c2_44 = arith.constant 2 : index
    %89 = arith.index_cast %88 : i32 to index
    %c0_45 = arith.constant 0 : index
    %90 = vector.load %arg4[%c2_44, %89, %c0_45] : memref<8x16x32xf32, #tpu.memory_space<vmem>>, vector<1x1x32xf32>
    %91 = vector.shape_cast %90 : vector<1x1x32xf32> to vector<1x32xf32>
    %c0_i32_46 = arith.constant 0 : i32
    %92 = arith.cmpi ne, %88, %c0_i32_46 : i32
    %93 = arith.maximumf %85, %91 : vector<1x32xf32>
    %94 = arith.select %92, %93, %85 : vector<1x32xf32>
    %c2_i32_47 = arith.constant 2 : i32
    %95 = arith.addi %0, %c2_i32_47 : i32
    %96 = arith.index_cast %95 : i32 to index
    %c2_48 = arith.constant 2 : index
    %97 = memref.load %arg1[%96, %c2_48] : memref<16x4xi32, #tpu.memory_space<smem>>
    %c2_49 = arith.constant 2 : index
    %98 = arith.index_cast %97 : i32 to index
    %c0_50 = arith.constant 0 : index
    %99 = vector.load %arg4[%c2_49, %98, %c0_50] : memref<8x16x32xf32, #tpu.memory_space<vmem>>, vector<1x1x32xf32>
    %100 = vector.shape_cast %99 : vector<1x1x32xf32> to vector<1x32xf32>
    %c0_i32_51 = arith.constant 0 : i32
    %101 = arith.cmpi ne, %97, %c0_i32_51 : i32
    %102 = arith.maximumf %94, %100 : vector<1x32xf32>
    %103 = arith.select %101, %102, %94 : vector<1x32xf32>
    %c2_i32_52 = arith.constant 2 : i32
    %104 = arith.addi %0, %c2_i32_52 : i32
    %105 = arith.index_cast %104 : i32 to index
    %c3_53 = arith.constant 3 : index
    %106 = memref.load %arg1[%105, %c3_53] : memref<16x4xi32, #tpu.memory_space<smem>>
    %c2_54 = arith.constant 2 : index
    %107 = arith.index_cast %106 : i32 to index
    %c0_55 = arith.constant 0 : index
    %108 = vector.load %arg4[%c2_54, %107, %c0_55] : memref<8x16x32xf32, #tpu.memory_space<vmem>>, vector<1x1x32xf32>
    %109 = vector.shape_cast %108 : vector<1x1x32xf32> to vector<1x32xf32>
    %c0_i32_56 = arith.constant 0 : i32
    %110 = arith.cmpi ne, %106, %c0_i32_56 : i32
    %111 = arith.maximumf %103, %109 : vector<1x32xf32>
    %112 = arith.select %110, %111, %103 : vector<1x32xf32>
    %cst_57 = arith.constant 0xFF800000 : f32
    %113 = vector.broadcast %cst_57 : f32 to vector<1x32xf32>
    %c3_i32 = arith.constant 3 : i32
    %114 = arith.addi %0, %c3_i32 : i32
    %115 = arith.index_cast %114 : i32 to index
    %c0_58 = arith.constant 0 : index
    %116 = memref.load %arg1[%115, %c0_58] : memref<16x4xi32, #tpu.memory_space<smem>>
    %c3_59 = arith.constant 3 : index
    %117 = arith.index_cast %116 : i32 to index
    %c0_60 = arith.constant 0 : index
    %118 = vector.load %arg4[%c3_59, %117, %c0_60] : memref<8x16x32xf32, #tpu.memory_space<vmem>>, vector<1x1x32xf32>
    %119 = vector.shape_cast %118 : vector<1x1x32xf32> to vector<1x32xf32>
    %c0_i32_61 = arith.constant 0 : i32
    %120 = arith.cmpi ne, %116, %c0_i32_61 : i32
    %121 = arith.maximumf %113, %119 : vector<1x32xf32>
    %122 = arith.select %120, %121, %113 : vector<1x32xf32>
    %c3_i32_62 = arith.constant 3 : i32
    %123 = arith.addi %0, %c3_i32_62 : i32
    %124 = arith.index_cast %123 : i32 to index
    %c1_63 = arith.constant 1 : index
    %125 = memref.load %arg1[%124, %c1_63] : memref<16x4xi32, #tpu.memory_space<smem>>
    %c3_64 = arith.constant 3 : index
    %126 = arith.index_cast %125 : i32 to index
    %c0_65 = arith.constant 0 : index
    %127 = vector.load %arg4[%c3_64, %126, %c0_65] : memref<8x16x32xf32, #tpu.memory_space<vmem>>, vector<1x1x32xf32>
    %128 = vector.shape_cast %127 : vector<1x1x32xf32> to vector<1x32xf32>
    %c0_i32_66 = arith.constant 0 : i32
    %129 = arith.cmpi ne, %125, %c0_i32_66 : i32
    %130 = arith.maximumf %122, %128 : vector<1x32xf32>
    %131 = arith.select %129, %130, %122 : vector<1x32xf32>
    %c3_i32_67 = arith.constant 3 : i32
    %132 = arith.addi %0, %c3_i32_67 : i32
    %133 = arith.index_cast %132 : i32 to index
    %c2_68 = arith.constant 2 : index
    %134 = memref.load %arg1[%133, %c2_68] : memref<16x4xi32, #tpu.memory_space<smem>>
    %c3_69 = arith.constant 3 : index
    %135 = arith.index_cast %134 : i32 to index
    %c0_70 = arith.constant 0 : index
    %136 = vector.load %arg4[%c3_69, %135, %c0_70] : memref<8x16x32xf32, #tpu.memory_space<vmem>>, vector<1x1x32xf32>
    %137 = vector.shape_cast %136 : vector<1x1x32xf32> to vector<1x32xf32>
    %c0_i32_71 = arith.constant 0 : i32
    %138 = arith.cmpi ne, %134, %c0_i32_71 : i32
    %139 = arith.maximumf %131, %137 : vector<1x32xf32>
    %140 = arith.select %138, %139, %131 : vector<1x32xf32>
    %c3_i32_72 = arith.constant 3 : i32
    %141 = arith.addi %0, %c3_i32_72 : i32
    %142 = arith.index_cast %141 : i32 to index
    %c3_73 = arith.constant 3 : index
    %143 = memref.load %arg1[%142, %c3_73] : memref<16x4xi32, #tpu.memory_space<smem>>
    %c3_74 = arith.constant 3 : index
    %144 = arith.index_cast %143 : i32 to index
    %c0_75 = arith.constant 0 : index
    %145 = vector.load %arg4[%c3_74, %144, %c0_75] : memref<8x16x32xf32, #tpu.memory_space<vmem>>, vector<1x1x32xf32>
    %146 = vector.shape_cast %145 : vector<1x1x32xf32> to vector<1x32xf32>
    %c0_i32_76 = arith.constant 0 : i32
    %147 = arith.cmpi ne, %143, %c0_i32_76 : i32
    %148 = arith.maximumf %140, %146 : vector<1x32xf32>
    %149 = arith.select %147, %148, %140 : vector<1x32xf32>
    %cst_77 = arith.constant 0xFF800000 : f32
    %150 = vector.broadcast %cst_77 : f32 to vector<1x32xf32>
    %c4_i32 = arith.constant 4 : i32
    %151 = arith.addi %0, %c4_i32 : i32
    %152 = arith.index_cast %151 : i32 to index
    %c0_78 = arith.constant 0 : index
    %153 = memref.load %arg1[%152, %c0_78] : memref<16x4xi32, #tpu.memory_space<smem>>
    %c4 = arith.constant 4 : index
    %154 = arith.index_cast %153 : i32 to index
    %c0_79 = arith.constant 0 : index
    %155 = vector.load %arg4[%c4, %154, %c0_79] : memref<8x16x32xf32, #tpu.memory_space<vmem>>, vector<1x1x32xf32>
    %156 = vector.shape_cast %155 : vector<1x1x32xf32> to vector<1x32xf32>
    %c0_i32_80 = arith.constant 0 : i32
    %157 = arith.cmpi ne, %153, %c0_i32_80 : i32
    %158 = arith.maximumf %150, %156 : vector<1x32xf32>
    %159 = arith.select %157, %158, %150 : vector<1x32xf32>
    %c4_i32_81 = arith.constant 4 : i32
    %160 = arith.addi %0, %c4_i32_81 : i32
    %161 = arith.index_cast %160 : i32 to index
    %c1_82 = arith.constant 1 : index
    %162 = memref.load %arg1[%161, %c1_82] : memref<16x4xi32, #tpu.memory_space<smem>>
    %c4_83 = arith.constant 4 : index
    %163 = arith.index_cast %162 : i32 to index
    %c0_84 = arith.constant 0 : index
    %164 = vector.load %arg4[%c4_83, %163, %c0_84] : memref<8x16x32xf32, #tpu.memory_space<vmem>>, vector<1x1x32xf32>
    %165 = vector.shape_cast %164 : vector<1x1x32xf32> to vector<1x32xf32>
    %c0_i32_85 = arith.constant 0 : i32
    %166 = arith.cmpi ne, %162, %c0_i32_85 : i32
    %167 = arith.maximumf %159, %165 : vector<1x32xf32>
    %168 = arith.select %166, %167, %159 : vector<1x32xf32>
    %c4_i32_86 = arith.constant 4 : i32
    %169 = arith.addi %0, %c4_i32_86 : i32
    %170 = arith.index_cast %169 : i32 to index
    %c2_87 = arith.constant 2 : index
    %171 = memref.load %arg1[%170, %c2_87] : memref<16x4xi32, #tpu.memory_space<smem>>
    %c4_88 = arith.constant 4 : index
    %172 = arith.index_cast %171 : i32 to index
    %c0_89 = arith.constant 0 : index
    %173 = vector.load %arg4[%c4_88, %172, %c0_89] : memref<8x16x32xf32, #tpu.memory_space<vmem>>, vector<1x1x32xf32>
    %174 = vector.shape_cast %173 : vector<1x1x32xf32> to vector<1x32xf32>
    %c0_i32_90 = arith.constant 0 : i32
    %175 = arith.cmpi ne, %171, %c0_i32_90 : i32
    %176 = arith.maximumf %168, %174 : vector<1x32xf32>
    %177 = arith.select %175, %176, %168 : vector<1x32xf32>
    %c4_i32_91 = arith.constant 4 : i32
    %178 = arith.addi %0, %c4_i32_91 : i32
    %179 = arith.index_cast %178 : i32 to index
    %c3_92 = arith.constant 3 : index
    %180 = memref.load %arg1[%179, %c3_92] : memref<16x4xi32, #tpu.memory_space<smem>>
    %c4_93 = arith.constant 4 : index
    %181 = arith.index_cast %180 : i32 to index
    %c0_94 = arith.constant 0 : index
    %182 = vector.load %arg4[%c4_93, %181, %c0_94] : memref<8x16x32xf32, #tpu.memory_space<vmem>>, vector<1x1x32xf32>
    %183 = vector.shape_cast %182 : vector<1x1x32xf32> to vector<1x32xf32>
    %c0_i32_95 = arith.constant 0 : i32
    %184 = arith.cmpi ne, %180, %c0_i32_95 : i32
    %185 = arith.maximumf %177, %183 : vector<1x32xf32>
    %186 = arith.select %184, %185, %177 : vector<1x32xf32>
    %cst_96 = arith.constant 0xFF800000 : f32
    %187 = vector.broadcast %cst_96 : f32 to vector<1x32xf32>
    %c5_i32 = arith.constant 5 : i32
    %188 = arith.addi %0, %c5_i32 : i32
    %189 = arith.index_cast %188 : i32 to index
    %c0_97 = arith.constant 0 : index
    %190 = memref.load %arg1[%189, %c0_97] : memref<16x4xi32, #tpu.memory_space<smem>>
    %c5 = arith.constant 5 : index
    %191 = arith.index_cast %190 : i32 to index
    %c0_98 = arith.constant 0 : index
    %192 = vector.load %arg4[%c5, %191, %c0_98] : memref<8x16x32xf32, #tpu.memory_space<vmem>>, vector<1x1x32xf32>
    %193 = vector.shape_cast %192 : vector<1x1x32xf32> to vector<1x32xf32>
    %c0_i32_99 = arith.constant 0 : i32
    %194 = arith.cmpi ne, %190, %c0_i32_99 : i32
    %195 = arith.maximumf %187, %193 : vector<1x32xf32>
    %196 = arith.select %194, %195, %187 : vector<1x32xf32>
    %c5_i32_100 = arith.constant 5 : i32
    %197 = arith.addi %0, %c5_i32_100 : i32
    %198 = arith.index_cast %197 : i32 to index
    %c1_101 = arith.constant 1 : index
    %199 = memref.load %arg1[%198, %c1_101] : memref<16x4xi32, #tpu.memory_space<smem>>
    %c5_102 = arith.constant 5 : index
    %200 = arith.index_cast %199 : i32 to index
    %c0_103 = arith.constant 0 : index
    %201 = vector.load %arg4[%c5_102, %200, %c0_103] : memref<8x16x32xf32, #tpu.memory_space<vmem>>, vector<1x1x32xf32>
    %202 = vector.shape_cast %201 : vector<1x1x32xf32> to vector<1x32xf32>
    %c0_i32_104 = arith.constant 0 : i32
    %203 = arith.cmpi ne, %199, %c0_i32_104 : i32
    %204 = arith.maximumf %196, %202 : vector<1x32xf32>
    %205 = arith.select %203, %204, %196 : vector<1x32xf32>
    %c5_i32_105 = arith.constant 5 : i32
    %206 = arith.addi %0, %c5_i32_105 : i32
    %207 = arith.index_cast %206 : i32 to index
    %c2_106 = arith.constant 2 : index
    %208 = memref.load %arg1[%207, %c2_106] : memref<16x4xi32, #tpu.memory_space<smem>>
    %c5_107 = arith.constant 5 : index
    %209 = arith.index_cast %208 : i32 to index
    %c0_108 = arith.constant 0 : index
    %210 = vector.load %arg4[%c5_107, %209, %c0_108] : memref<8x16x32xf32, #tpu.memory_space<vmem>>, vector<1x1x32xf32>
    %211 = vector.shape_cast %210 : vector<1x1x32xf32> to vector<1x32xf32>
    %c0_i32_109 = arith.constant 0 : i32
    %212 = arith.cmpi ne, %208, %c0_i32_109 : i32
    %213 = arith.maximumf %205, %211 : vector<1x32xf32>
    %214 = arith.select %212, %213, %205 : vector<1x32xf32>
    %c5_i32_110 = arith.constant 5 : i32
    %215 = arith.addi %0, %c5_i32_110 : i32
    %216 = arith.index_cast %215 : i32 to index
    %c3_111 = arith.constant 3 : index
    %217 = memref.load %arg1[%216, %c3_111] : memref<16x4xi32, #tpu.memory_space<smem>>
    %c5_112 = arith.constant 5 : index
    %218 = arith.index_cast %217 : i32 to index
    %c0_113 = arith.constant 0 : index
    %219 = vector.load %arg4[%c5_112, %218, %c0_113] : memref<8x16x32xf32, #tpu.memory_space<vmem>>, vector<1x1x32xf32>
    %220 = vector.shape_cast %219 : vector<1x1x32xf32> to vector<1x32xf32>
    %c0_i32_114 = arith.constant 0 : i32
    %221 = arith.cmpi ne, %217, %c0_i32_114 : i32
    %222 = arith.maximumf %214, %220 : vector<1x32xf32>
    %223 = arith.select %221, %222, %214 : vector<1x32xf32>
    %cst_115 = arith.constant 0xFF800000 : f32
    %224 = vector.broadcast %cst_115 : f32 to vector<1x32xf32>
    %c6_i32 = arith.constant 6 : i32
    %225 = arith.addi %0, %c6_i32 : i32
    %226 = arith.index_cast %225 : i32 to index
    %c0_116 = arith.constant 0 : index
    %227 = memref.load %arg1[%226, %c0_116] : memref<16x4xi32, #tpu.memory_space<smem>>
    %c6 = arith.constant 6 : index
    %228 = arith.index_cast %227 : i32 to index
    %c0_117 = arith.constant 0 : index
    %229 = vector.load %arg4[%c6, %228, %c0_117] : memref<8x16x32xf32, #tpu.memory_space<vmem>>, vector<1x1x32xf32>
    %230 = vector.shape_cast %229 : vector<1x1x32xf32> to vector<1x32xf32>
    %c0_i32_118 = arith.constant 0 : i32
    %231 = arith.cmpi ne, %227, %c0_i32_118 : i32
    %232 = arith.maximumf %224, %230 : vector<1x32xf32>
    %233 = arith.select %231, %232, %224 : vector<1x32xf32>
    %c6_i32_119 = arith.constant 6 : i32
    %234 = arith.addi %0, %c6_i32_119 : i32
    %235 = arith.index_cast %234 : i32 to index
    %c1_120 = arith.constant 1 : index
    %236 = memref.load %arg1[%235, %c1_120] : memref<16x4xi32, #tpu.memory_space<smem>>
    %c6_121 = arith.constant 6 : index
    %237 = arith.index_cast %236 : i32 to index
    %c0_122 = arith.constant 0 : index
    %238 = vector.load %arg4[%c6_121, %237, %c0_122] : memref<8x16x32xf32, #tpu.memory_space<vmem>>, vector<1x1x32xf32>
    %239 = vector.shape_cast %238 : vector<1x1x32xf32> to vector<1x32xf32>
    %c0_i32_123 = arith.constant 0 : i32
    %240 = arith.cmpi ne, %236, %c0_i32_123 : i32
    %241 = arith.maximumf %233, %239 : vector<1x32xf32>
    %242 = arith.select %240, %241, %233 : vector<1x32xf32>
    %c6_i32_124 = arith.constant 6 : i32
    %243 = arith.addi %0, %c6_i32_124 : i32
    %244 = arith.index_cast %243 : i32 to index
    %c2_125 = arith.constant 2 : index
    %245 = memref.load %arg1[%244, %c2_125] : memref<16x4xi32, #tpu.memory_space<smem>>
    %c6_126 = arith.constant 6 : index
    %246 = arith.index_cast %245 : i32 to index
    %c0_127 = arith.constant 0 : index
    %247 = vector.load %arg4[%c6_126, %246, %c0_127] : memref<8x16x32xf32, #tpu.memory_space<vmem>>, vector<1x1x32xf32>
    %248 = vector.shape_cast %247 : vector<1x1x32xf32> to vector<1x32xf32>
    %c0_i32_128 = arith.constant 0 : i32
    %249 = arith.cmpi ne, %245, %c0_i32_128 : i32
    %250 = arith.maximumf %242, %248 : vector<1x32xf32>
    %251 = arith.select %249, %250, %242 : vector<1x32xf32>
    %c6_i32_129 = arith.constant 6 : i32
    %252 = arith.addi %0, %c6_i32_129 : i32
    %253 = arith.index_cast %252 : i32 to index
    %c3_130 = arith.constant 3 : index
    %254 = memref.load %arg1[%253, %c3_130] : memref<16x4xi32, #tpu.memory_space<smem>>
    %c6_131 = arith.constant 6 : index
    %255 = arith.index_cast %254 : i32 to index
    %c0_132 = arith.constant 0 : index
    %256 = vector.load %arg4[%c6_131, %255, %c0_132] : memref<8x16x32xf32, #tpu.memory_space<vmem>>, vector<1x1x32xf32>
    %257 = vector.shape_cast %256 : vector<1x1x32xf32> to vector<1x32xf32>
    %c0_i32_133 = arith.constant 0 : i32
    %258 = arith.cmpi ne, %254, %c0_i32_133 : i32
    %259 = arith.maximumf %251, %257 : vector<1x32xf32>
    %260 = arith.select %258, %259, %251 : vector<1x32xf32>
    %cst_134 = arith.constant 0xFF800000 : f32
    %261 = vector.broadcast %cst_134 : f32 to vector<1x32xf32>
    %c7_i32 = arith.constant 7 : i32
    %262 = arith.addi %0, %c7_i32 : i32
    %263 = arith.index_cast %262 : i32 to index
    %c0_135 = arith.constant 0 : index
    %264 = memref.load %arg1[%263, %c0_135] : memref<16x4xi32, #tpu.memory_space<smem>>
    %c7 = arith.constant 7 : index
    %265 = arith.index_cast %264 : i32 to index
    %c0_136 = arith.constant 0 : index
    %266 = vector.load %arg4[%c7, %265, %c0_136] : memref<8x16x32xf32, #tpu.memory_space<vmem>>, vector<1x1x32xf32>
    %267 = vector.shape_cast %266 : vector<1x1x32xf32> to vector<1x32xf32>
    %c0_i32_137 = arith.constant 0 : i32
    %268 = arith.cmpi ne, %264, %c0_i32_137 : i32
    %269 = arith.maximumf %261, %267 : vector<1x32xf32>
    %270 = arith.select %268, %269, %261 : vector<1x32xf32>
    %c7_i32_138 = arith.constant 7 : i32
    %271 = arith.addi %0, %c7_i32_138 : i32
    %272 = arith.index_cast %271 : i32 to index
    %c1_139 = arith.constant 1 : index
    %273 = memref.load %arg1[%272, %c1_139] : memref<16x4xi32, #tpu.memory_space<smem>>
    %c7_140 = arith.constant 7 : index
    %274 = arith.index_cast %273 : i32 to index
    %c0_141 = arith.constant 0 : index
    %275 = vector.load %arg4[%c7_140, %274, %c0_141] : memref<8x16x32xf32, #tpu.memory_space<vmem>>, vector<1x1x32xf32>
    %276 = vector.shape_cast %275 : vector<1x1x32xf32> to vector<1x32xf32>
    %c0_i32_142 = arith.constant 0 : i32
    %277 = arith.cmpi ne, %273, %c0_i32_142 : i32
    %278 = arith.maximumf %270, %276 : vector<1x32xf32>
    %279 = arith.select %277, %278, %270 : vector<1x32xf32>
    %c7_i32_143 = arith.constant 7 : i32
    %280 = arith.addi %0, %c7_i32_143 : i32
    %281 = arith.index_cast %280 : i32 to index
    %c2_144 = arith.constant 2 : index
    %282 = memref.load %arg1[%281, %c2_144] : memref<16x4xi32, #tpu.memory_space<smem>>
    %c7_145 = arith.constant 7 : index
    %283 = arith.index_cast %282 : i32 to index
    %c0_146 = arith.constant 0 : index
    %284 = vector.load %arg4[%c7_145, %283, %c0_146] : memref<8x16x32xf32, #tpu.memory_space<vmem>>, vector<1x1x32xf32>
    %285 = vector.shape_cast %284 : vector<1x1x32xf32> to vector<1x32xf32>
    %c0_i32_147 = arith.constant 0 : i32
    %286 = arith.cmpi ne, %282, %c0_i32_147 : i32
    %287 = arith.maximumf %279, %285 : vector<1x32xf32>
    %288 = arith.select %286, %287, %279 : vector<1x32xf32>
    %c7_i32_148 = arith.constant 7 : i32
    %289 = arith.addi %0, %c7_i32_148 : i32
    %290 = arith.index_cast %289 : i32 to index
    %c3_149 = arith.constant 3 : index
    %291 = memref.load %arg1[%290, %c3_149] : memref<16x4xi32, #tpu.memory_space<smem>>
    %c7_150 = arith.constant 7 : index
    %292 = arith.index_cast %291 : i32 to index
    %c0_151 = arith.constant 0 : index
    %293 = vector.load %arg4[%c7_150, %292, %c0_151] : memref<8x16x32xf32, #tpu.memory_space<vmem>>, vector<1x1x32xf32>
    %294 = vector.shape_cast %293 : vector<1x1x32xf32> to vector<1x32xf32>
    %c0_i32_152 = arith.constant 0 : i32
    %295 = arith.cmpi ne, %291, %c0_i32_152 : i32
    %296 = arith.maximumf %288, %294 : vector<1x32xf32>
    %297 = arith.select %295, %296, %288 : vector<1x32xf32>
    %298 = tpu.concatenate %38, %75, %112, %149, %186, %223, %260, %297 in 0 : vector<1x32xf32>, vector<1x32xf32>, vector<1x32xf32>, vector<1x32xf32>, vector<1x32xf32>, vector<1x32xf32>, vector<1x32xf32>, vector<1x32xf32> -> vector<8x32xf32>
    %cst_153 = arith.constant 0xFF800000 : f32
    %299 = vector.broadcast %cst_153 : f32 to vector<1x32xf32>
    %c0_i32_154 = arith.constant 0 : i32
    %300 = arith.addi %0, %c0_i32_154 : i32
    %301 = arith.index_cast %300 : i32 to index
    %c0_155 = arith.constant 0 : index
    %302 = memref.load %arg2[%301, %c0_155] : memref<16x4xi32, #tpu.memory_space<smem>>
    %c0_156 = arith.constant 0 : index
    %303 = arith.index_cast %302 : i32 to index
    %c0_157 = arith.constant 0 : index
    %304 = vector.load %arg4[%c0_156, %303, %c0_157] : memref<8x16x32xf32, #tpu.memory_space<vmem>>, vector<1x1x32xf32>
    %305 = vector.shape_cast %304 : vector<1x1x32xf32> to vector<1x32xf32>
    %c0_i32_158 = arith.constant 0 : i32
    %306 = arith.cmpi ne, %302, %c0_i32_158 : i32
    %307 = arith.maximumf %299, %305 : vector<1x32xf32>
    %308 = arith.select %306, %307, %299 : vector<1x32xf32>
    %c0_i32_159 = arith.constant 0 : i32
    %309 = arith.addi %0, %c0_i32_159 : i32
    %310 = arith.index_cast %309 : i32 to index
    %c1_160 = arith.constant 1 : index
    %311 = memref.load %arg2[%310, %c1_160] : memref<16x4xi32, #tpu.memory_space<smem>>
    %c0_161 = arith.constant 0 : index
    %312 = arith.index_cast %311 : i32 to index
    %c0_162 = arith.constant 0 : index
    %313 = vector.load %arg4[%c0_161, %312, %c0_162] : memref<8x16x32xf32, #tpu.memory_space<vmem>>, vector<1x1x32xf32>
    %314 = vector.shape_cast %313 : vector<1x1x32xf32> to vector<1x32xf32>
    %c0_i32_163 = arith.constant 0 : i32
    %315 = arith.cmpi ne, %311, %c0_i32_163 : i32
    %316 = arith.maximumf %308, %314 : vector<1x32xf32>
    %317 = arith.select %315, %316, %308 : vector<1x32xf32>
    %c0_i32_164 = arith.constant 0 : i32
    %318 = arith.addi %0, %c0_i32_164 : i32
    %319 = arith.index_cast %318 : i32 to index
    %c2_165 = arith.constant 2 : index
    %320 = memref.load %arg2[%319, %c2_165] : memref<16x4xi32, #tpu.memory_space<smem>>
    %c0_166 = arith.constant 0 : index
    %321 = arith.index_cast %320 : i32 to index
    %c0_167 = arith.constant 0 : index
    %322 = vector.load %arg4[%c0_166, %321, %c0_167] : memref<8x16x32xf32, #tpu.memory_space<vmem>>, vector<1x1x32xf32>
    %323 = vector.shape_cast %322 : vector<1x1x32xf32> to vector<1x32xf32>
    %c0_i32_168 = arith.constant 0 : i32
    %324 = arith.cmpi ne, %320, %c0_i32_168 : i32
    %325 = arith.maximumf %317, %323 : vector<1x32xf32>
    %326 = arith.select %324, %325, %317 : vector<1x32xf32>
    %c0_i32_169 = arith.constant 0 : i32
    %327 = arith.addi %0, %c0_i32_169 : i32
    %328 = arith.index_cast %327 : i32 to index
    %c3_170 = arith.constant 3 : index
    %329 = memref.load %arg2[%328, %c3_170] : memref<16x4xi32, #tpu.memory_space<smem>>
    %c0_171 = arith.constant 0 : index
    %330 = arith.index_cast %329 : i32 to index
    %c0_172 = arith.constant 0 : index
    %331 = vector.load %arg4[%c0_171, %330, %c0_172] : memref<8x16x32xf32, #tpu.memory_space<vmem>>, vector<1x1x32xf32>
    %332 = vector.shape_cast %331 : vector<1x1x32xf32> to vector<1x32xf32>
    %c0_i32_173 = arith.constant 0 : i32
    %333 = arith.cmpi ne, %329, %c0_i32_173 : i32
    %334 = arith.maximumf %326, %332 : vector<1x32xf32>
    %335 = arith.select %333, %334, %326 : vector<1x32xf32>
    %cst_174 = arith.constant 0xFF800000 : f32
    %336 = vector.broadcast %cst_174 : f32 to vector<1x32xf32>
    %c1_i32_175 = arith.constant 1 : i32
    %337 = arith.addi %0, %c1_i32_175 : i32
    %338 = arith.index_cast %337 : i32 to index
    %c0_176 = arith.constant 0 : index
    %339 = memref.load %arg2[%338, %c0_176] : memref<16x4xi32, #tpu.memory_space<smem>>
    %c1_177 = arith.constant 1 : index
    %340 = arith.index_cast %339 : i32 to index
    %c0_178 = arith.constant 0 : index
    %341 = vector.load %arg4[%c1_177, %340, %c0_178] : memref<8x16x32xf32, #tpu.memory_space<vmem>>, vector<1x1x32xf32>
    %342 = vector.shape_cast %341 : vector<1x1x32xf32> to vector<1x32xf32>
    %c0_i32_179 = arith.constant 0 : i32
    %343 = arith.cmpi ne, %339, %c0_i32_179 : i32
    %344 = arith.maximumf %336, %342 : vector<1x32xf32>
    %345 = arith.select %343, %344, %336 : vector<1x32xf32>
    %c1_i32_180 = arith.constant 1 : i32
    %346 = arith.addi %0, %c1_i32_180 : i32
    %347 = arith.index_cast %346 : i32 to index
    %c1_181 = arith.constant 1 : index
    %348 = memref.load %arg2[%347, %c1_181] : memref<16x4xi32, #tpu.memory_space<smem>>
    %c1_182 = arith.constant 1 : index
    %349 = arith.index_cast %348 : i32 to index
    %c0_183 = arith.constant 0 : index
    %350 = vector.load %arg4[%c1_182, %349, %c0_183] : memref<8x16x32xf32, #tpu.memory_space<vmem>>, vector<1x1x32xf32>
    %351 = vector.shape_cast %350 : vector<1x1x32xf32> to vector<1x32xf32>
    %c0_i32_184 = arith.constant 0 : i32
    %352 = arith.cmpi ne, %348, %c0_i32_184 : i32
    %353 = arith.maximumf %345, %351 : vector<1x32xf32>
    %354 = arith.select %352, %353, %345 : vector<1x32xf32>
    %c1_i32_185 = arith.constant 1 : i32
    %355 = arith.addi %0, %c1_i32_185 : i32
    %356 = arith.index_cast %355 : i32 to index
    %c2_186 = arith.constant 2 : index
    %357 = memref.load %arg2[%356, %c2_186] : memref<16x4xi32, #tpu.memory_space<smem>>
    %c1_187 = arith.constant 1 : index
    %358 = arith.index_cast %357 : i32 to index
    %c0_188 = arith.constant 0 : index
    %359 = vector.load %arg4[%c1_187, %358, %c0_188] : memref<8x16x32xf32, #tpu.memory_space<vmem>>, vector<1x1x32xf32>
    %360 = vector.shape_cast %359 : vector<1x1x32xf32> to vector<1x32xf32>
    %c0_i32_189 = arith.constant 0 : i32
    %361 = arith.cmpi ne, %357, %c0_i32_189 : i32
    %362 = arith.maximumf %354, %360 : vector<1x32xf32>
    %363 = arith.select %361, %362, %354 : vector<1x32xf32>
    %c1_i32_190 = arith.constant 1 : i32
    %364 = arith.addi %0, %c1_i32_190 : i32
    %365 = arith.index_cast %364 : i32 to index
    %c3_191 = arith.constant 3 : index
    %366 = memref.load %arg2[%365, %c3_191] : memref<16x4xi32, #tpu.memory_space<smem>>
    %c1_192 = arith.constant 1 : index
    %367 = arith.index_cast %366 : i32 to index
    %c0_193 = arith.constant 0 : index
    %368 = vector.load %arg4[%c1_192, %367, %c0_193] : memref<8x16x32xf32, #tpu.memory_space<vmem>>, vector<1x1x32xf32>
    %369 = vector.shape_cast %368 : vector<1x1x32xf32> to vector<1x32xf32>
    %c0_i32_194 = arith.constant 0 : i32
    %370 = arith.cmpi ne, %366, %c0_i32_194 : i32
    %371 = arith.maximumf %363, %369 : vector<1x32xf32>
    %372 = arith.select %370, %371, %363 : vector<1x32xf32>
    %cst_195 = arith.constant 0xFF800000 : f32
    %373 = vector.broadcast %cst_195 : f32 to vector<1x32xf32>
    %c2_i32_196 = arith.constant 2 : i32
    %374 = arith.addi %0, %c2_i32_196 : i32
    %375 = arith.index_cast %374 : i32 to index
    %c0_197 = arith.constant 0 : index
    %376 = memref.load %arg2[%375, %c0_197] : memref<16x4xi32, #tpu.memory_space<smem>>
    %c2_198 = arith.constant 2 : index
    %377 = arith.index_cast %376 : i32 to index
    %c0_199 = arith.constant 0 : index
    %378 = vector.load %arg4[%c2_198, %377, %c0_199] : memref<8x16x32xf32, #tpu.memory_space<vmem>>, vector<1x1x32xf32>
    %379 = vector.shape_cast %378 : vector<1x1x32xf32> to vector<1x32xf32>
    %c0_i32_200 = arith.constant 0 : i32
    %380 = arith.cmpi ne, %376, %c0_i32_200 : i32
    %381 = arith.maximumf %373, %379 : vector<1x32xf32>
    %382 = arith.select %380, %381, %373 : vector<1x32xf32>
    %c2_i32_201 = arith.constant 2 : i32
    %383 = arith.addi %0, %c2_i32_201 : i32
    %384 = arith.index_cast %383 : i32 to index
    %c1_202 = arith.constant 1 : index
    %385 = memref.load %arg2[%384, %c1_202] : memref<16x4xi32, #tpu.memory_space<smem>>
    %c2_203 = arith.constant 2 : index
    %386 = arith.index_cast %385 : i32 to index
    %c0_204 = arith.constant 0 : index
    %387 = vector.load %arg4[%c2_203, %386, %c0_204] : memref<8x16x32xf32, #tpu.memory_space<vmem>>, vector<1x1x32xf32>
    %388 = vector.shape_cast %387 : vector<1x1x32xf32> to vector<1x32xf32>
    %c0_i32_205 = arith.constant 0 : i32
    %389 = arith.cmpi ne, %385, %c0_i32_205 : i32
    %390 = arith.maximumf %382, %388 : vector<1x32xf32>
    %391 = arith.select %389, %390, %382 : vector<1x32xf32>
    %c2_i32_206 = arith.constant 2 : i32
    %392 = arith.addi %0, %c2_i32_206 : i32
    %393 = arith.index_cast %392 : i32 to index
    %c2_207 = arith.constant 2 : index
    %394 = memref.load %arg2[%393, %c2_207] : memref<16x4xi32, #tpu.memory_space<smem>>
    %c2_208 = arith.constant 2 : index
    %395 = arith.index_cast %394 : i32 to index
    %c0_209 = arith.constant 0 : index
    %396 = vector.load %arg4[%c2_208, %395, %c0_209] : memref<8x16x32xf32, #tpu.memory_space<vmem>>, vector<1x1x32xf32>
    %397 = vector.shape_cast %396 : vector<1x1x32xf32> to vector<1x32xf32>
    %c0_i32_210 = arith.constant 0 : i32
    %398 = arith.cmpi ne, %394, %c0_i32_210 : i32
    %399 = arith.maximumf %391, %397 : vector<1x32xf32>
    %400 = arith.select %398, %399, %391 : vector<1x32xf32>
    %c2_i32_211 = arith.constant 2 : i32
    %401 = arith.addi %0, %c2_i32_211 : i32
    %402 = arith.index_cast %401 : i32 to index
    %c3_212 = arith.constant 3 : index
    %403 = memref.load %arg2[%402, %c3_212] : memref<16x4xi32, #tpu.memory_space<smem>>
    %c2_213 = arith.constant 2 : index
    %404 = arith.index_cast %403 : i32 to index
    %c0_214 = arith.constant 0 : index
    %405 = vector.load %arg4[%c2_213, %404, %c0_214] : memref<8x16x32xf32, #tpu.memory_space<vmem>>, vector<1x1x32xf32>
    %406 = vector.shape_cast %405 : vector<1x1x32xf32> to vector<1x32xf32>
    %c0_i32_215 = arith.constant 0 : i32
    %407 = arith.cmpi ne, %403, %c0_i32_215 : i32
    %408 = arith.maximumf %400, %406 : vector<1x32xf32>
    %409 = arith.select %407, %408, %400 : vector<1x32xf32>
    %cst_216 = arith.constant 0xFF800000 : f32
    %410 = vector.broadcast %cst_216 : f32 to vector<1x32xf32>
    %c3_i32_217 = arith.constant 3 : i32
    %411 = arith.addi %0, %c3_i32_217 : i32
    %412 = arith.index_cast %411 : i32 to index
    %c0_218 = arith.constant 0 : index
    %413 = memref.load %arg2[%412, %c0_218] : memref<16x4xi32, #tpu.memory_space<smem>>
    %c3_219 = arith.constant 3 : index
    %414 = arith.index_cast %413 : i32 to index
    %c0_220 = arith.constant 0 : index
    %415 = vector.load %arg4[%c3_219, %414, %c0_220] : memref<8x16x32xf32, #tpu.memory_space<vmem>>, vector<1x1x32xf32>
    %416 = vector.shape_cast %415 : vector<1x1x32xf32> to vector<1x32xf32>
    %c0_i32_221 = arith.constant 0 : i32
    %417 = arith.cmpi ne, %413, %c0_i32_221 : i32
    %418 = arith.maximumf %410, %416 : vector<1x32xf32>
    %419 = arith.select %417, %418, %410 : vector<1x32xf32>
    %c3_i32_222 = arith.constant 3 : i32
    %420 = arith.addi %0, %c3_i32_222 : i32
    %421 = arith.index_cast %420 : i32 to index
    %c1_223 = arith.constant 1 : index
    %422 = memref.load %arg2[%421, %c1_223] : memref<16x4xi32, #tpu.memory_space<smem>>
    %c3_224 = arith.constant 3 : index
    %423 = arith.index_cast %422 : i32 to index
    %c0_225 = arith.constant 0 : index
    %424 = vector.load %arg4[%c3_224, %423, %c0_225] : memref<8x16x32xf32, #tpu.memory_space<vmem>>, vector<1x1x32xf32>
    %425 = vector.shape_cast %424 : vector<1x1x32xf32> to vector<1x32xf32>
    %c0_i32_226 = arith.constant 0 : i32
    %426 = arith.cmpi ne, %422, %c0_i32_226 : i32
    %427 = arith.maximumf %419, %425 : vector<1x32xf32>
    %428 = arith.select %426, %427, %419 : vector<1x32xf32>
    %c3_i32_227 = arith.constant 3 : i32
    %429 = arith.addi %0, %c3_i32_227 : i32
    %430 = arith.index_cast %429 : i32 to index
    %c2_228 = arith.constant 2 : index
    %431 = memref.load %arg2[%430, %c2_228] : memref<16x4xi32, #tpu.memory_space<smem>>
    %c3_229 = arith.constant 3 : index
    %432 = arith.index_cast %431 : i32 to index
    %c0_230 = arith.constant 0 : index
    %433 = vector.load %arg4[%c3_229, %432, %c0_230] : memref<8x16x32xf32, #tpu.memory_space<vmem>>, vector<1x1x32xf32>
    %434 = vector.shape_cast %433 : vector<1x1x32xf32> to vector<1x32xf32>
    %c0_i32_231 = arith.constant 0 : i32
    %435 = arith.cmpi ne, %431, %c0_i32_231 : i32
    %436 = arith.maximumf %428, %434 : vector<1x32xf32>
    %437 = arith.select %435, %436, %428 : vector<1x32xf32>
    %c3_i32_232 = arith.constant 3 : i32
    %438 = arith.addi %0, %c3_i32_232 : i32
    %439 = arith.index_cast %438 : i32 to index
    %c3_233 = arith.constant 3 : index
    %440 = memref.load %arg2[%439, %c3_233] : memref<16x4xi32, #tpu.memory_space<smem>>
    %c3_234 = arith.constant 3 : index
    %441 = arith.index_cast %440 : i32 to index
    %c0_235 = arith.constant 0 : index
    %442 = vector.load %arg4[%c3_234, %441, %c0_235] : memref<8x16x32xf32, #tpu.memory_space<vmem>>, vector<1x1x32xf32>
    %443 = vector.shape_cast %442 : vector<1x1x32xf32> to vector<1x32xf32>
    %c0_i32_236 = arith.constant 0 : i32
    %444 = arith.cmpi ne, %440, %c0_i32_236 : i32
    %445 = arith.maximumf %437, %443 : vector<1x32xf32>
    %446 = arith.select %444, %445, %437 : vector<1x32xf32>
    %cst_237 = arith.constant 0xFF800000 : f32
    %447 = vector.broadcast %cst_237 : f32 to vector<1x32xf32>
    %c4_i32_238 = arith.constant 4 : i32
    %448 = arith.addi %0, %c4_i32_238 : i32
    %449 = arith.index_cast %448 : i32 to index
    %c0_239 = arith.constant 0 : index
    %450 = memref.load %arg2[%449, %c0_239] : memref<16x4xi32, #tpu.memory_space<smem>>
    %c4_240 = arith.constant 4 : index
    %451 = arith.index_cast %450 : i32 to index
    %c0_241 = arith.constant 0 : index
    %452 = vector.load %arg4[%c4_240, %451, %c0_241] : memref<8x16x32xf32, #tpu.memory_space<vmem>>, vector<1x1x32xf32>
    %453 = vector.shape_cast %452 : vector<1x1x32xf32> to vector<1x32xf32>
    %c0_i32_242 = arith.constant 0 : i32
    %454 = arith.cmpi ne, %450, %c0_i32_242 : i32
    %455 = arith.maximumf %447, %453 : vector<1x32xf32>
    %456 = arith.select %454, %455, %447 : vector<1x32xf32>
    %c4_i32_243 = arith.constant 4 : i32
    %457 = arith.addi %0, %c4_i32_243 : i32
    %458 = arith.index_cast %457 : i32 to index
    %c1_244 = arith.constant 1 : index
    %459 = memref.load %arg2[%458, %c1_244] : memref<16x4xi32, #tpu.memory_space<smem>>
    %c4_245 = arith.constant 4 : index
    %460 = arith.index_cast %459 : i32 to index
    %c0_246 = arith.constant 0 : index
    %461 = vector.load %arg4[%c4_245, %460, %c0_246] : memref<8x16x32xf32, #tpu.memory_space<vmem>>, vector<1x1x32xf32>
    %462 = vector.shape_cast %461 : vector<1x1x32xf32> to vector<1x32xf32>
    %c0_i32_247 = arith.constant 0 : i32
    %463 = arith.cmpi ne, %459, %c0_i32_247 : i32
    %464 = arith.maximumf %456, %462 : vector<1x32xf32>
    %465 = arith.select %463, %464, %456 : vector<1x32xf32>
    %c4_i32_248 = arith.constant 4 : i32
    %466 = arith.addi %0, %c4_i32_248 : i32
    %467 = arith.index_cast %466 : i32 to index
    %c2_249 = arith.constant 2 : index
    %468 = memref.load %arg2[%467, %c2_249] : memref<16x4xi32, #tpu.memory_space<smem>>
    %c4_250 = arith.constant 4 : index
    %469 = arith.index_cast %468 : i32 to index
    %c0_251 = arith.constant 0 : index
    %470 = vector.load %arg4[%c4_250, %469, %c0_251] : memref<8x16x32xf32, #tpu.memory_space<vmem>>, vector<1x1x32xf32>
    %471 = vector.shape_cast %470 : vector<1x1x32xf32> to vector<1x32xf32>
    %c0_i32_252 = arith.constant 0 : i32
    %472 = arith.cmpi ne, %468, %c0_i32_252 : i32
    %473 = arith.maximumf %465, %471 : vector<1x32xf32>
    %474 = arith.select %472, %473, %465 : vector<1x32xf32>
    %c4_i32_253 = arith.constant 4 : i32
    %475 = arith.addi %0, %c4_i32_253 : i32
    %476 = arith.index_cast %475 : i32 to index
    %c3_254 = arith.constant 3 : index
    %477 = memref.load %arg2[%476, %c3_254] : memref<16x4xi32, #tpu.memory_space<smem>>
    %c4_255 = arith.constant 4 : index
    %478 = arith.index_cast %477 : i32 to index
    %c0_256 = arith.constant 0 : index
    %479 = vector.load %arg4[%c4_255, %478, %c0_256] : memref<8x16x32xf32, #tpu.memory_space<vmem>>, vector<1x1x32xf32>
    %480 = vector.shape_cast %479 : vector<1x1x32xf32> to vector<1x32xf32>
    %c0_i32_257 = arith.constant 0 : i32
    %481 = arith.cmpi ne, %477, %c0_i32_257 : i32
    %482 = arith.maximumf %474, %480 : vector<1x32xf32>
    %483 = arith.select %481, %482, %474 : vector<1x32xf32>
    %cst_258 = arith.constant 0xFF800000 : f32
    %484 = vector.broadcast %cst_258 : f32 to vector<1x32xf32>
    %c5_i32_259 = arith.constant 5 : i32
    %485 = arith.addi %0, %c5_i32_259 : i32
    %486 = arith.index_cast %485 : i32 to index
    %c0_260 = arith.constant 0 : index
    %487 = memref.load %arg2[%486, %c0_260] : memref<16x4xi32, #tpu.memory_space<smem>>
    %c5_261 = arith.constant 5 : index
    %488 = arith.index_cast %487 : i32 to index
    %c0_262 = arith.constant 0 : index
    %489 = vector.load %arg4[%c5_261, %488, %c0_262] : memref<8x16x32xf32, #tpu.memory_space<vmem>>, vector<1x1x32xf32>
    %490 = vector.shape_cast %489 : vector<1x1x32xf32> to vector<1x32xf32>
    %c0_i32_263 = arith.constant 0 : i32
    %491 = arith.cmpi ne, %487, %c0_i32_263 : i32
    %492 = arith.maximumf %484, %490 : vector<1x32xf32>
    %493 = arith.select %491, %492, %484 : vector<1x32xf32>
    %c5_i32_264 = arith.constant 5 : i32
    %494 = arith.addi %0, %c5_i32_264 : i32
    %495 = arith.index_cast %494 : i32 to index
    %c1_265 = arith.constant 1 : index
    %496 = memref.load %arg2[%495, %c1_265] : memref<16x4xi32, #tpu.memory_space<smem>>
    %c5_266 = arith.constant 5 : index
    %497 = arith.index_cast %496 : i32 to index
    %c0_267 = arith.constant 0 : index
    %498 = vector.load %arg4[%c5_266, %497, %c0_267] : memref<8x16x32xf32, #tpu.memory_space<vmem>>, vector<1x1x32xf32>
    %499 = vector.shape_cast %498 : vector<1x1x32xf32> to vector<1x32xf32>
    %c0_i32_268 = arith.constant 0 : i32
    %500 = arith.cmpi ne, %496, %c0_i32_268 : i32
    %501 = arith.maximumf %493, %499 : vector<1x32xf32>
    %502 = arith.select %500, %501, %493 : vector<1x32xf32>
    %c5_i32_269 = arith.constant 5 : i32
    %503 = arith.addi %0, %c5_i32_269 : i32
    %504 = arith.index_cast %503 : i32 to index
    %c2_270 = arith.constant 2 : index
    %505 = memref.load %arg2[%504, %c2_270] : memref<16x4xi32, #tpu.memory_space<smem>>
    %c5_271 = arith.constant 5 : index
    %506 = arith.index_cast %505 : i32 to index
    %c0_272 = arith.constant 0 : index
    %507 = vector.load %arg4[%c5_271, %506, %c0_272] : memref<8x16x32xf32, #tpu.memory_space<vmem>>, vector<1x1x32xf32>
    %508 = vector.shape_cast %507 : vector<1x1x32xf32> to vector<1x32xf32>
    %c0_i32_273 = arith.constant 0 : i32
    %509 = arith.cmpi ne, %505, %c0_i32_273 : i32
    %510 = arith.maximumf %502, %508 : vector<1x32xf32>
    %511 = arith.select %509, %510, %502 : vector<1x32xf32>
    %c5_i32_274 = arith.constant 5 : i32
    %512 = arith.addi %0, %c5_i32_274 : i32
    %513 = arith.index_cast %512 : i32 to index
    %c3_275 = arith.constant 3 : index
    %514 = memref.load %arg2[%513, %c3_275] : memref<16x4xi32, #tpu.memory_space<smem>>
    %c5_276 = arith.constant 5 : index
    %515 = arith.index_cast %514 : i32 to index
    %c0_277 = arith.constant 0 : index
    %516 = vector.load %arg4[%c5_276, %515, %c0_277] : memref<8x16x32xf32, #tpu.memory_space<vmem>>, vector<1x1x32xf32>
    %517 = vector.shape_cast %516 : vector<1x1x32xf32> to vector<1x32xf32>
    %c0_i32_278 = arith.constant 0 : i32
    %518 = arith.cmpi ne, %514, %c0_i32_278 : i32
    %519 = arith.maximumf %511, %517 : vector<1x32xf32>
    %520 = arith.select %518, %519, %511 : vector<1x32xf32>
    %cst_279 = arith.constant 0xFF800000 : f32
    %521 = vector.broadcast %cst_279 : f32 to vector<1x32xf32>
    %c6_i32_280 = arith.constant 6 : i32
    %522 = arith.addi %0, %c6_i32_280 : i32
    %523 = arith.index_cast %522 : i32 to index
    %c0_281 = arith.constant 0 : index
    %524 = memref.load %arg2[%523, %c0_281] : memref<16x4xi32, #tpu.memory_space<smem>>
    %c6_282 = arith.constant 6 : index
    %525 = arith.index_cast %524 : i32 to index
    %c0_283 = arith.constant 0 : index
    %526 = vector.load %arg4[%c6_282, %525, %c0_283] : memref<8x16x32xf32, #tpu.memory_space<vmem>>, vector<1x1x32xf32>
    %527 = vector.shape_cast %526 : vector<1x1x32xf32> to vector<1x32xf32>
    %c0_i32_284 = arith.constant 0 : i32
    %528 = arith.cmpi ne, %524, %c0_i32_284 : i32
    %529 = arith.maximumf %521, %527 : vector<1x32xf32>
    %530 = arith.select %528, %529, %521 : vector<1x32xf32>
    %c6_i32_285 = arith.constant 6 : i32
    %531 = arith.addi %0, %c6_i32_285 : i32
    %532 = arith.index_cast %531 : i32 to index
    %c1_286 = arith.constant 1 : index
    %533 = memref.load %arg2[%532, %c1_286] : memref<16x4xi32, #tpu.memory_space<smem>>
    %c6_287 = arith.constant 6 : index
    %534 = arith.index_cast %533 : i32 to index
    %c0_288 = arith.constant 0 : index
    %535 = vector.load %arg4[%c6_287, %534, %c0_288] : memref<8x16x32xf32, #tpu.memory_space<vmem>>, vector<1x1x32xf32>
    %536 = vector.shape_cast %535 : vector<1x1x32xf32> to vector<1x32xf32>
    %c0_i32_289 = arith.constant 0 : i32
    %537 = arith.cmpi ne, %533, %c0_i32_289 : i32
    %538 = arith.maximumf %530, %536 : vector<1x32xf32>
    %539 = arith.select %537, %538, %530 : vector<1x32xf32>
    %c6_i32_290 = arith.constant 6 : i32
    %540 = arith.addi %0, %c6_i32_290 : i32
    %541 = arith.index_cast %540 : i32 to index
    %c2_291 = arith.constant 2 : index
    %542 = memref.load %arg2[%541, %c2_291] : memref<16x4xi32, #tpu.memory_space<smem>>
    %c6_292 = arith.constant 6 : index
    %543 = arith.index_cast %542 : i32 to index
    %c0_293 = arith.constant 0 : index
    %544 = vector.load %arg4[%c6_292, %543, %c0_293] : memref<8x16x32xf32, #tpu.memory_space<vmem>>, vector<1x1x32xf32>
    %545 = vector.shape_cast %544 : vector<1x1x32xf32> to vector<1x32xf32>
    %c0_i32_294 = arith.constant 0 : i32
    %546 = arith.cmpi ne, %542, %c0_i32_294 : i32
    %547 = arith.maximumf %539, %545 : vector<1x32xf32>
    %548 = arith.select %546, %547, %539 : vector<1x32xf32>
    %c6_i32_295 = arith.constant 6 : i32
    %549 = arith.addi %0, %c6_i32_295 : i32
    %550 = arith.index_cast %549 : i32 to index
    %c3_296 = arith.constant 3 : index
    %551 = memref.load %arg2[%550, %c3_296] : memref<16x4xi32, #tpu.memory_space<smem>>
    %c6_297 = arith.constant 6 : index
    %552 = arith.index_cast %551 : i32 to index
    %c0_298 = arith.constant 0 : index
    %553 = vector.load %arg4[%c6_297, %552, %c0_298] : memref<8x16x32xf32, #tpu.memory_space<vmem>>, vector<1x1x32xf32>
    %554 = vector.shape_cast %553 : vector<1x1x32xf32> to vector<1x32xf32>
    %c0_i32_299 = arith.constant 0 : i32
    %555 = arith.cmpi ne, %551, %c0_i32_299 : i32
    %556 = arith.maximumf %548, %554 : vector<1x32xf32>
    %557 = arith.select %555, %556, %548 : vector<1x32xf32>
    %cst_300 = arith.constant 0xFF800000 : f32
    %558 = vector.broadcast %cst_300 : f32 to vector<1x32xf32>
    %c7_i32_301 = arith.constant 7 : i32
    %559 = arith.addi %0, %c7_i32_301 : i32
    %560 = arith.index_cast %559 : i32 to index
    %c0_302 = arith.constant 0 : index
    %561 = memref.load %arg2[%560, %c0_302] : memref<16x4xi32, #tpu.memory_space<smem>>
    %c7_303 = arith.constant 7 : index
    %562 = arith.index_cast %561 : i32 to index
    %c0_304 = arith.constant 0 : index
    %563 = vector.load %arg4[%c7_303, %562, %c0_304] : memref<8x16x32xf32, #tpu.memory_space<vmem>>, vector<1x1x32xf32>
    %564 = vector.shape_cast %563 : vector<1x1x32xf32> to vector<1x32xf32>
    %c0_i32_305 = arith.constant 0 : i32
    %565 = arith.cmpi ne, %561, %c0_i32_305 : i32
    %566 = arith.maximumf %558, %564 : vector<1x32xf32>
    %567 = arith.select %565, %566, %558 : vector<1x32xf32>
    %c7_i32_306 = arith.constant 7 : i32
    %568 = arith.addi %0, %c7_i32_306 : i32
    %569 = arith.index_cast %568 : i32 to index
    %c1_307 = arith.constant 1 : index
    %570 = memref.load %arg2[%569, %c1_307] : memref<16x4xi32, #tpu.memory_space<smem>>
    %c7_308 = arith.constant 7 : index
    %571 = arith.index_cast %570 : i32 to index
    %c0_309 = arith.constant 0 : index
    %572 = vector.load %arg4[%c7_308, %571, %c0_309] : memref<8x16x32xf32, #tpu.memory_space<vmem>>, vector<1x1x32xf32>
    %573 = vector.shape_cast %572 : vector<1x1x32xf32> to vector<1x32xf32>
    %c0_i32_310 = arith.constant 0 : i32
    %574 = arith.cmpi ne, %570, %c0_i32_310 : i32
    %575 = arith.maximumf %567, %573 : vector<1x32xf32>
    %576 = arith.select %574, %575, %567 : vector<1x32xf32>
    %c7_i32_311 = arith.constant 7 : i32
    %577 = arith.addi %0, %c7_i32_311 : i32
    %578 = arith.index_cast %577 : i32 to index
    %c2_312 = arith.constant 2 : index
    %579 = memref.load %arg2[%578, %c2_312] : memref<16x4xi32, #tpu.memory_space<smem>>
    %c7_313 = arith.constant 7 : index
    %580 = arith.index_cast %579 : i32 to index
    %c0_314 = arith.constant 0 : index
    %581 = vector.load %arg4[%c7_313, %580, %c0_314] : memref<8x16x32xf32, #tpu.memory_space<vmem>>, vector<1x1x32xf32>
    %582 = vector.shape_cast %581 : vector<1x1x32xf32> to vector<1x32xf32>
    %c0_i32_315 = arith.constant 0 : i32
    %583 = arith.cmpi ne, %579, %c0_i32_315 : i32
    %584 = arith.maximumf %576, %582 : vector<1x32xf32>
    %585 = arith.select %583, %584, %576 : vector<1x32xf32>
    %c7_i32_316 = arith.constant 7 : i32
    %586 = arith.addi %0, %c7_i32_316 : i32
    %587 = arith.index_cast %586 : i32 to index
    %c3_317 = arith.constant 3 : index
    %588 = memref.load %arg2[%587, %c3_317] : memref<16x4xi32, #tpu.memory_space<smem>>
    %c7_318 = arith.constant 7 : index
    %589 = arith.index_cast %588 : i32 to index
    %c0_319 = arith.constant 0 : index
    %590 = vector.load %arg4[%c7_318, %589, %c0_319] : memref<8x16x32xf32, #tpu.memory_space<vmem>>, vector<1x1x32xf32>
    %591 = vector.shape_cast %590 : vector<1x1x32xf32> to vector<1x32xf32>
    %c0_i32_320 = arith.constant 0 : i32
    %592 = arith.cmpi ne, %588, %c0_i32_320 : i32
    %593 = arith.maximumf %585, %591 : vector<1x32xf32>
    %594 = arith.select %592, %593, %585 : vector<1x32xf32>
    %595 = tpu.concatenate %335, %372, %409, %446, %483, %520, %557, %594 in 0 : vector<1x32xf32>, vector<1x32xf32>, vector<1x32xf32>, vector<1x32xf32>, vector<1x32xf32>, vector<1x32xf32>, vector<1x32xf32>, vector<1x32xf32> -> vector<8x32xf32>
    %cst_321 = arith.constant 0xFF800000 : f32
    %596 = vector.broadcast %cst_321 : f32 to vector<1x32xf32>
    %c0_i32_322 = arith.constant 0 : i32
    %597 = arith.addi %0, %c0_i32_322 : i32
    %598 = arith.index_cast %597 : i32 to index
    %c0_323 = arith.constant 0 : index
    %599 = memref.load %arg3[%598, %c0_323] : memref<16x4xi32, #tpu.memory_space<smem>>
    %c0_324 = arith.constant 0 : index
    %600 = arith.index_cast %599 : i32 to index
    %c0_325 = arith.constant 0 : index
    %601 = vector.load %arg4[%c0_324, %600, %c0_325] : memref<8x16x32xf32, #tpu.memory_space<vmem>>, vector<1x1x32xf32>
    %602 = vector.shape_cast %601 : vector<1x1x32xf32> to vector<1x32xf32>
    %c0_i32_326 = arith.constant 0 : i32
    %603 = arith.cmpi ne, %599, %c0_i32_326 : i32
    %604 = arith.maximumf %596, %602 : vector<1x32xf32>
    %605 = arith.select %603, %604, %596 : vector<1x32xf32>
    %c0_i32_327 = arith.constant 0 : i32
    %606 = arith.addi %0, %c0_i32_327 : i32
    %607 = arith.index_cast %606 : i32 to index
    %c1_328 = arith.constant 1 : index
    %608 = memref.load %arg3[%607, %c1_328] : memref<16x4xi32, #tpu.memory_space<smem>>
    %c0_329 = arith.constant 0 : index
    %609 = arith.index_cast %608 : i32 to index
    %c0_330 = arith.constant 0 : index
    %610 = vector.load %arg4[%c0_329, %609, %c0_330] : memref<8x16x32xf32, #tpu.memory_space<vmem>>, vector<1x1x32xf32>
    %611 = vector.shape_cast %610 : vector<1x1x32xf32> to vector<1x32xf32>
    %c0_i32_331 = arith.constant 0 : i32
    %612 = arith.cmpi ne, %608, %c0_i32_331 : i32
    %613 = arith.maximumf %605, %611 : vector<1x32xf32>
    %614 = arith.select %612, %613, %605 : vector<1x32xf32>
    %c0_i32_332 = arith.constant 0 : i32
    %615 = arith.addi %0, %c0_i32_332 : i32
    %616 = arith.index_cast %615 : i32 to index
    %c2_333 = arith.constant 2 : index
    %617 = memref.load %arg3[%616, %c2_333] : memref<16x4xi32, #tpu.memory_space<smem>>
    %c0_334 = arith.constant 0 : index
    %618 = arith.index_cast %617 : i32 to index
    %c0_335 = arith.constant 0 : index
    %619 = vector.load %arg4[%c0_334, %618, %c0_335] : memref<8x16x32xf32, #tpu.memory_space<vmem>>, vector<1x1x32xf32>
    %620 = vector.shape_cast %619 : vector<1x1x32xf32> to vector<1x32xf32>
    %c0_i32_336 = arith.constant 0 : i32
    %621 = arith.cmpi ne, %617, %c0_i32_336 : i32
    %622 = arith.maximumf %614, %620 : vector<1x32xf32>
    %623 = arith.select %621, %622, %614 : vector<1x32xf32>
    %c0_i32_337 = arith.constant 0 : i32
    %624 = arith.addi %0, %c0_i32_337 : i32
    %625 = arith.index_cast %624 : i32 to index
    %c3_338 = arith.constant 3 : index
    %626 = memref.load %arg3[%625, %c3_338] : memref<16x4xi32, #tpu.memory_space<smem>>
    %c0_339 = arith.constant 0 : index
    %627 = arith.index_cast %626 : i32 to index
    %c0_340 = arith.constant 0 : index
    %628 = vector.load %arg4[%c0_339, %627, %c0_340] : memref<8x16x32xf32, #tpu.memory_space<vmem>>, vector<1x1x32xf32>
    %629 = vector.shape_cast %628 : vector<1x1x32xf32> to vector<1x32xf32>
    %c0_i32_341 = arith.constant 0 : i32
    %630 = arith.cmpi ne, %626, %c0_i32_341 : i32
    %631 = arith.maximumf %623, %629 : vector<1x32xf32>
    %632 = arith.select %630, %631, %623 : vector<1x32xf32>
    %cst_342 = arith.constant 0xFF800000 : f32
    %633 = vector.broadcast %cst_342 : f32 to vector<1x32xf32>
    %c1_i32_343 = arith.constant 1 : i32
    %634 = arith.addi %0, %c1_i32_343 : i32
    %635 = arith.index_cast %634 : i32 to index
    %c0_344 = arith.constant 0 : index
    %636 = memref.load %arg3[%635, %c0_344] : memref<16x4xi32, #tpu.memory_space<smem>>
    %c1_345 = arith.constant 1 : index
    %637 = arith.index_cast %636 : i32 to index
    %c0_346 = arith.constant 0 : index
    %638 = vector.load %arg4[%c1_345, %637, %c0_346] : memref<8x16x32xf32, #tpu.memory_space<vmem>>, vector<1x1x32xf32>
    %639 = vector.shape_cast %638 : vector<1x1x32xf32> to vector<1x32xf32>
    %c0_i32_347 = arith.constant 0 : i32
    %640 = arith.cmpi ne, %636, %c0_i32_347 : i32
    %641 = arith.maximumf %633, %639 : vector<1x32xf32>
    %642 = arith.select %640, %641, %633 : vector<1x32xf32>
    %c1_i32_348 = arith.constant 1 : i32
    %643 = arith.addi %0, %c1_i32_348 : i32
    %644 = arith.index_cast %643 : i32 to index
    %c1_349 = arith.constant 1 : index
    %645 = memref.load %arg3[%644, %c1_349] : memref<16x4xi32, #tpu.memory_space<smem>>
    %c1_350 = arith.constant 1 : index
    %646 = arith.index_cast %645 : i32 to index
    %c0_351 = arith.constant 0 : index
    %647 = vector.load %arg4[%c1_350, %646, %c0_351] : memref<8x16x32xf32, #tpu.memory_space<vmem>>, vector<1x1x32xf32>
    %648 = vector.shape_cast %647 : vector<1x1x32xf32> to vector<1x32xf32>
    %c0_i32_352 = arith.constant 0 : i32
    %649 = arith.cmpi ne, %645, %c0_i32_352 : i32
    %650 = arith.maximumf %642, %648 : vector<1x32xf32>
    %651 = arith.select %649, %650, %642 : vector<1x32xf32>
    %c1_i32_353 = arith.constant 1 : i32
    %652 = arith.addi %0, %c1_i32_353 : i32
    %653 = arith.index_cast %652 : i32 to index
    %c2_354 = arith.constant 2 : index
    %654 = memref.load %arg3[%653, %c2_354] : memref<16x4xi32, #tpu.memory_space<smem>>
    %c1_355 = arith.constant 1 : index
    %655 = arith.index_cast %654 : i32 to index
    %c0_356 = arith.constant 0 : index
    %656 = vector.load %arg4[%c1_355, %655, %c0_356] : memref<8x16x32xf32, #tpu.memory_space<vmem>>, vector<1x1x32xf32>
    %657 = vector.shape_cast %656 : vector<1x1x32xf32> to vector<1x32xf32>
    %c0_i32_357 = arith.constant 0 : i32
    %658 = arith.cmpi ne, %654, %c0_i32_357 : i32
    %659 = arith.maximumf %651, %657 : vector<1x32xf32>
    %660 = arith.select %658, %659, %651 : vector<1x32xf32>
    %c1_i32_358 = arith.constant 1 : i32
    %661 = arith.addi %0, %c1_i32_358 : i32
    %662 = arith.index_cast %661 : i32 to index
    %c3_359 = arith.constant 3 : index
    %663 = memref.load %arg3[%662, %c3_359] : memref<16x4xi32, #tpu.memory_space<smem>>
    %c1_360 = arith.constant 1 : index
    %664 = arith.index_cast %663 : i32 to index
    %c0_361 = arith.constant 0 : index
    %665 = vector.load %arg4[%c1_360, %664, %c0_361] : memref<8x16x32xf32, #tpu.memory_space<vmem>>, vector<1x1x32xf32>
    %666 = vector.shape_cast %665 : vector<1x1x32xf32> to vector<1x32xf32>
    %c0_i32_362 = arith.constant 0 : i32
    %667 = arith.cmpi ne, %663, %c0_i32_362 : i32
    %668 = arith.maximumf %660, %666 : vector<1x32xf32>
    %669 = arith.select %667, %668, %660 : vector<1x32xf32>
    %cst_363 = arith.constant 0xFF800000 : f32
    %670 = vector.broadcast %cst_363 : f32 to vector<1x32xf32>
    %c2_i32_364 = arith.constant 2 : i32
    %671 = arith.addi %0, %c2_i32_364 : i32
    %672 = arith.index_cast %671 : i32 to index
    %c0_365 = arith.constant 0 : index
    %673 = memref.load %arg3[%672, %c0_365] : memref<16x4xi32, #tpu.memory_space<smem>>
    %c2_366 = arith.constant 2 : index
    %674 = arith.index_cast %673 : i32 to index
    %c0_367 = arith.constant 0 : index
    %675 = vector.load %arg4[%c2_366, %674, %c0_367] : memref<8x16x32xf32, #tpu.memory_space<vmem>>, vector<1x1x32xf32>
    %676 = vector.shape_cast %675 : vector<1x1x32xf32> to vector<1x32xf32>
    %c0_i32_368 = arith.constant 0 : i32
    %677 = arith.cmpi ne, %673, %c0_i32_368 : i32
    %678 = arith.maximumf %670, %676 : vector<1x32xf32>
    %679 = arith.select %677, %678, %670 : vector<1x32xf32>
    %c2_i32_369 = arith.constant 2 : i32
    %680 = arith.addi %0, %c2_i32_369 : i32
    %681 = arith.index_cast %680 : i32 to index
    %c1_370 = arith.constant 1 : index
    %682 = memref.load %arg3[%681, %c1_370] : memref<16x4xi32, #tpu.memory_space<smem>>
    %c2_371 = arith.constant 2 : index
    %683 = arith.index_cast %682 : i32 to index
    %c0_372 = arith.constant 0 : index
    %684 = vector.load %arg4[%c2_371, %683, %c0_372] : memref<8x16x32xf32, #tpu.memory_space<vmem>>, vector<1x1x32xf32>
    %685 = vector.shape_cast %684 : vector<1x1x32xf32> to vector<1x32xf32>
    %c0_i32_373 = arith.constant 0 : i32
    %686 = arith.cmpi ne, %682, %c0_i32_373 : i32
    %687 = arith.maximumf %679, %685 : vector<1x32xf32>
    %688 = arith.select %686, %687, %679 : vector<1x32xf32>
    %c2_i32_374 = arith.constant 2 : i32
    %689 = arith.addi %0, %c2_i32_374 : i32
    %690 = arith.index_cast %689 : i32 to index
    %c2_375 = arith.constant 2 : index
    %691 = memref.load %arg3[%690, %c2_375] : memref<16x4xi32, #tpu.memory_space<smem>>
    %c2_376 = arith.constant 2 : index
    %692 = arith.index_cast %691 : i32 to index
    %c0_377 = arith.constant 0 : index
    %693 = vector.load %arg4[%c2_376, %692, %c0_377] : memref<8x16x32xf32, #tpu.memory_space<vmem>>, vector<1x1x32xf32>
    %694 = vector.shape_cast %693 : vector<1x1x32xf32> to vector<1x32xf32>
    %c0_i32_378 = arith.constant 0 : i32
    %695 = arith.cmpi ne, %691, %c0_i32_378 : i32
    %696 = arith.maximumf %688, %694 : vector<1x32xf32>
    %697 = arith.select %695, %696, %688 : vector<1x32xf32>
    %c2_i32_379 = arith.constant 2 : i32
    %698 = arith.addi %0, %c2_i32_379 : i32
    %699 = arith.index_cast %698 : i32 to index
    %c3_380 = arith.constant 3 : index
    %700 = memref.load %arg3[%699, %c3_380] : memref<16x4xi32, #tpu.memory_space<smem>>
    %c2_381 = arith.constant 2 : index
    %701 = arith.index_cast %700 : i32 to index
    %c0_382 = arith.constant 0 : index
    %702 = vector.load %arg4[%c2_381, %701, %c0_382] : memref<8x16x32xf32, #tpu.memory_space<vmem>>, vector<1x1x32xf32>
    %703 = vector.shape_cast %702 : vector<1x1x32xf32> to vector<1x32xf32>
    %c0_i32_383 = arith.constant 0 : i32
    %704 = arith.cmpi ne, %700, %c0_i32_383 : i32
    %705 = arith.maximumf %697, %703 : vector<1x32xf32>
    %706 = arith.select %704, %705, %697 : vector<1x32xf32>
    %cst_384 = arith.constant 0xFF800000 : f32
    %707 = vector.broadcast %cst_384 : f32 to vector<1x32xf32>
    %c3_i32_385 = arith.constant 3 : i32
    %708 = arith.addi %0, %c3_i32_385 : i32
    %709 = arith.index_cast %708 : i32 to index
    %c0_386 = arith.constant 0 : index
    %710 = memref.load %arg3[%709, %c0_386] : memref<16x4xi32, #tpu.memory_space<smem>>
    %c3_387 = arith.constant 3 : index
    %711 = arith.index_cast %710 : i32 to index
    %c0_388 = arith.constant 0 : index
    %712 = vector.load %arg4[%c3_387, %711, %c0_388] : memref<8x16x32xf32, #tpu.memory_space<vmem>>, vector<1x1x32xf32>
    %713 = vector.shape_cast %712 : vector<1x1x32xf32> to vector<1x32xf32>
    %c0_i32_389 = arith.constant 0 : i32
    %714 = arith.cmpi ne, %710, %c0_i32_389 : i32
    %715 = arith.maximumf %707, %713 : vector<1x32xf32>
    %716 = arith.select %714, %715, %707 : vector<1x32xf32>
    %c3_i32_390 = arith.constant 3 : i32
    %717 = arith.addi %0, %c3_i32_390 : i32
    %718 = arith.index_cast %717 : i32 to index
    %c1_391 = arith.constant 1 : index
    %719 = memref.load %arg3[%718, %c1_391] : memref<16x4xi32, #tpu.memory_space<smem>>
    %c3_392 = arith.constant 3 : index
    %720 = arith.index_cast %719 : i32 to index
    %c0_393 = arith.constant 0 : index
    %721 = vector.load %arg4[%c3_392, %720, %c0_393] : memref<8x16x32xf32, #tpu.memory_space<vmem>>, vector<1x1x32xf32>
    %722 = vector.shape_cast %721 : vector<1x1x32xf32> to vector<1x32xf32>
    %c0_i32_394 = arith.constant 0 : i32
    %723 = arith.cmpi ne, %719, %c0_i32_394 : i32
    %724 = arith.maximumf %716, %722 : vector<1x32xf32>
    %725 = arith.select %723, %724, %716 : vector<1x32xf32>
    %c3_i32_395 = arith.constant 3 : i32
    %726 = arith.addi %0, %c3_i32_395 : i32
    %727 = arith.index_cast %726 : i32 to index
    %c2_396 = arith.constant 2 : index
    %728 = memref.load %arg3[%727, %c2_396] : memref<16x4xi32, #tpu.memory_space<smem>>
    %c3_397 = arith.constant 3 : index
    %729 = arith.index_cast %728 : i32 to index
    %c0_398 = arith.constant 0 : index
    %730 = vector.load %arg4[%c3_397, %729, %c0_398] : memref<8x16x32xf32, #tpu.memory_space<vmem>>, vector<1x1x32xf32>
    %731 = vector.shape_cast %730 : vector<1x1x32xf32> to vector<1x32xf32>
    %c0_i32_399 = arith.constant 0 : i32
    %732 = arith.cmpi ne, %728, %c0_i32_399 : i32
    %733 = arith.maximumf %725, %731 : vector<1x32xf32>
    %734 = arith.select %732, %733, %725 : vector<1x32xf32>
    %c3_i32_400 = arith.constant 3 : i32
    %735 = arith.addi %0, %c3_i32_400 : i32
    %736 = arith.index_cast %735 : i32 to index
    %c3_401 = arith.constant 3 : index
    %737 = memref.load %arg3[%736, %c3_401] : memref<16x4xi32, #tpu.memory_space<smem>>
    %c3_402 = arith.constant 3 : index
    %738 = arith.index_cast %737 : i32 to index
    %c0_403 = arith.constant 0 : index
    %739 = vector.load %arg4[%c3_402, %738, %c0_403] : memref<8x16x32xf32, #tpu.memory_space<vmem>>, vector<1x1x32xf32>
    %740 = vector.shape_cast %739 : vector<1x1x32xf32> to vector<1x32xf32>
    %c0_i32_404 = arith.constant 0 : i32
    %741 = arith.cmpi ne, %737, %c0_i32_404 : i32
    %742 = arith.maximumf %734, %740 : vector<1x32xf32>
    %743 = arith.select %741, %742, %734 : vector<1x32xf32>
    %cst_405 = arith.constant 0xFF800000 : f32
    %744 = vector.broadcast %cst_405 : f32 to vector<1x32xf32>
    %c4_i32_406 = arith.constant 4 : i32
    %745 = arith.addi %0, %c4_i32_406 : i32
    %746 = arith.index_cast %745 : i32 to index
    %c0_407 = arith.constant 0 : index
    %747 = memref.load %arg3[%746, %c0_407] : memref<16x4xi32, #tpu.memory_space<smem>>
    %c4_408 = arith.constant 4 : index
    %748 = arith.index_cast %747 : i32 to index
    %c0_409 = arith.constant 0 : index
    %749 = vector.load %arg4[%c4_408, %748, %c0_409] : memref<8x16x32xf32, #tpu.memory_space<vmem>>, vector<1x1x32xf32>
    %750 = vector.shape_cast %749 : vector<1x1x32xf32> to vector<1x32xf32>
    %c0_i32_410 = arith.constant 0 : i32
    %751 = arith.cmpi ne, %747, %c0_i32_410 : i32
    %752 = arith.maximumf %744, %750 : vector<1x32xf32>
    %753 = arith.select %751, %752, %744 : vector<1x32xf32>
    %c4_i32_411 = arith.constant 4 : i32
    %754 = arith.addi %0, %c4_i32_411 : i32
    %755 = arith.index_cast %754 : i32 to index
    %c1_412 = arith.constant 1 : index
    %756 = memref.load %arg3[%755, %c1_412] : memref<16x4xi32, #tpu.memory_space<smem>>
    %c4_413 = arith.constant 4 : index
    %757 = arith.index_cast %756 : i32 to index
    %c0_414 = arith.constant 0 : index
    %758 = vector.load %arg4[%c4_413, %757, %c0_414] : memref<8x16x32xf32, #tpu.memory_space<vmem>>, vector<1x1x32xf32>
    %759 = vector.shape_cast %758 : vector<1x1x32xf32> to vector<1x32xf32>
    %c0_i32_415 = arith.constant 0 : i32
    %760 = arith.cmpi ne, %756, %c0_i32_415 : i32
    %761 = arith.maximumf %753, %759 : vector<1x32xf32>
    %762 = arith.select %760, %761, %753 : vector<1x32xf32>
    %c4_i32_416 = arith.constant 4 : i32
    %763 = arith.addi %0, %c4_i32_416 : i32
    %764 = arith.index_cast %763 : i32 to index
    %c2_417 = arith.constant 2 : index
    %765 = memref.load %arg3[%764, %c2_417] : memref<16x4xi32, #tpu.memory_space<smem>>
    %c4_418 = arith.constant 4 : index
    %766 = arith.index_cast %765 : i32 to index
    %c0_419 = arith.constant 0 : index
    %767 = vector.load %arg4[%c4_418, %766, %c0_419] : memref<8x16x32xf32, #tpu.memory_space<vmem>>, vector<1x1x32xf32>
    %768 = vector.shape_cast %767 : vector<1x1x32xf32> to vector<1x32xf32>
    %c0_i32_420 = arith.constant 0 : i32
    %769 = arith.cmpi ne, %765, %c0_i32_420 : i32
    %770 = arith.maximumf %762, %768 : vector<1x32xf32>
    %771 = arith.select %769, %770, %762 : vector<1x32xf32>
    %c4_i32_421 = arith.constant 4 : i32
    %772 = arith.addi %0, %c4_i32_421 : i32
    %773 = arith.index_cast %772 : i32 to index
    %c3_422 = arith.constant 3 : index
    %774 = memref.load %arg3[%773, %c3_422] : memref<16x4xi32, #tpu.memory_space<smem>>
    %c4_423 = arith.constant 4 : index
    %775 = arith.index_cast %774 : i32 to index
    %c0_424 = arith.constant 0 : index
    %776 = vector.load %arg4[%c4_423, %775, %c0_424] : memref<8x16x32xf32, #tpu.memory_space<vmem>>, vector<1x1x32xf32>
    %777 = vector.shape_cast %776 : vector<1x1x32xf32> to vector<1x32xf32>
    %c0_i32_425 = arith.constant 0 : i32
    %778 = arith.cmpi ne, %774, %c0_i32_425 : i32
    %779 = arith.maximumf %771, %777 : vector<1x32xf32>
    %780 = arith.select %778, %779, %771 : vector<1x32xf32>
    %cst_426 = arith.constant 0xFF800000 : f32
    %781 = vector.broadcast %cst_426 : f32 to vector<1x32xf32>
    %c5_i32_427 = arith.constant 5 : i32
    %782 = arith.addi %0, %c5_i32_427 : i32
    %783 = arith.index_cast %782 : i32 to index
    %c0_428 = arith.constant 0 : index
    %784 = memref.load %arg3[%783, %c0_428] : memref<16x4xi32, #tpu.memory_space<smem>>
    %c5_429 = arith.constant 5 : index
    %785 = arith.index_cast %784 : i32 to index
    %c0_430 = arith.constant 0 : index
    %786 = vector.load %arg4[%c5_429, %785, %c0_430] : memref<8x16x32xf32, #tpu.memory_space<vmem>>, vector<1x1x32xf32>
    %787 = vector.shape_cast %786 : vector<1x1x32xf32> to vector<1x32xf32>
    %c0_i32_431 = arith.constant 0 : i32
    %788 = arith.cmpi ne, %784, %c0_i32_431 : i32
    %789 = arith.maximumf %781, %787 : vector<1x32xf32>
    %790 = arith.select %788, %789, %781 : vector<1x32xf32>
    %c5_i32_432 = arith.constant 5 : i32
    %791 = arith.addi %0, %c5_i32_432 : i32
    %792 = arith.index_cast %791 : i32 to index
    %c1_433 = arith.constant 1 : index
    %793 = memref.load %arg3[%792, %c1_433] : memref<16x4xi32, #tpu.memory_space<smem>>
    %c5_434 = arith.constant 5 : index
    %794 = arith.index_cast %793 : i32 to index
    %c0_435 = arith.constant 0 : index
    %795 = vector.load %arg4[%c5_434, %794, %c0_435] : memref<8x16x32xf32, #tpu.memory_space<vmem>>, vector<1x1x32xf32>
    %796 = vector.shape_cast %795 : vector<1x1x32xf32> to vector<1x32xf32>
    %c0_i32_436 = arith.constant 0 : i32
    %797 = arith.cmpi ne, %793, %c0_i32_436 : i32
    %798 = arith.maximumf %790, %796 : vector<1x32xf32>
    %799 = arith.select %797, %798, %790 : vector<1x32xf32>
    %c5_i32_437 = arith.constant 5 : i32
    %800 = arith.addi %0, %c5_i32_437 : i32
    %801 = arith.index_cast %800 : i32 to index
    %c2_438 = arith.constant 2 : index
    %802 = memref.load %arg3[%801, %c2_438] : memref<16x4xi32, #tpu.memory_space<smem>>
    %c5_439 = arith.constant 5 : index
    %803 = arith.index_cast %802 : i32 to index
    %c0_440 = arith.constant 0 : index
    %804 = vector.load %arg4[%c5_439, %803, %c0_440] : memref<8x16x32xf32, #tpu.memory_space<vmem>>, vector<1x1x32xf32>
    %805 = vector.shape_cast %804 : vector<1x1x32xf32> to vector<1x32xf32>
    %c0_i32_441 = arith.constant 0 : i32
    %806 = arith.cmpi ne, %802, %c0_i32_441 : i32
    %807 = arith.maximumf %799, %805 : vector<1x32xf32>
    %808 = arith.select %806, %807, %799 : vector<1x32xf32>
    %c5_i32_442 = arith.constant 5 : i32
    %809 = arith.addi %0, %c5_i32_442 : i32
    %810 = arith.index_cast %809 : i32 to index
    %c3_443 = arith.constant 3 : index
    %811 = memref.load %arg3[%810, %c3_443] : memref<16x4xi32, #tpu.memory_space<smem>>
    %c5_444 = arith.constant 5 : index
    %812 = arith.index_cast %811 : i32 to index
    %c0_445 = arith.constant 0 : index
    %813 = vector.load %arg4[%c5_444, %812, %c0_445] : memref<8x16x32xf32, #tpu.memory_space<vmem>>, vector<1x1x32xf32>
    %814 = vector.shape_cast %813 : vector<1x1x32xf32> to vector<1x32xf32>
    %c0_i32_446 = arith.constant 0 : i32
    %815 = arith.cmpi ne, %811, %c0_i32_446 : i32
    %816 = arith.maximumf %808, %814 : vector<1x32xf32>
    %817 = arith.select %815, %816, %808 : vector<1x32xf32>
    %cst_447 = arith.constant 0xFF800000 : f32
    %818 = vector.broadcast %cst_447 : f32 to vector<1x32xf32>
    %c6_i32_448 = arith.constant 6 : i32
    %819 = arith.addi %0, %c6_i32_448 : i32
    %820 = arith.index_cast %819 : i32 to index
    %c0_449 = arith.constant 0 : index
    %821 = memref.load %arg3[%820, %c0_449] : memref<16x4xi32, #tpu.memory_space<smem>>
    %c6_450 = arith.constant 6 : index
    %822 = arith.index_cast %821 : i32 to index
    %c0_451 = arith.constant 0 : index
    %823 = vector.load %arg4[%c6_450, %822, %c0_451] : memref<8x16x32xf32, #tpu.memory_space<vmem>>, vector<1x1x32xf32>
    %824 = vector.shape_cast %823 : vector<1x1x32xf32> to vector<1x32xf32>
    %c0_i32_452 = arith.constant 0 : i32
    %825 = arith.cmpi ne, %821, %c0_i32_452 : i32
    %826 = arith.maximumf %818, %824 : vector<1x32xf32>
    %827 = arith.select %825, %826, %818 : vector<1x32xf32>
    %c6_i32_453 = arith.constant 6 : i32
    %828 = arith.addi %0, %c6_i32_453 : i32
    %829 = arith.index_cast %828 : i32 to index
    %c1_454 = arith.constant 1 : index
    %830 = memref.load %arg3[%829, %c1_454] : memref<16x4xi32, #tpu.memory_space<smem>>
    %c6_455 = arith.constant 6 : index
    %831 = arith.index_cast %830 : i32 to index
    %c0_456 = arith.constant 0 : index
    %832 = vector.load %arg4[%c6_455, %831, %c0_456] : memref<8x16x32xf32, #tpu.memory_space<vmem>>, vector<1x1x32xf32>
    %833 = vector.shape_cast %832 : vector<1x1x32xf32> to vector<1x32xf32>
    %c0_i32_457 = arith.constant 0 : i32
    %834 = arith.cmpi ne, %830, %c0_i32_457 : i32
    %835 = arith.maximumf %827, %833 : vector<1x32xf32>
    %836 = arith.select %834, %835, %827 : vector<1x32xf32>
    %c6_i32_458 = arith.constant 6 : i32
    %837 = arith.addi %0, %c6_i32_458 : i32
    %838 = arith.index_cast %837 : i32 to index
    %c2_459 = arith.constant 2 : index
    %839 = memref.load %arg3[%838, %c2_459] : memref<16x4xi32, #tpu.memory_space<smem>>
    %c6_460 = arith.constant 6 : index
    %840 = arith.index_cast %839 : i32 to index
    %c0_461 = arith.constant 0 : index
    %841 = vector.load %arg4[%c6_460, %840, %c0_461] : memref<8x16x32xf32, #tpu.memory_space<vmem>>, vector<1x1x32xf32>
    %842 = vector.shape_cast %841 : vector<1x1x32xf32> to vector<1x32xf32>
    %c0_i32_462 = arith.constant 0 : i32
    %843 = arith.cmpi ne, %839, %c0_i32_462 : i32
    %844 = arith.maximumf %836, %842 : vector<1x32xf32>
    %845 = arith.select %843, %844, %836 : vector<1x32xf32>
    %c6_i32_463 = arith.constant 6 : i32
    %846 = arith.addi %0, %c6_i32_463 : i32
    %847 = arith.index_cast %846 : i32 to index
    %c3_464 = arith.constant 3 : index
    %848 = memref.load %arg3[%847, %c3_464] : memref<16x4xi32, #tpu.memory_space<smem>>
    %c6_465 = arith.constant 6 : index
    %849 = arith.index_cast %848 : i32 to index
    %c0_466 = arith.constant 0 : index
    %850 = vector.load %arg4[%c6_465, %849, %c0_466] : memref<8x16x32xf32, #tpu.memory_space<vmem>>, vector<1x1x32xf32>
    %851 = vector.shape_cast %850 : vector<1x1x32xf32> to vector<1x32xf32>
    %c0_i32_467 = arith.constant 0 : i32
    %852 = arith.cmpi ne, %848, %c0_i32_467 : i32
    %853 = arith.maximumf %845, %851 : vector<1x32xf32>
    %854 = arith.select %852, %853, %845 : vector<1x32xf32>
    %cst_468 = arith.constant 0xFF800000 : f32
    %855 = vector.broadcast %cst_468 : f32 to vector<1x32xf32>
    %c7_i32_469 = arith.constant 7 : i32
    %856 = arith.addi %0, %c7_i32_469 : i32
    %857 = arith.index_cast %856 : i32 to index
    %c0_470 = arith.constant 0 : index
    %858 = memref.load %arg3[%857, %c0_470] : memref<16x4xi32, #tpu.memory_space<smem>>
    %c7_471 = arith.constant 7 : index
    %859 = arith.index_cast %858 : i32 to index
    %c0_472 = arith.constant 0 : index
    %860 = vector.load %arg4[%c7_471, %859, %c0_472] : memref<8x16x32xf32, #tpu.memory_space<vmem>>, vector<1x1x32xf32>
    %861 = vector.shape_cast %860 : vector<1x1x32xf32> to vector<1x32xf32>
    %c0_i32_473 = arith.constant 0 : i32
    %862 = arith.cmpi ne, %858, %c0_i32_473 : i32
    %863 = arith.maximumf %855, %861 : vector<1x32xf32>
    %864 = arith.select %862, %863, %855 : vector<1x32xf32>
    %c7_i32_474 = arith.constant 7 : i32
    %865 = arith.addi %0, %c7_i32_474 : i32
    %866 = arith.index_cast %865 : i32 to index
    %c1_475 = arith.constant 1 : index
    %867 = memref.load %arg3[%866, %c1_475] : memref<16x4xi32, #tpu.memory_space<smem>>
    %c7_476 = arith.constant 7 : index
    %868 = arith.index_cast %867 : i32 to index
    %c0_477 = arith.constant 0 : index
    %869 = vector.load %arg4[%c7_476, %868, %c0_477] : memref<8x16x32xf32, #tpu.memory_space<vmem>>, vector<1x1x32xf32>
    %870 = vector.shape_cast %869 : vector<1x1x32xf32> to vector<1x32xf32>
    %c0_i32_478 = arith.constant 0 : i32
    %871 = arith.cmpi ne, %867, %c0_i32_478 : i32
    %872 = arith.maximumf %864, %870 : vector<1x32xf32>
    %873 = arith.select %871, %872, %864 : vector<1x32xf32>
    %c7_i32_479 = arith.constant 7 : i32
    %874 = arith.addi %0, %c7_i32_479 : i32
    %875 = arith.index_cast %874 : i32 to index
    %c2_480 = arith.constant 2 : index
    %876 = memref.load %arg3[%875, %c2_480] : memref<16x4xi32, #tpu.memory_space<smem>>
    %c7_481 = arith.constant 7 : index
    %877 = arith.index_cast %876 : i32 to index
    %c0_482 = arith.constant 0 : index
    %878 = vector.load %arg4[%c7_481, %877, %c0_482] : memref<8x16x32xf32, #tpu.memory_space<vmem>>, vector<1x1x32xf32>
    %879 = vector.shape_cast %878 : vector<1x1x32xf32> to vector<1x32xf32>
    %c0_i32_483 = arith.constant 0 : i32
    %880 = arith.cmpi ne, %876, %c0_i32_483 : i32
    %881 = arith.maximumf %873, %879 : vector<1x32xf32>
    %882 = arith.select %880, %881, %873 : vector<1x32xf32>
    %c7_i32_484 = arith.constant 7 : i32
    %883 = arith.addi %0, %c7_i32_484 : i32
    %884 = arith.index_cast %883 : i32 to index
    %c3_485 = arith.constant 3 : index
    %885 = memref.load %arg3[%884, %c3_485] : memref<16x4xi32, #tpu.memory_space<smem>>
    %c7_486 = arith.constant 7 : index
    %886 = arith.index_cast %885 : i32 to index
    %c0_487 = arith.constant 0 : index
    %887 = vector.load %arg4[%c7_486, %886, %c0_487] : memref<8x16x32xf32, #tpu.memory_space<vmem>>, vector<1x1x32xf32>
    %888 = vector.shape_cast %887 : vector<1x1x32xf32> to vector<1x32xf32>
    %c0_i32_488 = arith.constant 0 : i32
    %889 = arith.cmpi ne, %885, %c0_i32_488 : i32
    %890 = arith.maximumf %882, %888 : vector<1x32xf32>
    %891 = arith.select %889, %890, %882 : vector<1x32xf32>
    %892 = tpu.concatenate %632, %669, %706, %743, %780, %817, %854, %891 in 0 : vector<1x32xf32>, vector<1x32xf32>, vector<1x32xf32>, vector<1x32xf32>, vector<1x32xf32>, vector<1x32xf32>, vector<1x32xf32>, vector<1x32xf32> -> vector<8x32xf32>
    %c0_489 = arith.constant 0 : index
    %c0_490 = arith.constant 0 : index
    %c0_491 = arith.constant 0 : index
    %893 = vector.load %arg5[%c0_489, %c0_490, %c0_491] : memref<4x32x128xf32, #tpu.memory_space<vmem>>, vector<1x32x128xf32>
    %894 = vector.shape_cast %893 : vector<1x32x128xf32> to vector<32x128xf32>
    %cst_492 = arith.constant dense<0.000000e+00> : vector<8x128xf32>
    %895 = tpu.matmul %298, %894, %cst_492 {dimension_numbers = #tpu.dot_dimension_numbers<[1], [0], [0], [1], [0, 0, 1, 1], [], []>} : vector<8x32xf32>, vector<32x128xf32>, vector<8x128xf32> -> vector<8x128xf32>
    %896 = vector.extract_strided_slice %1 {offsets = [0, 0], sizes = [1, 128], strides = [1, 1]} : vector<8x128xf32> to vector<1x128xf32>
    %897 = vector.broadcast %896 : vector<1x128xf32> to vector<8x128xf32>
    %898 = arith.addf %895, %897 : vector<8x128xf32>
    %c1_493 = arith.constant 1 : index
    %c0_494 = arith.constant 0 : index
    %c0_495 = arith.constant 0 : index
    %899 = vector.load %arg5[%c1_493, %c0_494, %c0_495] : memref<4x32x128xf32, #tpu.memory_space<vmem>>, vector<1x32x128xf32>
    %900 = vector.shape_cast %899 : vector<1x32x128xf32> to vector<32x128xf32>
    %cst_496 = arith.constant dense<0.000000e+00> : vector<8x128xf32>
    %901 = tpu.matmul %595, %900, %cst_496 {dimension_numbers = #tpu.dot_dimension_numbers<[1], [0], [0], [1], [0, 0, 1, 1], [], []>} : vector<8x32xf32>, vector<32x128xf32>, vector<8x128xf32> -> vector<8x128xf32>
    %902 = vector.extract_strided_slice %1 {offsets = [1, 0], sizes = [1, 128], strides = [1, 1]} : vector<8x128xf32> to vector<1x128xf32>
    %903 = vector.broadcast %902 : vector<1x128xf32> to vector<8x128xf32>
    %904 = arith.addf %901, %903 : vector<8x128xf32>
    %c2_497 = arith.constant 2 : index
    %c0_498 = arith.constant 0 : index
    %c0_499 = arith.constant 0 : index
    %905 = vector.load %arg5[%c2_497, %c0_498, %c0_499] : memref<4x32x128xf32, #tpu.memory_space<vmem>>, vector<1x32x128xf32>
    %906 = vector.shape_cast %905 : vector<1x32x128xf32> to vector<32x128xf32>
    %cst_500 = arith.constant dense<0.000000e+00> : vector<8x128xf32>
    %907 = tpu.matmul %595, %906, %cst_500 {dimension_numbers = #tpu.dot_dimension_numbers<[1], [0], [0], [1], [0, 0, 1, 1], [], []>} : vector<8x32xf32>, vector<32x128xf32>, vector<8x128xf32> -> vector<8x128xf32>
    %908 = vector.extract_strided_slice %1 {offsets = [2, 0], sizes = [1, 128], strides = [1, 1]} : vector<8x128xf32> to vector<1x128xf32>
    %909 = vector.broadcast %908 : vector<1x128xf32> to vector<8x128xf32>
    %910 = arith.addf %907, %909 : vector<8x128xf32>
    %c3_501 = arith.constant 3 : index
    %c0_502 = arith.constant 0 : index
    %c0_503 = arith.constant 0 : index
    %911 = vector.load %arg5[%c3_501, %c0_502, %c0_503] : memref<4x32x128xf32, #tpu.memory_space<vmem>>, vector<1x32x128xf32>
    %912 = vector.shape_cast %911 : vector<1x32x128xf32> to vector<32x128xf32>
    %cst_504 = arith.constant dense<0.000000e+00> : vector<8x128xf32>
    %913 = tpu.matmul %892, %912, %cst_504 {dimension_numbers = #tpu.dot_dimension_numbers<[1], [0], [0], [1], [0, 0, 1, 1], [], []>} : vector<8x32xf32>, vector<32x128xf32>, vector<8x128xf32> -> vector<8x128xf32>
    %914 = vector.extract_strided_slice %1 {offsets = [3, 0], sizes = [1, 128], strides = [1, 1]} : vector<8x128xf32> to vector<1x128xf32>
    %915 = vector.broadcast %914 : vector<1x128xf32> to vector<8x128xf32>
    %916 = arith.addf %913, %915 : vector<8x128xf32>
    %917 = arith.mulf %898, %910 : vector<8x128xf32>
    %c0_505 = arith.constant 0 : index
    %c0_506 = arith.constant 0 : index
    %c0_507 = arith.constant 0 : index
    %918 = vector.load %arg6[%c0_505, %c0_506, %c0_507] : memref<3x128x128xf32, #tpu.memory_space<vmem>>, vector<1x128x128xf32>
    %919 = vector.shape_cast %918 : vector<1x128x128xf32> to vector<128x128xf32>
    %cst_508 = arith.constant dense<0.000000e+00> : vector<8x128xf32>
    %920 = tpu.matmul %917, %919, %cst_508 {dimension_numbers = #tpu.dot_dimension_numbers<[1], [0], [0], [1], [0, 0, 1, 1], [], []>} : vector<8x128xf32>, vector<128x128xf32>, vector<8x128xf32> -> vector<8x128xf32>
    %921 = vector.extract_strided_slice %1 {offsets = [4, 0], sizes = [1, 128], strides = [1, 1]} : vector<8x128xf32> to vector<1x128xf32>
    %922 = vector.broadcast %921 : vector<1x128xf32> to vector<8x128xf32>
    %923 = arith.addf %920, %922 : vector<8x128xf32>
    %924 = math.tanh %923 : vector<8x128xf32>
    %925 = arith.mulf %898, %916 : vector<8x128xf32>
    %c1_509 = arith.constant 1 : index
    %c0_510 = arith.constant 0 : index
    %c0_511 = arith.constant 0 : index
    %926 = vector.load %arg6[%c1_509, %c0_510, %c0_511] : memref<3x128x128xf32, #tpu.memory_space<vmem>>, vector<1x128x128xf32>
    %927 = vector.shape_cast %926 : vector<1x128x128xf32> to vector<128x128xf32>
    %cst_512 = arith.constant dense<0.000000e+00> : vector<8x128xf32>
    %928 = tpu.matmul %925, %927, %cst_512 {dimension_numbers = #tpu.dot_dimension_numbers<[1], [0], [0], [1], [0, 0, 1, 1], [], []>} : vector<8x128xf32>, vector<128x128xf32>, vector<8x128xf32> -> vector<8x128xf32>
    %929 = vector.extract_strided_slice %1 {offsets = [5, 0], sizes = [1, 128], strides = [1, 1]} : vector<8x128xf32> to vector<1x128xf32>
    %930 = vector.broadcast %929 : vector<1x128xf32> to vector<8x128xf32>
    %931 = arith.addf %928, %930 : vector<8x128xf32>
    %932 = math.tanh %931 : vector<8x128xf32>
    %933 = arith.mulf %904, %916 : vector<8x128xf32>
    %c2_513 = arith.constant 2 : index
    %c0_514 = arith.constant 0 : index
    %c0_515 = arith.constant 0 : index
    %934 = vector.load %arg6[%c2_513, %c0_514, %c0_515] : memref<3x128x128xf32, #tpu.memory_space<vmem>>, vector<1x128x128xf32>
    %935 = vector.shape_cast %934 : vector<1x128x128xf32> to vector<128x128xf32>
    %cst_516 = arith.constant dense<0.000000e+00> : vector<8x128xf32>
    %936 = tpu.matmul %933, %935, %cst_516 {dimension_numbers = #tpu.dot_dimension_numbers<[1], [0], [0], [1], [0, 0, 1, 1], [], []>} : vector<8x128xf32>, vector<128x128xf32>, vector<8x128xf32> -> vector<8x128xf32>
    %937 = vector.extract_strided_slice %1 {offsets = [6, 0], sizes = [1, 128], strides = [1, 1]} : vector<8x128xf32> to vector<1x128xf32>
    %938 = vector.broadcast %937 : vector<1x128xf32> to vector<8x128xf32>
    %939 = arith.addf %936, %938 : vector<8x128xf32>
    %940 = math.tanh %939 : vector<8x128xf32>
    %941 = tpu.concatenate %924, %932, %940 in 1 : vector<8x128xf32>, vector<8x128xf32>, vector<8x128xf32> -> vector<8x384xf32>
    %c0_517 = arith.constant 0 : index
    %c0_518 = arith.constant 0 : index
    %942 = vector.load %arg7[%c0_517, %c0_518] : memref<384x128xf32, #tpu.memory_space<vmem>>, vector<384x128xf32>
    %cst_519 = arith.constant dense<0.000000e+00> : vector<8x128xf32>
    %943 = tpu.matmul %941, %942, %cst_519 {dimension_numbers = #tpu.dot_dimension_numbers<[1], [0], [0], [1], [0, 0, 1, 1], [], []>} : vector<8x384xf32>, vector<384x128xf32>, vector<8x128xf32> -> vector<8x128xf32>
    %944 = vector.extract_strided_slice %1 {offsets = [7, 0], sizes = [1, 128], strides = [1, 1]} : vector<8x128xf32> to vector<1x128xf32>
    %945 = vector.broadcast %944 : vector<1x128xf32> to vector<8x128xf32>
    %946 = arith.addf %943, %945 : vector<8x128xf32>
    %c0_520 = arith.constant 0 : index
    %c0_521 = arith.constant 0 : index
    %947 = vector.load %arg9[%c0_520, %c0_521] : memref<8x128xf32, #tpu.memory_space<vmem>>, vector<8x128xf32>
    tpu.vector_store %arg9[%c0_520, %c0_521], %946 {strides = array<i32>} : memref<8x128xf32, #tpu.memory_space<vmem>>, vector<8x128xf32>,
    return
  }
  func.func @transform_0(%arg0: i32, %arg1: memref<16x4xi32, #tpu.memory_space<smem>>, %arg2: memref<16x4xi32, #tpu.memory_space<smem>>, %arg3: memref<16x4xi32, #tpu.memory_space<smem>>) -> (i32, i32, i32) {
    %c0_i32 = arith.constant 0 : i32
    %c0_i32_0 = arith.constant 0 : i32
    %c0_i32_1 = arith.constant 0 : i32
    return %arg0, %c0_i32, %c0_i32_0 : i32, i32, i32
  }
  func.func @transform_1(%arg0: i32, %arg1: memref<16x4xi32, #tpu.memory_space<smem>>, %arg2: memref<16x4xi32, #tpu.memory_space<smem>>, %arg3: memref<16x4xi32, #tpu.memory_space<smem>>) -> (i32, i32, i32) {
    %c0_i32 = arith.constant 0 : i32
    %c0_i32_0 = arith.constant 0 : i32
    %c0_i32_1 = arith.constant 0 : i32
    %c0_i32_2 = arith.constant 0 : i32
    return %c0_i32, %c0_i32_0, %c0_i32_1 : i32, i32, i32
  }
  func.func @transform_2(%arg0: i32, %arg1: memref<16x4xi32, #tpu.memory_space<smem>>, %arg2: memref<16x4xi32, #tpu.memory_space<smem>>, %arg3: memref<16x4xi32, #tpu.memory_space<smem>>) -> (i32, i32, i32) {
    %c0_i32 = arith.constant 0 : i32
    %c0_i32_0 = arith.constant 0 : i32
    %c0_i32_1 = arith.constant 0 : i32
    %c0_i32_2 = arith.constant 0 : i32
    return %c0_i32, %c0_i32_0, %c0_i32_1 : i32, i32, i32
  }
  func.func @transform_3(%arg0: i32, %arg1: memref<16x4xi32, #tpu.memory_space<smem>>, %arg2: memref<16x4xi32, #tpu.memory_space<smem>>, %arg3: memref<16x4xi32, #tpu.memory_space<smem>>) -> (i32, i32) {
    %c0_i32 = arith.constant 0 : i32
    %c0_i32_0 = arith.constant 0 : i32
    %c0_i32_1 = arith.constant 0 : i32
    return %c0_i32, %c0_i32_0 : i32, i32
  }
  func.func @transform_4(%arg0: i32, %arg1: memref<16x4xi32, #tpu.memory_space<smem>>, %arg2: memref<16x4xi32, #tpu.memory_space<smem>>, %arg3: memref<16x4xi32, #tpu.memory_space<smem>>) -> (i32, i32) {
    %c0_i32 = arith.constant 0 : i32
    %c0_i32_0 = arith.constant 0 : i32
    %c0_i32_1 = arith.constant 0 : i32
    return %c0_i32, %c0_i32_0 : i32, i32
  }
  func.func @transform_5(%arg0: i32, %arg1: memref<16x4xi32, #tpu.memory_space<smem>>, %arg2: memref<16x4xi32, #tpu.memory_space<smem>>, %arg3: memref<16x4xi32, #tpu.memory_space<smem>>) -> (i32, i32) {
    %c0_i32 = arith.constant 0 : i32
    %c0_i32_0 = arith.constant 0 : i32
    return %arg0, %c0_i32 : i32, i32
  }
}

</mosaic_0001>

<llo_original>
// kernel: spert_pallas.1
$region0: #{spert_pallas.1}
  #allocation0 [shape = 'u32[]', space=smem, size = 0x4, offset = 0x4, fixed_abs, tag = 'smem constant byte address 0x4 - core index']
  #allocation1 [shape = 'u32[144,128]{1,0:T(1,128)}', space=vmem, size = 0x12000, scoped, tag = 'internal scratch']
  #allocation2 [shape = 's32[1]{0}', space=sflag, size = 0x4, scoped, tag = 'scoped memory for spert_pallas.1']
  #allocation3 [shape = 'u8[8192]{0}', space=smem, size = 0x2000, scoped, tag = 'prefetched SMEM operand 0']
  #allocation4 [shape = 'u8[8192]{0}', space=smem, size = 0x2000, scoped, tag = 'prefetched SMEM operand 1']
  #allocation5 [shape = 'u8[8192]{0}', space=smem, size = 0x2000, scoped, tag = 'prefetched SMEM operand 2']
  %s0 = inlined_call_operand.vmem [shape: s32[16,4], index: 0, kind: input, shape index: {}]
  %s1 = inlined_call_operand.vmem [shape: s32[16,4], index: 1, kind: input, shape index: {}]
  %s2 = inlined_call_operand.vmem [shape: s32[16,4], index: 2, kind: input, shape index: {}]
  %s3 = inlined_call_operand.vmem [shape: f32[16,16,32], index: 3, kind: input, shape index: {}]
  %s4 = inlined_call_operand.vmem [shape: f32[4,32,128], index: 4, kind: input, shape index: {}]
  %s5 = inlined_call_operand.vmem [shape: f32[3,128,128], index: 5, kind: input, shape index: {}]
  %s6 = inlined_call_operand.vmem [shape: f32[384,128], index: 6, kind: input, shape index: {}]
  %s7 = inlined_call_operand.vmem [shape: f32[8,128], index: 7, kind: input, shape index: {}]
  %s8 = inlined_call_operand.vmem [shape: f32[16,128], index: 8, kind: output, shape index: {}]
  %s9 = sld [smem:[#allocation0]]
  $region53: #{spert_pallas.1} parent=0
    _
  %s11 = ssub.s32 1, %s9
  %s12 = scalar_select 0, %s11, %s9
  %s13 = sshll.u32 %s0, 4
  %s14 = int_to_ptr.vmem [resolvable:$true] %s13
  %16 = dma.vmem_to_smem %s14, 256, [#allocation3], [#allocation2]
  %s17 = sshll.u32 %s1, 4
  %s18 = int_to_ptr.vmem [resolvable:$true] %s17
  %20 = dma.vmem_to_smem %s18, 256, [#allocation4], [#allocation2]
  %s21 = sshll.u32 %s2, 4
  %s22 = int_to_ptr.vmem [resolvable:$true] %s21
  %24 = dma.vmem_to_smem %s22, 256, [#allocation5], [#allocation2]
  %25 = dma.done [#allocation2], 768
  %26 = sfence
  loop: start=0, step=1, limit=4
  $region2: #{spert_pallas.1} parent=0 // loop_pre_header
    _
  $region3: #{spert_pallas.1} parent=0 // loop_header
    %s28 = sphi 0, %s32
    %p29 = scmp.ge.s32.totalorder %s28, 4
    %s38 = sphi 0, %s40
    %s41 = sphi 0, %s38
    %s42 = sphi 0, %s41
    %s58 = sphi 0, %s42
    %s62 = sphi 0, %s62
    %s64 = sphi 0, %s62
    %s65 = sphi 0, %s64
    %s79 = sphi 0, %s65
    %s83 = sphi 0, %s83
    %s85 = sphi 0, %s83
    %s86 = sphi 0, %s85
    %s100 = sphi 0, %s86
    %s104 = sphi 0, %s104
    %s106 = sphi 0, %s104
    %s107 = sphi 0, %s106
    %s121 = sphi 0, %s107
    %s125 = sphi 0, %s125
    %s127 = sphi 0, %s125
    %s128 = sphi 0, %s127
    %s142 = sphi 0, %s128
    %s148 = sphi 0, %s150
    %s151 = sphi 0, %s148
    %s152 = sphi 0, %s151
    %s168 = sphi 0, %s152
  $region4: #{spert_pallas.1} parent=0 // loop_header_branch
    %31 = sbr.rel (%p29) target = $region8
  $region5: #{spert_pallas.1} parent=0 // loop_body
    %s33 = ssub.s32 %s28, 1
    %s34 = ssub.s32 %s28, 2
    %s35 = sadd.s32 %s28, 1
    %s36 = ssub.s32 %s28, %s35
    %p37 = scmp.eq.s32.totalorder %s36, 0
    %s39 = sadd.s32 %s38, 1
    %s40 = scalar_select %p37, %s38, %s39
    %p43 = pneg %p37
    %p44 = scmp.eq.s32.totalorder %s28, 1
    %p45 = por %p43, %p44
    %p46 = scmp.ne.s32.totalorder %s38, %s41
    %p47 = scmp.eq.s32.totalorder %s28, 0
    %p48 = por %p46, %p47
    %p49 = scmp.ne.s32.totalorder %s38, %s41
    %p50 = scmp.eq.s32.totalorder %s33, 1
    %p51 = por %p49, %p50
    %p52 = scmp.ne.s32.totalorder %s41, %s42
    %p53 = scmp.eq.s32.totalorder %s33, 0
    %p54 = por %p52, %p53
    %p55 = scmp.ne.s32.totalorder %s41, %s42
    %p56 = scmp.eq.s32.totalorder %s34, 1
    %p57 = por %p55, %p56
    %p59 = scmp.ne.s32.totalorder %s42, %s58
    %p60 = scmp.eq.s32.totalorder %s34, 0
    %p61 = por %p59, %p60
    %s63 = sadd.s32 %s62, 1
    %p66 = scmp.eq.s32.totalorder %s28, 1
    %p67 = scmp.ne.s32.totalorder %s62, %s64
    %p68 = scmp.eq.s32.totalorder %s28, 0
    %p69 = por %p67, %p68
    %p70 = scmp.ne.s32.totalorder %s62, %s64
    %p71 = scmp.eq.s32.totalorder %s33, 1
    %p72 = por %p70, %p71
    %p73 = scmp.ne.s32.totalorder %s64, %s65
    %p74 = scmp.eq.s32.totalorder %s33, 0
    %p75 = por %p73, %p74
    %p76 = scmp.ne.s32.totalorder %s64, %s65
    %p77 = scmp.eq.s32.totalorder %s34, 1
    %p78 = por %p76, %p77
    %p80 = scmp.ne.s32.totalorder %s65, %s79
    %p81 = scmp.eq.s32.totalorder %s34, 0
    %p82 = por %p80, %p81
    %s84 = sadd.s32 %s83, 1
    %p87 = scmp.eq.s32.totalorder %s28, 1
    %p88 = scmp.ne.s32.totalorder %s83, %s85
    %p89 = scmp.eq.s32.totalorder %s28, 0
    %p90 = por %p88, %p89
    %p91 = scmp.ne.s32.totalorder %s83, %s85
    %p92 = scmp.eq.s32.totalorder %s33, 1
    %p93 = por %p91, %p92
    %p94 = scmp.ne.s32.totalorder %s85, %s86
    %p95 = scmp.eq.s32.totalorder %s33, 0
    %p96 = por %p94, %p95
    %p97 = scmp.ne.s32.totalorder %s85, %s86
    %p98 = scmp.eq.s32.totalorder %s34, 1
    %p99 = por %p97, %p98
    %p101 = scmp.ne.s32.totalorder %s86, %s100
    %p102 = scmp.eq.s32.totalorder %s34, 0
    %p103 = por %p101, %p102
    %s105 = sadd.s32 %s104, 1
    %p108 = scmp.eq.s32.totalorder %s28, 1
    %p109 = scmp.ne.s32.totalorder %s104, %s106
    %p110 = scmp.eq.s32.totalorder %s28, 0
    %p111 = por %p109, %p110
    %p112 = scmp.ne.s32.totalorder %s104, %s106
    %p113 = scmp.eq.s32.totalorder %s33, 1
    %p114 = por %p112, %p113
    %p115 = scmp.ne.s32.totalorder %s106, %s107
    %p116 = scmp.eq.s32.totalorder %s33, 0
    %p117 = por %p115, %p116
    %p118 = scmp.ne.s32.totalorder %s106, %s107
    %p119 = scmp.eq.s32.totalorder %s34, 1
    %p120 = por %p118, %p119
    %p122 = scmp.ne.s32.totalorder %s107, %s121
    %p123 = scmp.eq.s32.totalorder %s34, 0
    %p124 = por %p122, %p123
    %s126 = sadd.s32 %s125, 1
    %p129 = scmp.eq.s32.totalorder %s28, 1
    %p130 = scmp.ne.s32.totalorder %s125, %s127
    %p131 = scmp.eq.s32.totalorder %s28, 0
    %p132 = por %p130, %p131
    %p133 = scmp.ne.s32.totalorder %s125, %s127
    %p134 = scmp.eq.s32.totalorder %s33, 1
    %p135 = por %p133, %p134
    %p136 = scmp.ne.s32.totalorder %s127, %s128
    %p137 = scmp.eq.s32.totalorder %s33, 0
    %p138 = por %p136, %p137
    %p139 = scmp.ne.s32.totalorder %s127, %s128
    %p140 = scmp.eq.s32.totalorder %s34, 1
    %p141 = por %p139, %p140
    %p143 = scmp.ne.s32.totalorder %s128, %s142
    %p144 = scmp.eq.s32.totalorder %s34, 0
    %p145 = por %p143, %p144
    %s146 = ssub.s32 %s28, %s35
    %p147 = scmp.eq.s32.totalorder %s146, 0
    %s149 = sadd.s32 %s148, 1
    %s150 = scalar_select %p147, %s148, %s149
    %p153 = pneg %p147
    %p154 = scmp.eq.s32.totalorder %s28, 1
    %p155 = por %p153, %p154
    %p156 = scmp.ne.s32.totalorder %s148, %s151
    %p157 = scmp.eq.s32.totalorder %s28, 0
    %p158 = por %p156, %p157
    %p159 = scmp.ne.s32.totalorder %s148, %s151
    %p160 = scmp.eq.s32.totalorder %s33, 1
    %p161 = por %p159, %p160
    %p162 = scmp.ne.s32.totalorder %s151, %s152
    %p163 = scmp.eq.s32.totalorder %s33, 0
    %p164 = por %p162, %p163
    %p165 = scmp.ne.s32.totalorder %s151, %s152
    %p166 = scmp.eq.s32.totalorder %s34, 1
    %p167 = por %p165, %p166
    %p169 = scmp.ne.s32.totalorder %s152, %s168
    %p170 = scmp.eq.s32.totalorder %s34, 0
    %p171 = por %p169, %p170
    %p172 = scmp.le.s32.totalorder 1, %s28
    %p173 = scmp.lt.s32.totalorder %s28, 3
    %p174 = pnand %p172, %p173
    %p175 = pneg %p174
    // Predicated region
    $region9: #{spert_pallas.1} parent=5 // pred_check
      _
    $region10: #{spert_pallas.1} parent=5 // pred_check_branch
      %177 = sbr.rel (%p174) target = $region12
    $region11: #{spert_pallas.1} parent=5 // pred_region
      %s178 = ssub.s32 %s28, 1
      // Predicated region
      $region13: #{spert_pallas.1} parent=11 // pred_check
        %p179 = pneg %p75
      $region14: #{spert_pallas.1} parent=11 // pred_check_branch
        %181 = sbr.rel (%p179) target = $region16
      $region15: #{spert_pallas.1} parent=11 // pred_region
        _
      $region16: #{spert_pallas.1} parent=11 // pred_fallthru
        _
      // Predicated region
      $region17: #{spert_pallas.1} parent=11 // pred_check
        %p182 = pneg %p96
      $region18: #{spert_pallas.1} parent=11 // pred_check_branch
        %184 = sbr.rel (%p182) target = $region20
      $region19: #{spert_pallas.1} parent=11 // pred_region
        _
      $region20: #{spert_pallas.1} parent=11 // pred_fallthru
        _
      // Predicated region
      $region21: #{spert_pallas.1} parent=11 // pred_check
        %p185 = pneg %p117
      $region22: #{spert_pallas.1} parent=11 // pred_check_branch
        %187 = sbr.rel (%p185) target = $region24
      $region23: #{spert_pallas.1} parent=11 // pred_region
        _
      $region24: #{spert_pallas.1} parent=11 // pred_fallthru
        _
      // Predicated region
      $region25: #{spert_pallas.1} parent=11 // pred_check
        %p188 = pneg %p138
      $region26: #{spert_pallas.1} parent=11 // pred_check_branch
        %190 = sbr.rel (%p188) target = $region28
      $region27: #{spert_pallas.1} parent=11 // pred_region
        _
      $region28: #{spert_pallas.1} parent=11 // pred_fallthru
        _
    $region12: #{spert_pallas.1} parent=5 // pred_fallthru
      _
    %p191 = scmp.lt.s32.totalorder %s28, 2
    // Predicated region
    $region29: #{spert_pallas.1} parent=5 // pred_check
      %p192 = pneg %p191
    $region30: #{spert_pallas.1} parent=5 // pred_check_branch
      %194 = sbr.rel (%p192) target = $region32
    $region31: #{spert_pallas.1} parent=5 // pred_region
      // Predicated region
      $region33: #{spert_pallas.1} parent=31 // pred_check
        %p195 = pneg %p48
      $region34: #{spert_pallas.1} parent=31 // pred_check_branch
        %197 = sbr.rel (%p195) target = $region36
      $region35: #{spert_pallas.1} parent=31 // pred_region
        %s198 = smul.u32 8, %s28
        %p199 = scmp.lt.s32.totalorder %s198, 15
        %s200 = scalar_select %p199, %s198, 15
        %s201 = smul.addr %s200, 2
        %s202 = smul.addr %s201, 8
        %s203 = scalar_lea.vmem %s3, %s202
        %s204 = smul.u32 8, %s28
      $region36: #{spert_pallas.1} parent=31 // pred_fallthru
        _
    $region32: #{spert_pallas.1} parent=5 // pred_fallthru
      _
    %p205 = scmp.le.s32.totalorder 1, %s28
    %p206 = scmp.lt.s32.totalorder %s28, 3
    %p207 = pnand %p205, %p206
    %p208 = pneg %p207
    // Predicated region
    $region37: #{spert_pallas.1} parent=5 // pred_check
      _
    $region38: #{spert_pallas.1} parent=5 // pred_check_branch
      %210 = sbr.rel (%p207) target = $region40
    $region39: #{spert_pallas.1} parent=5 // pred_region
      %s211 = ssub.s32 %s28, 1
      %s212 = smul.u32 8, %s33
      %p213 = scmp.lt.s32.totalorder %s212, 15
      %s214 = scalar_select %p213, %s212, 15
      %s215 = smul.addr %s214, 2
      %s216 = smul.addr %s215, 8
      %s217 = scalar_lea.vmem %s3, %s216
      %p218 = pneg %p54
      %p219 = pneg %p51
      %p220 = pneg %p75
      %p221 = pneg %p72
      %p222 = pneg %p96
      %p223 = pneg %p93
      %p224 = pneg %p117
      %p225 = pneg %p114
      %p226 = pneg %p138
      %p227 = pneg %p135
      %p228 = pneg %p164
      %p229 = pneg %p161
      %p230 = scmp.lt.s32.totalorder %s33, 1
      %s231 = scalar_select %p230, %s33, 1
      %s232 = smul.addr %s231, 8
      %s233 = scalar_lea.vmem %s8, %s232
      %s234 = smul.u32 8, %s33
      %p235 = scmp.lt.s32.totalorder %s234, 15
      %s236 = scalar_select %p235, %s234, 15
      %s237 = smul.addr %s236, 2
      %s238 = smul.addr %s237, 8
      %s239 = scalar_lea.vmem %s3, %s238
      %s240 = smul.u32 8, %s33
      %p241 = scmp.lt.s32.totalorder %s33, 1
      %s242 = scalar_select %p241, %s33, 1
      %s243 = smul.addr %s242, 8
      %s244 = scalar_lea.vmem %s8, %s243
      %s245 = smul.u32 %s33, 8
      %v246 = vld [vmem:[%s7] sm:$0xff]
      %s247 = smul.u32 %s245, 128
      %s248 = sld [smem:[#allocation3 + %s247]]
      %s249 = scalar_lea.vmem %s239, %s248
      %v250 = vld [vmem:[%s249] sm:$0x1]
      %p251 = scmp.ne.s32.totalorder %s248, 0
      %s252 = scalar_select %p251, 1, 0
      %v253 = vstv %s252
      %vm254 = vcmp.eq.s32.totalorder %v253, 1
      %v255 = vsel %vm254, %v250, -inf
      %s256 = sadd.s32 %s247, 1
      %s257 = sld [smem:[#allocation3 + %s256]]
      %s258 = scalar_lea.vmem %s239, %s257
      %v259 = vld [vmem:[%s258] sm:$0x1]
      %p260 = scmp.ne.s32.totalorder %s257, 0
      %v261 = vmax.f32 %v255, %v259
      %s262 = scalar_select %p260, 1, 0
      %v263 = vstv %s262
      %vm264 = vcmp.eq.s32.totalorder %v263, 1
      %v265 = vsel %vm264, %v261, %v255
      %s266 = sadd.s32 %s247, 2
      %s267 = sld [smem:[#allocation3 + %s266]]
      %s268 = scalar_lea.vmem %s239, %s267
      %v269 = vld [vmem:[%s268] sm:$0x1]
      %p270 = scmp.ne.s32.totalorder %s267, 0
      %v271 = vmax.f32 %v265, %v269
      %s272 = scalar_select %p270, 1, 0
      %v273 = vstv %s272
      %vm274 = vcmp.eq.s32.totalorder %v273, 1
      %v275 = vsel %vm274, %v271, %v265
      %s276 = sadd.s32 %s247, 3
      %s277 = sld [smem:[#allocation3 + %s276]]
      %s278 = scalar_lea.vmem %s239, %s277
      %v279 = vld [vmem:[%s278] sm:$0x1]
      %p280 = scmp.ne.s32.totalorder %s277, 0
      %v281 = vmax.f32 %v275, %v279
      %s282 = scalar_select %p280, 1, 0
      %v283 = vstv %s282
      %vm284 = vcmp.eq.s32.totalorder %v283, 1
      %v285 = vsel %vm284, %v281, %v275
      %s286 = sadd.s32 %s245, 1
      %s287 = smul.u32 %s286, 128
      %s288 = sld [smem:[#allocation3 + %s287]]
      %s289 = sadd.s32 %s288, 16
      %s290 = scalar_lea.vmem %s239, %s289
      %v291 = vld [vmem:[%s290] sm:$0x1]
      %p292 = scmp.ne.s32.totalorder %s288, 0
      %s293 = scalar_select %p292, 1, 0
      %v294 = vstv %s293
      %vm295 = vcmp.eq.s32.totalorder %v294, 1
      %v296 = vsel %vm295, %v291, -inf
      %s297 = sadd.s32 %s287, 1
      %s298 = sld [smem:[#allocation3 + %s297]]
      %s299 = sadd.s32 %s298, 16
      %s300 = scalar_lea.vmem %s239, %s299
      %v301 = vld [vmem:[%s300] sm:$0x1]
      %p302 = scmp.ne.s32.totalorder %s298, 0
      %v303 = vmax.f32 %v296, %v301
      %s304 = scalar_select %p302, 1, 0
      %v305 = vstv %s304
      %vm306 = vcmp.eq.s32.totalorder %v305, 1
      %v307 = vsel %vm306, %v303, %v296
      %s308 = sadd.s32 %s287, 2
      %s309 = sld [smem:[#allocation3 + %s308]]
      %s310 = sadd.s32 %s309, 16
      %s311 = scalar_lea.vmem %s239, %s310
      %v312 = vld [vmem:[%s311] sm:$0x1]
      %p313 = scmp.ne.s32.totalorder %s309, 0
      %v314 = vmax.f32 %v307, %v312
      %s315 = scalar_select %p313, 1, 0
      %v316 = vstv %s315
      %vm317 = vcmp.eq.s32.totalorder %v316, 1
      %v318 = vsel %vm317, %v314, %v307
      %s319 = sadd.s32 %s287, 3
      %s320 = sld [smem:[#allocation3 + %s319]]
      %s321 = sadd.s32 %s320, 16
      %s322 = scalar_lea.vmem %s239, %s321
      %v323 = vld [vmem:[%s322] sm:$0x1]
      %p324 = scmp.ne.s32.totalorder %s320, 0
      %v325 = vmax.f32 %v318, %v323
      %s326 = scalar_select %p324, 1, 0
      %v327 = vstv %s326
      %vm328 = vcmp.eq.s32.totalorder %v327, 1
      %v329 = vsel %vm328, %v325, %v318
      %s330 = sadd.s32 %s245, 2
      %s331 = smul.u32 %s330, 128
      %s332 = sld [smem:[#allocation3 + %s331]]
      %s333 = sadd.s32 %s332, 32
      %s334 = scalar_lea.vmem %s239, %s333
      %v335 = vld [vmem:[%s334] sm:$0x1]
      %p336 = scmp.ne.s32.totalorder %s332, 0
      %s337 = scalar_select %p336, 1, 0
      %v338 = vstv %s337
      %vm339 = vcmp.eq.s32.totalorder %v338, 1
      %v340 = vsel %vm339, %v335, -inf
      %s341 = sadd.s32 %s331, 1
      %s342 = sld [smem:[#allocation3 + %s341]]
      %s343 = sadd.s32 %s342, 32
      %s344 = scalar_lea.vmem %s239, %s343
      %v345 = vld [vmem:[%s344] sm:$0x1]
      %p346 = scmp.ne.s32.totalorder %s342, 0
      %v347 = vmax.f32 %v340, %v345
      %s348 = scalar_select %p346, 1, 0
      %v349 = vstv %s348
      %vm350 = vcmp.eq.s32.totalorder %v349, 1
      %v351 = vsel %vm350, %v347, %v340
      %s352 = sadd.s32 %s331, 2
      %s353 = sld [smem:[#allocation3 + %s352]]
      %s354 = sadd.s32 %s353, 32
      %s355 = scalar_lea.vmem %s239, %s354
      %v356 = vld [vmem:[%s355] sm:$0x1]
      %p357 = scmp.ne.s32.totalorder %s353, 0
      %v358 = vmax.f32 %v351, %v356
      %s359 = scalar_select %p357, 1, 0
      %v360 = vstv %s359
      %vm361 = vcmp.eq.s32.totalorder %v360, 1
      %v362 = vsel %vm361, %v358, %v351
      %s363 = sadd.s32 %s331, 3
      %s364 = sld [smem:[#allocation3 + %s363]]
      %s365 = sadd.s32 %s364, 32
      %s366 = scalar_lea.vmem %s239, %s365
      %v367 = vld [vmem:[%s366] sm:$0x1]
      %p368 = scmp.ne.s32.totalorder %s364, 0
      %v369 = vmax.f32 %v362, %v367
      %s370 = scalar_select %p368, 1, 0
      %v371 = vstv %s370
      %vm372 = vcmp.eq.s32.totalorder %v371, 1
      %v373 = vsel %vm372, %v369, %v362
      %s374 = sadd.s32 %s245, 3
      %s375 = smul.u32 %s374, 128
      %s376 = sld [smem:[#allocation3 + %s375]]
      %s377 = sadd.s32 %s376, 48
      %s378 = scalar_lea.vmem %s239, %s377
      %v379 = vld [vmem:[%s378] sm:$0x1]
      %p380 = scmp.ne.s32.totalorder %s376, 0
      %s381 = scalar_select %p380, 1, 0
      %v382 = vstv %s381
      %vm383 = vcmp.eq.s32.totalorder %v382, 1
      %v384 = vsel %vm383, %v379, -inf
      %s385 = sadd.s32 %s375, 1
      %s386 = sld [smem:[#allocation3 + %s385]]
      %s387 = sadd.s32 %s386, 48
      %s388 = scalar_lea.vmem %s239, %s387
      %v389 = vld [vmem:[%s388] sm:$0x1]
      %p390 = scmp.ne.s32.totalorder %s386, 0
      %v391 = vmax.f32 %v384, %v389
      %s392 = scalar_select %p390, 1, 0
      %v393 = vstv %s392
      %vm394 = vcmp.eq.s32.totalorder %v393, 1
      %v395 = vsel %vm394, %v391, %v384
      %s396 = sadd.s32 %s375, 2
      %s397 = sld [smem:[#allocation3 + %s396]]
      %s398 = sadd.s32 %s397, 48
      %s399 = scalar_lea.vmem %s239, %s398
      %v400 = vld [vmem:[%s399] sm:$0x1]
      %p401 = scmp.ne.s32.totalorder %s397, 0
      %v402 = vmax.f32 %v395, %v400
      %s403 = scalar_select %p401, 1, 0
      %v404 = vstv %s403
      %vm405 = vcmp.eq.s32.totalorder %v404, 1
      %v406 = vsel %vm405, %v402, %v395
      %s407 = sadd.s32 %s375, 3
      %s408 = sld [smem:[#allocation3 + %s407]]
      %s409 = sadd.s32 %s408, 48
      %s410 = scalar_lea.vmem %s239, %s409
      %v411 = vld [vmem:[%s410] sm:$0x1]
      %p412 = scmp.ne.s32.totalorder %s408, 0
      %v413 = vmax.f32 %v406, %v411
      %s414 = scalar_select %p412, 1, 0
      %v415 = vstv %s414
      %vm416 = vcmp.eq.s32.totalorder %v415, 1
      %v417 = vsel %vm416, %v413, %v406
      %s418 = sadd.s32 %s245, 4
      %s419 = smul.u32 %s418, 128
      %s420 = sld [smem:[#allocation3 + %s419]]
      %s421 = sadd.s32 %s420, 64
      %s422 = scalar_lea.vmem %s239, %s421
      %v423 = vld [vmem:[%s422] sm:$0x1]
      %p424 = scmp.ne.s32.totalorder %s420, 0
      %s425 = scalar_select %p424, 1, 0
      %v426 = vstv %s425
      %vm427 = vcmp.eq.s32.totalorder %v426, 1
      %v428 = vsel %vm427, %v423, -inf
      %s429 = sadd.s32 %s419, 1
      %s430 = sld [smem:[#allocation3 + %s429]]
      %s431 = sadd.s32 %s430, 64
      %s432 = scalar_lea.vmem %s239, %s431
      %v433 = vld [vmem:[%s432] sm:$0x1]
      %p434 = scmp.ne.s32.totalorder %s430, 0
      %v435 = vmax.f32 %v428, %v433
      %s436 = scalar_select %p434, 1, 0
      %v437 = vstv %s436
      %vm438 = vcmp.eq.s32.totalorder %v437, 1
      %v439 = vsel %vm438, %v435, %v428
      %s440 = sadd.s32 %s419, 2
      %s441 = sld [smem:[#allocation3 + %s440]]
      %s442 = sadd.s32 %s441, 64
      %s443 = scalar_lea.vmem %s239, %s442
      %v444 = vld [vmem:[%s443] sm:$0x1]
      %p445 = scmp.ne.s32.totalorder %s441, 0
      %v446 = vmax.f32 %v439, %v444
      %s447 = scalar_select %p445, 1, 0
      %v448 = vstv %s447
      %vm449 = vcmp.eq.s32.totalorder %v448, 1
      %v450 = vsel %vm449, %v446, %v439
      %s451 = sadd.s32 %s419, 3
      %s452 = sld [smem:[#allocation3 + %s451]]
      %s453 = sadd.s32 %s452, 64
      %s454 = scalar_lea.vmem %s239, %s453
      %v455 = vld [vmem:[%s454] sm:$0x1]
      %p456 = scmp.ne.s32.totalorder %s452, 0
      %v457 = vmax.f32 %v450, %v455
      %s458 = scalar_select %p456, 1, 0
      %v459 = vstv %s458
      %vm460 = vcmp.eq.s32.totalorder %v459, 1
      %v461 = vsel %vm460, %v457, %v450
      %s462 = sadd.s32 %s245, 5
      %s463 = smul.u32 %s462, 128
      %s464 = sld [smem:[#allocation3 + %s463]]
      %s465 = sadd.s32 %s464, 80
      %s466 = scalar_lea.vmem %s239, %s465
      %v467 = vld [vmem:[%s466] sm:$0x1]
      %p468 = scmp.ne.s32.totalorder %s464, 0
      %s469 = scalar_select %p468, 1, 0
      %v470 = vstv %s469
      %vm471 = vcmp.eq.s32.totalorder %v470, 1
      %v472 = vsel %vm471, %v467, -inf
      %s473 = sadd.s32 %s463, 1
      %s474 = sld [smem:[#allocation3 + %s473]]
      %s475 = sadd.s32 %s474, 80
      %s476 = scalar_lea.vmem %s239, %s475
      %v477 = vld [vmem:[%s476] sm:$0x1]
      %p478 = scmp.ne.s32.totalorder %s474, 0
      %v479 = vmax.f32 %v472, %v477
      %s480 = scalar_select %p478, 1, 0
      %v481 = vstv %s480
      %vm482 = vcmp.eq.s32.totalorder %v481, 1
      %v483 = vsel %vm482, %v479, %v472
      %s484 = sadd.s32 %s463, 2
      %s485 = sld [smem:[#allocation3 + %s484]]
      %s486 = sadd.s32 %s485, 80
      %s487 = scalar_lea.vmem %s239, %s486
      %v488 = vld [vmem:[%s487] sm:$0x1]
      %p489 = scmp.ne.s32.totalorder %s485, 0
      %v490 = vmax.f32 %v483, %v488
      %s491 = scalar_select %p489, 1, 0
      %v492 = vstv %s491
      %vm493 = vcmp.eq.s32.totalorder %v492, 1
      %v494 = vsel %vm493, %v490, %v483
      %s495 = sadd.s32 %s463, 3
      %s496 = sld [smem:[#allocation3 + %s495]]
      %s497 = sadd.s32 %s496, 80
      %s498 = scalar_lea.vmem %s239, %s497
      %v499 = vld [vmem:[%s498] sm:$0x1]
      %p500 = scmp.ne.s32.totalorder %s496, 0
      %v501 = vmax.f32 %v494, %v499
      %s502 = scalar_select %p500, 1, 0
      %v503 = vstv %s502
      %vm504 = vcmp.eq.s32.totalorder %v503, 1
      %v505 = vsel %vm504, %v501, %v494
      %s506 = sadd.s32 %s245, 6
      %s507 = smul.u32 %s506, 128
      %s508 = sld [smem:[#allocation3 + %s507]]
      %s509 = sadd.s32 %s508, 96
      %s510 = scalar_lea.vmem %s239, %s509
      %v511 = vld [vmem:[%s510] sm:$0x1]
      %p512 = scmp.ne.s32.totalorder %s508, 0
      %s513 = scalar_select %p512, 1, 0
      %v514 = vstv %s513
      %vm515 = vcmp.eq.s32.totalorder %v514, 1
      %v516 = vsel %vm515, %v511, -inf
      %s517 = sadd.s32 %s507, 1
      %s518 = sld [smem:[#allocation3 + %s517]]
      %s519 = sadd.s32 %s518, 96
      %s520 = scalar_lea.vmem %s239, %s519
      %v521 = vld [vmem:[%s520] sm:$0x1]
      %p522 = scmp.ne.s32.totalorder %s518, 0
      %v523 = vmax.f32 %v516, %v521
      %s524 = scalar_select %p522, 1, 0
      %v525 = vstv %s524
      %vm526 = vcmp.eq.s32.totalorder %v525, 1
      %v527 = vsel %vm526, %v523, %v516
      %s528 = sadd.s32 %s507, 2
      %s529 = sld [smem:[#allocation3 + %s528]]
      %s530 = sadd.s32 %s529, 96
      %s531 = scalar_lea.vmem %s239, %s530
      %v532 = vld [vmem:[%s531] sm:$0x1]
      %p533 = scmp.ne.s32.totalorder %s529, 0
      %v534 = vmax.f32 %v527, %v532
      %s535 = scalar_select %p533, 1, 0
      %v536 = vstv %s535
      %vm537 = vcmp.eq.s32.totalorder %v536, 1
      %v538 = vsel %vm537, %v534, %v527
      %s539 = sadd.s32 %s507, 3
      %s540 = sld [smem:[#allocation3 + %s539]]
      %s541 = sadd.s32 %s540, 96
      %s542 = scalar_lea.vmem %s239, %s541
      %v543 = vld [vmem:[%s542] sm:$0x1]
      %p544 = scmp.ne.s32.totalorder %s540, 0
      %v545 = vmax.f32 %v538, %v543
      %s546 = scalar_select %p544, 1, 0
      %v547 = vstv %s546
      %vm548 = vcmp.eq.s32.totalorder %v547, 1
      %v549 = vsel %vm548, %v545, %v538
      %s550 = sadd.s32 %s245, 7
      %s551 = smul.u32 %s550, 128
      %s552 = sld [smem:[#allocation3 + %s551]]
      %s553 = sadd.s32 %s552, 112
      %s554 = scalar_lea.vmem %s239, %s553
      %v555 = vld [vmem:[%s554] sm:$0x1]
      %p556 = scmp.ne.s32.totalorder %s552, 0
      %s557 = scalar_select %p556, 1, 0
      %v558 = vstv %s557
      %vm559 = vcmp.eq.s32.totalorder %v558, 1
      %v560 = vsel %vm559, %v555, -inf
      %s561 = sadd.s32 %s551, 1
      %s562 = sld [smem:[#allocation3 + %s561]]
      %s563 = sadd.s32 %s562, 112
      %s564 = scalar_lea.vmem %s239, %s563
      %v565 = vld [vmem:[%s564] sm:$0x1]
      %p566 = scmp.ne.s32.totalorder %s562, 0
      %v567 = vmax.f32 %v560, %v565
      %s568 = scalar_select %p566, 1, 0
      %v569 = vstv %s568
      %vm570 = vcmp.eq.s32.totalorder %v569, 1
      %v571 = vsel %vm570, %v567, %v560
      %s572 = sadd.s32 %s551, 2
      %s573 = sld [smem:[#allocation3 + %s572]]
      %s574 = sadd.s32 %s573, 112
      %s575 = scalar_lea.vmem %s239, %s574
      %v576 = vld [vmem:[%s575] sm:$0x1]
      %p577 = scmp.ne.s32.totalorder %s573, 0
      %v578 = vmax.f32 %v571, %v576
      %s579 = scalar_select %p577, 1, 0
      %v580 = vstv %s579
      %vm581 = vcmp.eq.s32.totalorder %v580, 1
      %v582 = vsel %vm581, %v578, %v571
      %s583 = sadd.s32 %s551, 3
      %s584 = sld [smem:[#allocation3 + %s583]]
      %s585 = sadd.s32 %s584, 112
      %s586 = scalar_lea.vmem %s239, %s585
      %v587 = vld [vmem:[%s586] sm:$0x1]
      %p588 = scmp.ne.s32.totalorder %s584, 0
      %v589 = vmax.f32 %v582, %v587
      %s590 = scalar_select %p588, 1, 0
      %v591 = vstv %s590
      %vm592 = vcmp.eq.s32.totalorder %v591, 1
      %v593 = vsel %vm592, %v589, %v582
      %v595 = vrot.slane %v329, 7
      %v598 = vrot.slane %v373, 6
      %v601 = vrot.slane %v417, 5
      %v604 = vrot.slane %v461, 4
      %v607 = vrot.slane %v505, 3
      %v610 = vrot.slane %v549, 2
      %v613 = vrot.slane %v593, 1
      %vm615 = vcmask 1040384
      %v616 = vsel %vm615, %v285, %v595
      %vm617 = vcmask 1041408
      %v618 = vsel %vm617, %v616, %v598
      %vm619 = vcmask 1042432
      %v620 = vsel %vm619, %v618, %v601
      %vm621 = vcmask 1043456
      %v622 = vsel %vm621, %v620, %v604
      %vm623 = vcmask 1044480
      %v624 = vsel %vm623, %v622, %v607
      %vm625 = vcmask 1045504
      %v626 = vsel %vm625, %v624, %v610
      %vm627 = vcmask 1046528
      %v628 = vsel %vm627, %v626, %v613
      %s629 = sld [smem:[#allocation4 + %s247]]
      %s630 = scalar_lea.vmem %s239, %s629
      %v631 = vld [vmem:[%s630] sm:$0x1]
      %p632 = scmp.ne.s32.totalorder %s629, 0
      %s633 = scalar_select %p632, 1, 0
      %v634 = vstv %s633
      %vm635 = vcmp.eq.s32.totalorder %v634, 1
      %v636 = vsel %vm635, %v631, -inf
      %s637 = sld [smem:[#allocation4 + %s256]]
      %s638 = scalar_lea.vmem %s239, %s637
      %v639 = vld [vmem:[%s638] sm:$0x1]
      %p640 = scmp.ne.s32.totalorder %s637, 0
      %v641 = vmax.f32 %v636, %v639
      %s642 = scalar_select %p640, 1, 0
      %v643 = vstv %s642
      %vm644 = vcmp.eq.s32.totalorder %v643, 1
      %v645 = vsel %vm644, %v641, %v636
      %s646 = sld [smem:[#allocation4 + %s266]]
      %s647 = scalar_lea.vmem %s239, %s646
      %v648 = vld [vmem:[%s647] sm:$0x1]
      %p649 = scmp.ne.s32.totalorder %s646, 0
      %v650 = vmax.f32 %v645, %v648
      %s651 = scalar_select %p649, 1, 0
      %v652 = vstv %s651
      %vm653 = vcmp.eq.s32.totalorder %v652, 1
      %v654 = vsel %vm653, %v650, %v645
      %s655 = sld [smem:[#allocation4 + %s276]]
      %s656 = scalar_lea.vmem %s239, %s655
      %v657 = vld [vmem:[%s656] sm:$0x1]
      %p658 = scmp.ne.s32.totalorder %s655, 0
      %v659 = vmax.f32 %v654, %v657
      %s660 = scalar_select %p658, 1, 0
      %v661 = vstv %s660
      %vm662 = vcmp.eq.s32.totalorder %v661, 1
      %v663 = vsel %vm662, %v659, %v654
      %s664 = sld [smem:[#allocation4 + %s287]]
      %s665 = sadd.s32 %s664, 16
      %s666 = scalar_lea.vmem %s239, %s665
      %v667 = vld [vmem:[%s666] sm:$0x1]
      %p668 = scmp.ne.s32.totalorder %s664, 0
      %s669 = scalar_select %p668, 1, 0
      %v670 = vstv %s669
      %vm671 = vcmp.eq.s32.totalorder %v670, 1
      %v672 = vsel %vm671, %v667, -inf
      %s673 = sld [smem:[#allocation4 + %s297]]
      %s674 = sadd.s32 %s673, 16
      %s675 = scalar_lea.vmem %s239, %s674
      %v676 = vld [vmem:[%s675] sm:$0x1]
      %p677 = scmp.ne.s32.totalorder %s673, 0
      %v678 = vmax.f32 %v672, %v676
      %s679 = scalar_select %p677, 1, 0
      %v680 = vstv %s679
      %vm681 = vcmp.eq.s32.totalorder %v680, 1
      %v682 = vsel %vm681, %v678, %v672
      %s683 = sld [smem:[#allocation4 + %s308]]
      %s684 = sadd.s32 %s683, 16
      %s685 = scalar_lea.vmem %s239, %s684
      %v686 = vld [vmem:[%s685] sm:$0x1]
      %p687 = scmp.ne.s32.totalorder %s683, 0
      %v688 = vmax.f32 %v682, %v686
      %s689 = scalar_select %p687, 1, 0
      %v690 = vstv %s689
      %vm691 = vcmp.eq.s32.totalorder %v690, 1
      %v692 = vsel %vm691, %v688, %v682
      %s693 = sld [smem:[#allocation4 + %s319]]
      %s694 = sadd.s32 %s693, 16
      %s695 = scalar_lea.vmem %s239, %s694
      %v696 = vld [vmem:[%s695] sm:$0x1]
      %p697 = scmp.ne.s32.totalorder %s693, 0
      %v698 = vmax.f32 %v692, %v696
      %s699 = scalar_select %p697, 1, 0
      %v700 = vstv %s699
      %vm701 = vcmp.eq.s32.totalorder %v700, 1
      %v702 = vsel %vm701, %v698, %v692
      %s703 = sld [smem:[#allocation4 + %s331]]
      %s704 = sadd.s32 %s703, 32
      %s705 = scalar_lea.vmem %s239, %s704
      %v706 = vld [vmem:[%s705] sm:$0x1]
      %p707 = scmp.ne.s32.totalorder %s703, 0
      %s708 = scalar_select %p707, 1, 0
      %v709 = vstv %s708
      %vm710 = vcmp.eq.s32.totalorder %v709, 1
      %v711 = vsel %vm710, %v706, -inf
      %s712 = sld [smem:[#allocation4 + %s341]]
      %s713 = sadd.s32 %s712, 32
      %s714 = scalar_lea.vmem %s239, %s713
      %v715 = vld [vmem:[%s714] sm:$0x1]
      %p716 = scmp.ne.s32.totalorder %s712, 0
      %v717 = vmax.f32 %v711, %v715
      %s718 = scalar_select %p716, 1, 0
      %v719 = vstv %s718
      %vm720 = vcmp.eq.s32.totalorder %v719, 1
      %v721 = vsel %vm720, %v717, %v711
      %s722 = sld [smem:[#allocation4 + %s352]]
      %s723 = sadd.s32 %s722, 32
      %s724 = scalar_lea.vmem %s239, %s723
      %v725 = vld [vmem:[%s724] sm:$0x1]
      %p726 = scmp.ne.s32.totalorder %s722, 0
      %v727 = vmax.f32 %v721, %v725
      %s728 = scalar_select %p726, 1, 0
      %v729 = vstv %s728
      %vm730 = vcmp.eq.s32.totalorder %v729, 1
      %v731 = vsel %vm730, %v727, %v721
      %s732 = sld [smem:[#allocation4 + %s363]]
      %s733 = sadd.s32 %s732, 32
      %s734 = scalar_lea.vmem %s239, %s733
      %v735 = vld [vmem:[%s734] sm:$0x1]
      %p736 = scmp.ne.s32.totalorder %s732, 0
      %v737 = vmax.f32 %v731, %v735
      %s738 = scalar_select %p736, 1, 0
      %v739 = vstv %s738
      %vm740 = vcmp.eq.s32.totalorder %v739, 1
      %v741 = vsel %vm740, %v737, %v731
      %s742 = sld [smem:[#allocation4 + %s375]]
      %s743 = sadd.s32 %s742, 48
      %s744 = scalar_lea.vmem %s239, %s743
      %v745 = vld [vmem:[%s744] sm:$0x1]
      %p746 = scmp.ne.s32.totalorder %s742, 0
      %s747 = scalar_select %p746, 1, 0
      %v748 = vstv %s747
      %vm749 = vcmp.eq.s32.totalorder %v748, 1
      %v750 = vsel %vm749, %v745, -inf
      %s751 = sld [smem:[#allocation4 + %s385]]
      %s752 = sadd.s32 %s751, 48
      %s753 = scalar_lea.vmem %s239, %s752
      %v754 = vld [vmem:[%s753] sm:$0x1]
      %p755 = scmp.ne.s32.totalorder %s751, 0
      %v756 = vmax.f32 %v750, %v754
      %s757 = scalar_select %p755, 1, 0
      %v758 = vstv %s757
      %vm759 = vcmp.eq.s32.totalorder %v758, 1
      %v760 = vsel %vm759, %v756, %v750
      %s761 = sld [smem:[#allocation4 + %s396]]
      %s762 = sadd.s32 %s761, 48
      %s763 = scalar_lea.vmem %s239, %s762
      %v764 = vld [vmem:[%s763] sm:$0x1]
      %p765 = scmp.ne.s32.totalorder %s761, 0
      %v766 = vmax.f32 %v760, %v764
      %s767 = scalar_select %p765, 1, 0
      %v768 = vstv %s767
      %vm769 = vcmp.eq.s32.totalorder %v768, 1
      %v770 = vsel %vm769, %v766, %v760
      %s771 = sld [smem:[#allocation4 + %s407]]
      %s772 = sadd.s32 %s771, 48
      %s773 = scalar_lea.vmem %s239, %s772
      %v774 = vld [vmem:[%s773] sm:$0x1]
      %p775 = scmp.ne.s32.totalorder %s771, 0
      %v776 = vmax.f32 %v770, %v774
      %s777 = scalar_select %p775, 1, 0
      %v778 = vstv %s777
      %vm779 = vcmp.eq.s32.totalorder %v778, 1
      %v780 = vsel %vm779, %v776, %v770
      %s781 = sld [smem:[#allocation4 + %s419]]
      %s782 = sadd.s32 %s781, 64
      %s783 = scalar_lea.vmem %s239, %s782
      %v784 = vld [vmem:[%s783] sm:$0x1]
      %p785 = scmp.ne.s32.totalorder %s781, 0
      %s786 = scalar_select %p785, 1, 0
      %v787 = vstv %s786
      %vm788 = vcmp.eq.s32.totalorder %v787, 1
      %v789 = vsel %vm788, %v784, -inf
      %s790 = sld [smem:[#allocation4 + %s429]]
      %s791 = sadd.s32 %s790, 64
      %s792 = scalar_lea.vmem %s239, %s791
      %v793 = vld [vmem:[%s792] sm:$0x1]
      %p794 = scmp.ne.s32.totalorder %s790, 0
      %v795 = vmax.f32 %v789, %v793
      %s796 = scalar_select %p794, 1, 0
      %v797 = vstv %s796
      %vm798 = vcmp.eq.s32.totalorder %v797, 1
      %v799 = vsel %vm798, %v795, %v789
      %s800 = sld [smem:[#allocation4 + %s440]]
      %s801 = sadd.s32 %s800, 64
      %s802 = scalar_lea.vmem %s239, %s801
      %v803 = vld [vmem:[%s802] sm:$0x1]
      %p804 = scmp.ne.s32.totalorder %s800, 0
      %v805 = vmax.f32 %v799, %v803
      %s806 = scalar_select %p804, 1, 0
      %v807 = vstv %s806
      %vm808 = vcmp.eq.s32.totalorder %v807, 1
      %v809 = vsel %vm808, %v805, %v799
      %s810 = sld [smem:[#allocation4 + %s451]]
      %s811 = sadd.s32 %s810, 64
      %s812 = scalar_lea.vmem %s239, %s811
      %v813 = vld [vmem:[%s812] sm:$0x1]
      %p814 = scmp.ne.s32.totalorder %s810, 0
      %v815 = vmax.f32 %v809, %v813
      %s816 = scalar_select %p814, 1, 0
      %v817 = vstv %s816
      %vm818 = vcmp.eq.s32.totalorder %v817, 1
      %v819 = vsel %vm818, %v815, %v809
      %s820 = sld [smem:[#allocation4 + %s463]]
      %s821 = sadd.s32 %s820, 80
      %s822 = scalar_lea.vmem %s239, %s821
      %v823 = vld [vmem:[%s822] sm:$0x1]
      %p824 = scmp.ne.s32.totalorder %s820, 0
      %s825 = scalar_select %p824, 1, 0
      %v826 = vstv %s825
      %vm827 = vcmp.eq.s32.totalorder %v826, 1
      %v828 = vsel %vm827, %v823, -inf
      %s829 = sld [smem:[#allocation4 + %s473]]
      %s830 = sadd.s32 %s829, 80
      %s831 = scalar_lea.vmem %s239, %s830
      %v832 = vld [vmem:[%s831] sm:$0x1]
      %p833 = scmp.ne.s32.totalorder %s829, 0
      %v834 = vmax.f32 %v828, %v832
      %s835 = scalar_select %p833, 1, 0
      %v836 = vstv %s835
      %vm837 = vcmp.eq.s32.totalorder %v836, 1
      %v838 = vsel %vm837, %v834, %v828
      %s839 = sld [smem:[#allocation4 + %s484]]
      %s840 = sadd.s32 %s839, 80
      %s841 = scalar_lea.vmem %s239, %s840
      %v842 = vld [vmem:[%s841] sm:$0x1]
      %p843 = scmp.ne.s32.totalorder %s839, 0
      %v844 = vmax.f32 %v838, %v842
      %s845 = scalar_select %p843, 1, 0
      %v846 = vstv %s845
      %vm847 = vcmp.eq.s32.totalorder %v846, 1
      %v848 = vsel %vm847, %v844, %v838
      %s849 = sld [smem:[#allocation4 + %s495]]
      %s850 = sadd.s32 %s849, 80
      %s851 = scalar_lea.vmem %s239, %s850
      %v852 = vld [vmem:[%s851] sm:$0x1]
      %p853 = scmp.ne.s32.totalorder %s849, 0
      %v854 = vmax.f32 %v848, %v852
      %s855 = scalar_select %p853, 1, 0
      %v856 = vstv %s855
      %vm857 = vcmp.eq.s32.totalorder %v856, 1
      %v858 = vsel %vm857, %v854, %v848
      %s859 = sld [smem:[#allocation4 + %s507]]
      %s860 = sadd.s32 %s859, 96
      %s861 = scalar_lea.vmem %s239, %s860
      %v862 = vld [vmem:[%s861] sm:$0x1]
      %p863 = scmp.ne.s32.totalorder %s859, 0
      %s864 = scalar_select %p863, 1, 0
      %v865 = vstv %s864
      %vm866 = vcmp.eq.s32.totalorder %v865, 1
      %v867 = vsel %vm866, %v862, -inf
      %s868 = sld [smem:[#allocation4 + %s517]]
      %s869 = sadd.s32 %s868, 96
      %s870 = scalar_lea.vmem %s239, %s869
      %v871 = vld [vmem:[%s870] sm:$0x1]
      %p872 = scmp.ne.s32.totalorder %s868, 0
      %v873 = vmax.f32 %v867, %v871
      %s874 = scalar_select %p872, 1, 0
      %v875 = vstv %s874
      %vm876 = vcmp.eq.s32.totalorder %v875, 1
      %v877 = vsel %vm876, %v873, %v867
      %s878 = sld [smem:[#allocation4 + %s528]]
      %s879 = sadd.s32 %s878, 96
      %s880 = scalar_lea.vmem %s239, %s879
      %v881 = vld [vmem:[%s880] sm:$0x1]
      %p882 = scmp.ne.s32.totalorder %s878, 0
      %v883 = vmax.f32 %v877, %v881
      %s884 = scalar_select %p882, 1, 0
      %v885 = vstv %s884
      %vm886 = vcmp.eq.s32.totalorder %v885, 1
      %v887 = vsel %vm886, %v883, %v877
      %s888 = sld [smem:[#allocation4 + %s539]]
      %s889 = sadd.s32 %s888, 96
      %s890 = scalar_lea.vmem %s239, %s889
      %v891 = vld [vmem:[%s890] sm:$0x1]
      %p892 = scmp.ne.s32.totalorder %s888, 0
      %v893 = vmax.f32 %v887, %v891
      %s894 = scalar_select %p892, 1, 0
      %v895 = vstv %s894
      %vm896 = vcmp.eq.s32.totalorder %v895, 1
      %v897 = vsel %vm896, %v893, %v887
      %s898 = sld [smem:[#allocation4 + %s551]]
      %s899 = sadd.s32 %s898, 112
      %s900 = scalar_lea.vmem %s239, %s899
      %v901 = vld [vmem:[%s900] sm:$0x1]
      %p902 = scmp.ne.s32.totalorder %s898, 0
      %s903 = scalar_select %p902, 1, 0
      %v904 = vstv %s903
      %vm905 = vcmp.eq.s32.totalorder %v904, 1
      %v906 = vsel %vm905, %v901, -inf
      %s907 = sld [smem:[#allocation4 + %s561]]
      %s908 = sadd.s32 %s907, 112
      %s909 = scalar_lea.vmem %s239, %s908
      %v910 = vld [vmem:[%s909] sm:$0x1]
      %p911 = scmp.ne.s32.totalorder %s907, 0
      %v912 = vmax.f32 %v906, %v910
      %s913 = scalar_select %p911, 1, 0
      %v914 = vstv %s913
      %vm915 = vcmp.eq.s32.totalorder %v914, 1
      %v916 = vsel %vm915, %v912, %v906
      %s917 = sld [smem:[#allocation4 + %s572]]
      %s918 = sadd.s32 %s917, 112
      %s919 = scalar_lea.vmem %s239, %s918
      %v920 = vld [vmem:[%s919] sm:$0x1]
      %p921 = scmp.ne.s32.totalorder %s917, 0
      %v922 = vmax.f32 %v916, %v920
      %s923 = scalar_select %p921, 1, 0
      %v924 = vstv %s923
      %vm925 = vcmp.eq.s32.totalorder %v924, 1
      %v926 = vsel %vm925, %v922, %v916
      %s927 = sld [smem:[#allocation4 + %s583]]
      %s928 = sadd.s32 %s927, 112
      %s929 = scalar_lea.vmem %s239, %s928
      %v930 = vld [vmem:[%s929] sm:$0x1]
      %p931 = scmp.ne.s32.totalorder %s927, 0
      %v932 = vmax.f32 %v926, %v930
      %s933 = scalar_select %p931, 1, 0
      %v934 = vstv %s933
      %vm935 = vcmp.eq.s32.totalorder %v934, 1
      %v936 = vsel %vm935, %v932, %v926
      %v938 = vrot.slane %v702, 7
      %v941 = vrot.slane %v741, 6
      %v944 = vrot.slane %v780, 5
      %v947 = vrot.slane %v819, 4
      %v950 = vrot.slane %v858, 3
      %v953 = vrot.slane %v897, 2
      %v956 = vrot.slane %v936, 1
      %v958 = vsel %vm615, %v663, %v938
      %v959 = vsel %vm617, %v958, %v941
      %v960 = vsel %vm619, %v959, %v944
      %v961 = vsel %vm621, %v960, %v947
      %v962 = vsel %vm623, %v961, %v950
      %v963 = vsel %vm625, %v962, %v953
      %v964 = vsel %vm627, %v963, %v956
      %s965 = sld [smem:[#allocation5 + %s247]]
      %s966 = scalar_lea.vmem %s239, %s965
      %v967 = vld [vmem:[%s966] sm:$0x1]
      %p968 = scmp.ne.s32.totalorder %s965, 0
      %s969 = scalar_select %p968, 1, 0
      %v970 = vstv %s969
      %vm971 = vcmp.eq.s32.totalorder %v970, 1
      %v972 = vsel %vm971, %v967, -inf
      %s973 = sld [smem:[#allocation5 + %s256]]
      %s974 = scalar_lea.vmem %s239, %s973
      %v975 = vld [vmem:[%s974] sm:$0x1]
      %p976 = scmp.ne.s32.totalorder %s973, 0
      %v977 = vmax.f32 %v972, %v975
      %s978 = scalar_select %p976, 1, 0
      %v979 = vstv %s978
      %vm980 = vcmp.eq.s32.totalorder %v979, 1
      %v981 = vsel %vm980, %v977, %v972
      %s982 = sld [smem:[#allocation5 + %s266]]
      %s983 = scalar_lea.vmem %s239, %s982
      %v984 = vld [vmem:[%s983] sm:$0x1]
      %p985 = scmp.ne.s32.totalorder %s982, 0
      %v986 = vmax.f32 %v981, %v984
      %s987 = scalar_select %p985, 1, 0
      %v988 = vstv %s987
      %vm989 = vcmp.eq.s32.totalorder %v988, 1
      %v990 = vsel %vm989, %v986, %v981
      %s991 = sld [smem:[#allocation5 + %s276]]
      %s992 = scalar_lea.vmem %s239, %s991
      %v993 = vld [vmem:[%s992] sm:$0x1]
      %p994 = scmp.ne.s32.totalorder %s991, 0
      %v995 = vmax.f32 %v990, %v993
      %s996 = scalar_select %p994, 1, 0
      %v997 = vstv %s996
      %vm998 = vcmp.eq.s32.totalorder %v997, 1
      %v999 = vsel %vm998, %v995, %v990
      %s1000 = sld [smem:[#allocation5 + %s287]]
      %s1001 = sadd.s32 %s1000, 16
      %s1002 = scalar_lea.vmem %s239, %s1001
      %v1003 = vld [vmem:[%s1002] sm:$0x1]
      %p1004 = scmp.ne.s32.totalorder %s1000, 0
      %s1005 = scalar_select %p1004, 1, 0
      %v1006 = vstv %s1005
      %vm1007 = vcmp.eq.s32.totalorder %v1006, 1
      %v1008 = vsel %vm1007, %v1003, -inf
      %s1009 = sld [smem:[#allocation5 + %s297]]
      %s1010 = sadd.s32 %s1009, 16
      %s1011 = scalar_lea.vmem %s239, %s1010
      %v1012 = vld [vmem:[%s1011] sm:$0x1]
      %p1013 = scmp.ne.s32.totalorder %s1009, 0
      %v1014 = vmax.f32 %v1008, %v1012
      %s1015 = scalar_select %p1013, 1, 0
      %v1016 = vstv %s1015
      %vm1017 = vcmp.eq.s32.totalorder %v1016, 1
      %v1018 = vsel %vm1017, %v1014, %v1008
      %s1019 = sld [smem:[#allocation5 + %s308]]
      %s1020 = sadd.s32 %s1019, 16
      %s1021 = scalar_lea.vmem %s239, %s1020
      %v1022 = vld [vmem:[%s1021] sm:$0x1]
      %p1023 = scmp.ne.s32.totalorder %s1019, 0
      %v1024 = vmax.f32 %v1018, %v1022
      %s1025 = scalar_select %p1023, 1, 0
      %v1026 = vstv %s1025
      %vm1027 = vcmp.eq.s32.totalorder %v1026, 1
      %v1028 = vsel %vm1027, %v1024, %v1018
      %s1029 = sld [smem:[#allocation5 + %s319]]
      %s1030 = sadd.s32 %s1029, 16
      %s1031 = scalar_lea.vmem %s239, %s1030
      %v1032 = vld [vmem:[%s1031] sm:$0x1]
      %p1033 = scmp.ne.s32.totalorder %s1029, 0
      %v1034 = vmax.f32 %v1028, %v1032
      %s1035 = scalar_select %p1033, 1, 0
      %v1036 = vstv %s1035
      %vm1037 = vcmp.eq.s32.totalorder %v1036, 1
      %v1038 = vsel %vm1037, %v1034, %v1028
      %s1039 = sld [smem:[#allocation5 + %s331]]
      %s1040 = sadd.s32 %s1039, 32
      %s1041 = scalar_lea.vmem %s239, %s1040
      %v1042 = vld [vmem:[%s1041] sm:$0x1]
      %p1043 = scmp.ne.s32.totalorder %s1039, 0
      %s1044 = scalar_select %p1043, 1, 0
      %v1045 = vstv %s1044
      %vm1046 = vcmp.eq.s32.totalorder %v1045, 1
      %v1047 = vsel %vm1046, %v1042, -inf
      %s1048 = sld [smem:[#allocation5 + %s341]]
      %s1049 = sadd.s32 %s1048, 32
      %s1050 = scalar_lea.vmem %s239, %s1049
      %v1051 = vld [vmem:[%s1050] sm:$0x1]
      %p1052 = scmp.ne.s32.totalorder %s1048, 0
      %v1053 = vmax.f32 %v1047, %v1051
      %s1054 = scalar_select %p1052, 1, 0
      %v1055 = vstv %s1054
      %vm1056 = vcmp.eq.s32.totalorder %v1055, 1
      %v1057 = vsel %vm1056, %v1053, %v1047
      %s1058 = sld [smem:[#allocation5 + %s352]]
      %s1059 = sadd.s32 %s1058, 32
      %s1060 = scalar_lea.vmem %s239, %s1059
      %v1061 = vld [vmem:[%s1060] sm:$0x1]
      %p1062 = scmp.ne.s32.totalorder %s1058, 0
      %v1063 = vmax.f32 %v1057, %v1061
      %s1064 = scalar_select %p1062, 1, 0
      %v1065 = vstv %s1064
      %vm1066 = vcmp.eq.s32.totalorder %v1065, 1
      %v1067 = vsel %vm1066, %v1063, %v1057
      %s1068 = sld [smem:[#allocation5 + %s363]]
      %s1069 = sadd.s32 %s1068, 32
      %s1070 = scalar_lea.vmem %s239, %s1069
      %v1071 = vld [vmem:[%s1070] sm:$0x1]
      %p1072 = scmp.ne.s32.totalorder %s1068, 0
      %v1073 = vmax.f32 %v1067, %v1071
      %s1074 = scalar_select %p1072, 1, 0
      %v1075 = vstv %s1074
      %vm1076 = vcmp.eq.s32.totalorder %v1075, 1
      %v1077 = vsel %vm1076, %v1073, %v1067
      %s1078 = sld [smem:[#allocation5 + %s375]]
      %s1079 = sadd.s32 %s1078, 48
      %s1080 = scalar_lea.vmem %s239, %s1079
      %v1081 = vld [vmem:[%s1080] sm:$0x1]
      %p1082 = scmp.ne.s32.totalorder %s1078, 0
      %s1083 = scalar_select %p1082, 1, 0
      %v1084 = vstv %s1083
      %vm1085 = vcmp.eq.s32.totalorder %v1084, 1
      %v1086 = vsel %vm1085, %v1081, -inf
      %s1087 = sld [smem:[#allocation5 + %s385]]
      %s1088 = sadd.s32 %s1087, 48
      %s1089 = scalar_lea.vmem %s239, %s1088
      %v1090 = vld [vmem:[%s1089] sm:$0x1]
      %p1091 = scmp.ne.s32.totalorder %s1087, 0
      %v1092 = vmax.f32 %v1086, %v1090
      %s1093 = scalar_select %p1091, 1, 0
      %v1094 = vstv %s1093
      %vm1095 = vcmp.eq.s32.totalorder %v1094, 1
      %v1096 = vsel %vm1095, %v1092, %v1086
      %s1097 = sld [smem:[#allocation5 + %s396]]
      %s1098 = sadd.s32 %s1097, 48
      %s1099 = scalar_lea.vmem %s239, %s1098
      %v1100 = vld [vmem:[%s1099] sm:$0x1]
      %p1101 = scmp.ne.s32.totalorder %s1097, 0
      %v1102 = vmax.f32 %v1096, %v1100
      %s1103 = scalar_select %p1101, 1, 0
      %v1104 = vstv %s1103
      %vm1105 = vcmp.eq.s32.totalorder %v1104, 1
      %v1106 = vsel %vm1105, %v1102, %v1096
      %s1107 = sld [smem:[#allocation5 + %s407]]
      %s1108 = sadd.s32 %s1107, 48
      %s1109 = scalar_lea.vmem %s239, %s1108
      %v1110 = vld [vmem:[%s1109] sm:$0x1]
      %p1111 = scmp.ne.s32.totalorder %s1107, 0
      %v1112 = vmax.f32 %v1106, %v1110
      %s1113 = scalar_select %p1111, 1, 0
      %v1114 = vstv %s1113
      %vm1115 = vcmp.eq.s32.totalorder %v1114, 1
      %v1116 = vsel %vm1115, %v1112, %v1106
      %s1117 = sld [smem:[#allocation5 + %s419]]
      %s1118 = sadd.s32 %s1117, 64
      %s1119 = scalar_lea.vmem %s239, %s1118
      %v1120 = vld [vmem:[%s1119] sm:$0x1]
      %p1121 = scmp.ne.s32.totalorder %s1117, 0
      %s1122 = scalar_select %p1121, 1, 0
      %v1123 = vstv %s1122
      %vm1124 = vcmp.eq.s32.totalorder %v1123, 1
      %v1125 = vsel %vm1124, %v1120, -inf
      %s1126 = sld [smem:[#allocation5 + %s429]]
      %s1127 = sadd.s32 %s1126, 64
      %s1128 = scalar_lea.vmem %s239, %s1127
      %v1129 = vld [vmem:[%s1128] sm:$0x1]
      %p1130 = scmp.ne.s32.totalorder %s1126, 0
      %v1131 = vmax.f32 %v1125, %v1129
      %s1132 = scalar_select %p1130, 1, 0
      %v1133 = vstv %s1132
      %vm1134 = vcmp.eq.s32.totalorder %v1133, 1
      %v1135 = vsel %vm1134, %v1131, %v1125
      %s1136 = sld [smem:[#allocation5 + %s440]]
      %s1137 = sadd.s32 %s1136, 64
      %s1138 = scalar_lea.vmem %s239, %s1137
      %v1139 = vld [vmem:[%s1138] sm:$0x1]
      %p1140 = scmp.ne.s32.totalorder %s1136, 0
      %v1141 = vmax.f32 %v1135, %v1139
      %s1142 = scalar_select %p1140, 1, 0
      %v1143 = vstv %s1142
      %vm1144 = vcmp.eq.s32.totalorder %v1143, 1
      %v1145 = vsel %vm1144, %v1141, %v1135
      %s1146 = sld [smem:[#allocation5 + %s451]]
      %s1147 = sadd.s32 %s1146, 64
      %s1148 = scalar_lea.vmem %s239, %s1147
      %v1149 = vld [vmem:[%s1148] sm:$0x1]
      %p1150 = scmp.ne.s32.totalorder %s1146, 0
      %v1151 = vmax.f32 %v1145, %v1149
      %s1152 = scalar_select %p1150, 1, 0
      %v1153 = vstv %s1152
      %vm1154 = vcmp.eq.s32.totalorder %v1153, 1
      %v1155 = vsel %vm1154, %v1151, %v1145
      %s1156 = sld [smem:[#allocation5 + %s463]]
      %s1157 = sadd.s32 %s1156, 80
      %s1158 = scalar_lea.vmem %s239, %s1157
      %v1159 = vld [vmem:[%s1158] sm:$0x1]
      %p1160 = scmp.ne.s32.totalorder %s1156, 0
      %s1161 = scalar_select %p1160, 1, 0
      %v1162 = vstv %s1161
      %vm1163 = vcmp.eq.s32.totalorder %v1162, 1
      %v1164 = vsel %vm1163, %v1159, -inf
      %s1165 = sld [smem:[#allocation5 + %s473]]
      %s1166 = sadd.s32 %s1165, 80
      %s1167 = scalar_lea.vmem %s239, %s1166
      %v1168 = vld [vmem:[%s1167] sm:$0x1]
      %p1169 = scmp.ne.s32.totalorder %s1165, 0
      %v1170 = vmax.f32 %v1164, %v1168
      %s1171 = scalar_select %p1169, 1, 0
      %v1172 = vstv %s1171
      %vm1173 = vcmp.eq.s32.totalorder %v1172, 1
      %v1174 = vsel %vm1173, %v1170, %v1164
      %s1175 = sld [smem:[#allocation5 + %s484]]
      %s1176 = sadd.s32 %s1175, 80
      %s1177 = scalar_lea.vmem %s239, %s1176
      %v1178 = vld [vmem:[%s1177] sm:$0x1]
      %p1179 = scmp.ne.s32.totalorder %s1175, 0
      %v1180 = vmax.f32 %v1174, %v1178
      %s1181 = scalar_select %p1179, 1, 0
      %v1182 = vstv %s1181
      %vm1183 = vcmp.eq.s32.totalorder %v1182, 1
      %v1184 = vsel %vm1183, %v1180, %v1174
      %s1185 = sld [smem:[#allocation5 + %s495]]
      %s1186 = sadd.s32 %s1185, 80
      %s1187 = scalar_lea.vmem %s239, %s1186
      %v1188 = vld [vmem:[%s1187] sm:$0x1]
      %p1189 = scmp.ne.s32.totalorder %s1185, 0
      %v1190 = vmax.f32 %v1184, %v1188
      %s1191 = scalar_select %p1189, 1, 0
      %v1192 = vstv %s1191
      %vm1193 = vcmp.eq.s32.totalorder %v1192, 1
      %v1194 = vsel %vm1193, %v1190, %v1184
      %s1195 = sld [smem:[#allocation5 + %s507]]
      %s1196 = sadd.s32 %s1195, 96
      %s1197 = scalar_lea.vmem %s239, %s1196
      %v1198 = vld [vmem:[%s1197] sm:$0x1]
      %p1199 = scmp.ne.s32.totalorder %s1195, 0
      %s1200 = scalar_select %p1199, 1, 0
      %v1201 = vstv %s1200
      %vm1202 = vcmp.eq.s32.totalorder %v1201, 1
      %v1203 = vsel %vm1202, %v1198, -inf
      %s1204 = sld [smem:[#allocation5 + %s517]]
      %s1205 = sadd.s32 %s1204, 96
      %s1206 = scalar_lea.vmem %s239, %s1205
      %v1207 = vld [vmem:[%s1206] sm:$0x1]
      %p1208 = scmp.ne.s32.totalorder %s1204, 0
      %v1209 = vmax.f32 %v1203, %v1207
      %s1210 = scalar_select %p1208, 1, 0
      %v1211 = vstv %s1210
      %vm1212 = vcmp.eq.s32.totalorder %v1211, 1
      %v1213 = vsel %vm1212, %v1209, %v1203
      %s1214 = sld [smem:[#allocation5 + %s528]]
      %s1215 = sadd.s32 %s1214, 96
      %s1216 = scalar_lea.vmem %s239, %s1215
      %v1217 = vld [vmem:[%s1216] sm:$0x1]
      %p1218 = scmp.ne.s32.totalorder %s1214, 0
      %v1219 = vmax.f32 %v1213, %v1217
      %s1220 = scalar_select %p1218, 1, 0
      %v1221 = vstv %s1220
      %vm1222 = vcmp.eq.s32.totalorder %v1221, 1
      %v1223 = vsel %vm1222, %v1219, %v1213
      %s1224 = sld [smem:[#allocation5 + %s539]]
      %s1225 = sadd.s32 %s1224, 96
      %s1226 = scalar_lea.vmem %s239, %s1225
      %v1227 = vld [vmem:[%s1226] sm:$0x1]
      %p1228 = scmp.ne.s32.totalorder %s1224, 0
      %v1229 = vmax.f32 %v1223, %v1227
      %s1230 = scalar_select %p1228, 1, 0
      %v1231 = vstv %s1230
      %vm1232 = vcmp.eq.s32.totalorder %v1231, 1
      %v1233 = vsel %vm1232, %v1229, %v1223
      %s1234 = sld [smem:[#allocation5 + %s551]]
      %s1235 = sadd.s32 %s1234, 112
      %s1236 = scalar_lea.vmem %s239, %s1235
      %v1237 = vld [vmem:[%s1236] sm:$0x1]
      %p1238 = scmp.ne.s32.totalorder %s1234, 0
      %s1239 = scalar_select %p1238, 1, 0
      %v1240 = vstv %s1239
      %vm1241 = vcmp.eq.s32.totalorder %v1240, 1
      %v1242 = vsel %vm1241, %v1237, -inf
      %s1243 = sld [smem:[#allocation5 + %s561]]
      %s1244 = sadd.s32 %s1243, 112
      %s1245 = scalar_lea.vmem %s239, %s1244
      %v1246 = vld [vmem:[%s1245] sm:$0x1]
      %p1247 = scmp.ne.s32.totalorder %s1243, 0
      %v1248 = vmax.f32 %v1242, %v1246
      %s1249 = scalar_select %p1247, 1, 0
      %v1250 = vstv %s1249
      %vm1251 = vcmp.eq.s32.totalorder %v1250, 1
      %v1252 = vsel %vm1251, %v1248, %v1242
      %s1253 = sld [smem:[#allocation5 + %s572]]
      %s1254 = sadd.s32 %s1253, 112
      %s1255 = scalar_lea.vmem %s239, %s1254
      %v1256 = vld [vmem:[%s1255] sm:$0x1]
      %p1257 = scmp.ne.s32.totalorder %s1253, 0
      %v1258 = vmax.f32 %v1252, %v1256
      %s1259 = scalar_select %p1257, 1, 0
      %v1260 = vstv %s1259
      %vm1261 = vcmp.eq.s32.totalorder %v1260, 1
      %v1262 = vsel %vm1261, %v1258, %v1252
      %s1263 = sld [smem:[#allocation5 + %s583]]
      %s1264 = sadd.s32 %s1263, 112
      %s1265 = scalar_lea.vmem %s239, %s1264
      %v1266 = vld [vmem:[%s1265] sm:$0x1]
      %p1267 = scmp.ne.s32.totalorder %s1263, 0
      %v1268 = vmax.f32 %v1262, %v1266
      %s1269 = scalar_select %p1267, 1, 0
      %v1270 = vstv %s1269
      %vm1271 = vcmp.eq.s32.totalorder %v1270, 1
      %v1272 = vsel %vm1271, %v1268, %v1262
      %v1274 = vrot.slane %v1038, 7
      %v1277 = vrot.slane %v1077, 6
      %v1280 = vrot.slane %v1116, 5
      %v1283 = vrot.slane %v1155, 4
      %v1286 = vrot.slane %v1194, 3
      %v1289 = vrot.slane %v1233, 2
      %v1292 = vrot.slane %v1272, 1
      %v1294 = vsel %vm615, %v999, %v1274
      %v1295 = vsel %vm617, %v1294, %v1277
      %v1296 = vsel %vm619, %v1295, %v1280
      %v1297 = vsel %vm621, %v1296, %v1283
      %v1298 = vsel %vm623, %v1297, %v1286
      %v1299 = vsel %vm625, %v1298, %v1289
      %v1300 = vsel %vm627, %v1299, %v1292
      %v1301 = vld [vmem:[%s4] sm:$0xff]
      %v1302 = vld [vmem:[%s4 + $0x8] sm:$0xff]
      %v1303 = vld [vmem:[%s4 + $0x10] sm:$0xff]
      %v1304 = vld [vmem:[%s4 + $0x18] sm:$0xff]
      %v1305 = vlaneseq
      %v1306 = vshrl.u32 %v1305, 7
      %v1307 = vsub.s32 0, %v1306
      %v1308 = vrot.slane %v246, %v1307
      %vm1309 = vcmask 261120
      %v1311 = vsel %vm1309, %v628, 0
      %1313 = vmatprep.subr.mxu0 0.0
      %1314 = vmatpush1.msra.mxu0 %v1301
      %1315 = vmatprep.subr.mxu0 0.0
      %1316 = vmatpush1.msra.mxu0 %v1302
      %1317 = vmatprep.subr.mxu0 0.0
      %1318 = vmatpush1.msra.mxu0 %v1303
      %1319 = vmatprep.subr.mxu0 0.0
      %1320 = vmatpush1.msra.mxu0 %v1304
      %1321 = vmatprep.subr.mxu0 0.0
      %1322 = vmatpush1.msra.mxu0 0.0
      %1323 = vmatprep.subr.mxu0 0.0
      %1324 = vmatpush1.msra.mxu0 0.0
      %1325 = vmatprep.subr.mxu0 0.0
      %1326 = vmatpush1.msra.mxu0 0.0
      %1327 = vmatprep.subr.mxu0 0.0
      %1328 = vmatpush1.msra.mxu0 0.0
      %1329 = vmatprep.subr.mxu0 0.0
      %1330 = vmatpush1.msra.mxu0 0.0
      %1331 = vmatprep.subr.mxu0 0.0
      %1332 = vmatpush1.msra.mxu0 0.0
      %1333 = vmatprep.subr.mxu0 0.0
      %1334 = vmatpush1.msra.mxu0 0.0
      %1335 = vmatprep.subr.mxu0 0.0
      %1336 = vmatpush1.msra.mxu0 0.0
      %1337 = vmatprep.subr.mxu0 0.0
      %1338 = vmatpush1.msra.mxu0 0.0
      %1339 = vmatprep.subr.mxu0 0.0
      %1340 = vmatpush1.msra.mxu0 0.0
      %1341 = vmatprep.subr.mxu0 0.0
      %1342 = vmatpush1.msra.mxu0 0.0
      %1343 = vmatprep.subr.mxu0 0.0
      %1344 = vmatpush1.msra.mxu0 0.0
      %1345 = vmatprep.subr.mxu0 0.0
      %1346 = vmatpush1.msra.mxu0 0.0
      %1347 = vmatprep.subr.mxu0 0.0
      %1348 = vmatpush1.msra.mxu0 0.0
      %1349 = vmatprep.subr.mxu0 0.0
      %1350 = vmatpush1.msra.mxu0 0.0
      %1351 = vmatprep.subr.mxu0 0.0
      %1352 = vmatpush1.msra.mxu0 0.0
      %1353 = vmatprep.subr.mxu0 0.0
      %1354 = vmatpush1.msra.mxu0 0.0
      %1355 = vmatprep.subr.mxu0 0.0
      %1356 = vmatpush1.msra.mxu0 0.0
      %1357 = vmatprep.subr.mxu0 0.0
      %1358 = vmatpush1.msra.mxu0 0.0
      %1359 = vmatprep.subr.mxu0 0.0
      %1360 = vmatpush1.msra.mxu0 0.0
      %1361 = vmatprep.subr.mxu0 0.0
      %1362 = vmatpush1.msra.mxu0 0.0
      %1363 = vmatprep.subr.mxu0 0.0
      %1364 = vmatpush1.msra.mxu0 0.0
      %1365 = vmatprep.subr.mxu0 0.0
      %1366 = vmatpush1.msra.mxu0 0.0
      %1367 = vmatprep.subr.mxu0 0.0
      %1368 = vmatpush1.msra.mxu0 0.0
      %1369 = vmatprep.subr.mxu0 0.0
      %1370 = vmatpush1.msra.mxu0 0.0
      %1371 = vmatprep.subr.mxu0 0.0
      %1372 = vmatpush1.msra.mxu0 0.0
      %1373 = vmatprep.subr.mxu0 0.0
      %1374 = vmatpush1.msra.mxu0 0.0
      %1375 = vmatprep.subr.mxu0 0.0
      %1376 = vmatpush1.msra.mxu0 0.0
      %1377 = vmatprep.mubr.f32.mxu0 0.0
      %1378 = vmatmul.mubr.f32.gmra.mrb[0].mxu0 %v1311
      %v1379 = vpop.f32.mrb[0].mxu0
      %v1380 = vadd.f32 %v1308, %v1379
      %v1381 = vpop.f32.mrb[0].mxu0
      %1382 = vdwg.mxu0
      %s1383 = scalar_lea.vmem %s4, 32
      %v1384 = vld [vmem:[%s1383] sm:$0xff]
      %v1385 = vld [vmem:[%s1383 + $0x8] sm:$0xff]
      %v1386 = vld [vmem:[%s1383 + $0x10] sm:$0xff]
      %v1387 = vld [vmem:[%s1383 + $0x18] sm:$0xff]
      %v1388 = vlaneseq
      %v1389 = vshrl.u32 %v1388, 7
      %v1390 = vsub.s32 1, %v1389
      %v1391 = vrot.slane %v246, %v1390
      %v1393 = vsel %vm1309, %v964, 0
      %1395 = vmatprep.subr.mxu0 0.0
      %1396 = vmatpush1.msra.mxu0 %v1384
      %1397 = vmatprep.subr.mxu0 0.0
      %1398 = vmatpush1.msra.mxu0 %v1385
      %1399 = vmatprep.subr.mxu0 0.0
      %1400 = vmatpush1.msra.mxu0 %v1386
      %1401 = vmatprep.subr.mxu0 0.0
      %1402 = vmatpush1.msra.mxu0 %v1387
      %1403 = vmatprep.subr.mxu0 0.0
      %1404 = vmatpush1.msra.mxu0 0.0
      %1405 = vmatprep.subr.mxu0 0.0
      %1406 = vmatpush1.msra.mxu0 0.0
      %1407 = vmatprep.subr.mxu0 0.0
      %1408 = vmatpush1.msra.mxu0 0.0
      %1409 = vmatprep.subr.mxu0 0.0
      %1410 = vmatpush1.msra.mxu0 0.0
      %1411 = vmatprep.subr.mxu0 0.0
      %1412 = vmatpush1.msra.mxu0 0.0
      %1413 = vmatprep.subr.mxu0 0.0
      %1414 = vmatpush1.msra.mxu0 0.0
      %1415 = vmatprep.subr.mxu0 0.0
      %1416 = vmatpush1.msra.mxu0 0.0
      %1417 = vmatprep.subr.mxu0 0.0
      %1418 = vmatpush1.msra.mxu0 0.0
      %1419 = vmatprep.subr.mxu0 0.0
      %1420 = vmatpush1.msra.mxu0 0.0
      %1421 = vmatprep.subr.mxu0 0.0
      %1422 = vmatpush1.msra.mxu0 0.0
      %1423 = vmatprep.subr.mxu0 0.0
      %1424 = vmatpush1.msra.mxu0 0.0
      %1425 = vmatprep.subr.mxu0 0.0
      %1426 = vmatpush1.msra.mxu0 0.0
      %1427 = vmatprep.subr.mxu0 0.0
      %1428 = vmatpush1.msra.mxu0 0.0
      %1429 = vmatprep.subr.mxu0 0.0
      %1430 = vmatpush1.msra.mxu0 0.0
      %1431 = vmatprep.subr.mxu0 0.0
      %1432 = vmatpush1.msra.mxu0 0.0
      %1433 = vmatprep.subr.mxu0 0.0
      %1434 = vmatpush1.msra.mxu0 0.0
      %1435 = vmatprep.subr.mxu0 0.0
      %1436 = vmatpush1.msra.mxu0 0.0
      %1437 = vmatprep.subr.mxu0 0.0
      %1438 = vmatpush1.msra.mxu0 0.0
      %1439 = vmatprep.subr.mxu0 0.0
      %1440 = vmatpush1.msra.mxu0 0.0
      %1441 = vmatprep.subr.mxu0 0.0
      %1442 = vmatpush1.msra.mxu0 0.0
      %1443 = vmatprep.subr.mxu0 0.0
      %1444 = vmatpush1.msra.mxu0 0.0
      %1445 = vmatprep.subr.mxu0 0.0
      %1446 = vmatpush1.msra.mxu0 0.0
      %1447 = vmatprep.subr.mxu0 0.0
      %1448 = vmatpush1.msra.mxu0 0.0
      %1449 = vmatprep.subr.mxu0 0.0
      %1450 = vmatpush1.msra.mxu0 0.0
      %1451 = vmatprep.subr.mxu0 0.0
      %1452 = vmatpush1.msra.mxu0 0.0
      %1453 = vmatprep.subr.mxu0 0.0
      %1454 = vmatpush1.msra.mxu0 0.0
      %1455 = vmatprep.subr.mxu0 0.0
      %1456 = vmatpush1.msra.mxu0 0.0
      %1457 = vmatprep.subr.mxu0 0.0
      %1458 = vmatpush1.msra.mxu0 0.0
      %1459 = vmatprep.mubr.f32.mxu0 0.0
      %1460 = vmatmul.mubr.f32.gmra.mrb[0].mxu0 %v1393
      %v1461 = vpop.f32.mrb[0].mxu0
      %v1462 = vadd.f32 %v1391, %v1461
      %v1463 = vpop.f32.mrb[0].mxu0
      %1464 = vdwg.mxu0
      %s1465 = scalar_lea.vmem %s4, 64
      %v1466 = vld [vmem:[%s1465] sm:$0xff]
      %v1467 = vld [vmem:[%s1465 + $0x8] sm:$0xff]
      %v1468 = vld [vmem:[%s1465 + $0x10] sm:$0xff]
      %v1469 = vld [vmem:[%s1465 + $0x18] sm:$0xff]
      %v1470 = vlaneseq
      %v1471 = vshrl.u32 %v1470, 7
      %v1472 = vsub.s32 2, %v1471
      %v1473 = vrot.slane %v246, %v1472
      %1474 = vmatprep.subr.mxu0 0.0
      %1475 = vmatpush1.msra.mxu0 %v1466
      %1476 = vmatprep.subr.mxu0 0.0
      %1477 = vmatpush1.msra.mxu0 %v1467
      %1478 = vmatprep.subr.mxu0 0.0
      %1479 = vmatpush1.msra.mxu0 %v1468
      %1480 = vmatprep.subr.mxu0 0.0
      %1481 = vmatpush1.msra.mxu0 %v1469
      %1482 = vmatprep.subr.mxu0 0.0
      %1483 = vmatpush1.msra.mxu0 0.0
      %1484 = vmatprep.subr.mxu0 0.0
      %1485 = vmatpush1.msra.mxu0 0.0
      %1486 = vmatprep.subr.mxu0 0.0
      %1487 = vmatpush1.msra.mxu0 0.0
      %1488 = vmatprep.subr.mxu0 0.0
      %1489 = vmatpush1.msra.mxu0 0.0
      %1490 = vmatprep.subr.mxu0 0.0
      %1491 = vmatpush1.msra.mxu0 0.0
      %1492 = vmatprep.subr.mxu0 0.0
      %1493 = vmatpush1.msra.mxu0 0.0
      %1494 = vmatprep.subr.mxu0 0.0
      %1495 = vmatpush1.msra.mxu0 0.0
      %1496 = vmatprep.subr.mxu0 0.0
      %1497 = vmatpush1.msra.mxu0 0.0
      %1498 = vmatprep.subr.mxu0 0.0
      %1499 = vmatpush1.msra.mxu0 0.0
      %1500 = vmatprep.subr.mxu0 0.0
      %1501 = vmatpush1.msra.mxu0 0.0
      %1502 = vmatprep.subr.mxu0 0.0
      %1503 = vmatpush1.msra.mxu0 0.0
      %1504 = vmatprep.subr.mxu0 0.0
      %1505 = vmatpush1.msra.mxu0 0.0
      %1506 = vmatprep.subr.mxu0 0.0
      %1507 = vmatpush1.msra.mxu0 0.0
      %1508 = vmatprep.subr.mxu0 0.0
      %1509 = vmatpush1.msra.mxu0 0.0
      %1510 = vmatprep.subr.mxu0 0.0
      %1511 = vmatpush1.msra.mxu0 0.0
      %1512 = vmatprep.subr.mxu0 0.0
      %1513 = vmatpush1.msra.mxu0 0.0
      %1514 = vmatprep.subr.mxu0 0.0
      %1515 = vmatpush1.msra.mxu0 0.0
      %1516 = vmatprep.subr.mxu0 0.0
      %1517 = vmatpush1.msra.mxu0 0.0
      %1518 = vmatprep.subr.mxu0 0.0
      %1519 = vmatpush1.msra.mxu0 0.0
      %1520 = vmatprep.subr.mxu0 0.0
      %1521 = vmatpush1.msra.mxu0 0.0
      %1522 = vmatprep.subr.mxu0 0.0
      %1523 = vmatpush1.msra.mxu0 0.0
      %1524 = vmatprep.subr.mxu0 0.0
      %1525 = vmatpush1.msra.mxu0 0.0
      %1526 = vmatprep.subr.mxu0 0.0
      %1527 = vmatpush1.msra.mxu0 0.0
      %1528 = vmatprep.subr.mxu0 0.0
      %1529 = vmatpush1.msra.mxu0 0.0
      %1530 = vmatprep.subr.mxu0 0.0
      %1531 = vmatpush1.msra.mxu0 0.0
      %1532 = vmatprep.subr.mxu0 0.0
      %1533 = vmatpush1.msra.mxu0 0.0
      %1534 = vmatprep.subr.mxu0 0.0
      %1535 = vmatpush1.msra.mxu0 0.0
      %1536 = vmatprep.subr.mxu0 0.0
      %1537 = vmatpush1.msra.mxu0 0.0
      %1538 = vmatprep.mubr.f32.mxu0 0.0
      %1539 = vmatmul.mubr.f32.gmra.mrb[0].mxu0 %v1393
      %v1540 = vpop.f32.mrb[0].mxu0
      %v1541 = vadd.f32 %v1473, %v1540
      %v1542 = vpop.f32.mrb[0].mxu0
      %1543 = vdwg.mxu0
      %s1544 = scalar_lea.vmem %s4, 96
      %v1545 = vld [vmem:[%s1544] sm:$0xff]
      %v1546 = vld [vmem:[%s1544 + $0x8] sm:$0xff]
      %v1547 = vld [vmem:[%s1544 + $0x10] sm:$0xff]
      %v1548 = vld [vmem:[%s1544 + $0x18] sm:$0xff]
      %v1549 = vlaneseq
      %v1550 = vshrl.u32 %v1549, 7
      %v1551 = vsub.s32 3, %v1550
      %v1552 = vrot.slane %v246, %v1551
      %v1554 = vsel %vm1309, %v1300, 0
      %1556 = vmatprep.subr.mxu0 0.0
      %1557 = vmatpush1.msra.mxu0 %v1545
      %1558 = vmatprep.subr.mxu0 0.0
      %1559 = vmatpush1.msra.mxu0 %v1546
      %1560 = vmatprep.subr.mxu0 0.0
      %1561 = vmatpush1.msra.mxu0 %v1547
      %1562 = vmatprep.subr.mxu0 0.0
      %1563 = vmatpush1.msra.mxu0 %v1548
      %1564 = vmatprep.subr.mxu0 0.0
      %1565 = vmatpush1.msra.mxu0 0.0
      %1566 = vmatprep.subr.mxu0 0.0
      %1567 = vmatpush1.msra.mxu0 0.0
      %1568 = vmatprep.subr.mxu0 0.0
      %1569 = vmatpush1.msra.mxu0 0.0
      %1570 = vmatprep.subr.mxu0 0.0
      %1571 = vmatpush1.msra.mxu0 0.0
      %1572 = vmatprep.subr.mxu0 0.0
      %1573 = vmatpush1.msra.mxu0 0.0
      %1574 = vmatprep.subr.mxu0 0.0
      %1575 = vmatpush1.msra.mxu0 0.0
      %1576 = vmatprep.subr.mxu0 0.0
      %1577 = vmatpush1.msra.mxu0 0.0
      %1578 = vmatprep.subr.mxu0 0.0
      %1579 = vmatpush1.msra.mxu0 0.0
      %1580 = vmatprep.subr.mxu0 0.0
      %1581 = vmatpush1.msra.mxu0 0.0
      %1582 = vmatprep.subr.mxu0 0.0
      %1583 = vmatpush1.msra.mxu0 0.0
      %1584 = vmatprep.subr.mxu0 0.0
      %1585 = vmatpush1.msra.mxu0 0.0
      %1586 = vmatprep.subr.mxu0 0.0
      %1587 = vmatpush1.msra.mxu0 0.0
      %1588 = vmatprep.subr.mxu0 0.0
      %1589 = vmatpush1.msra.mxu0 0.0
      %1590 = vmatprep.subr.mxu0 0.0
      %1591 = vmatpush1.msra.mxu0 0.0
      %1592 = vmatprep.subr.mxu0 0.0
      %1593 = vmatpush1.msra.mxu0 0.0
      %1594 = vmatprep.subr.mxu0 0.0
      %1595 = vmatpush1.msra.mxu0 0.0
      %1596 = vmatprep.subr.mxu0 0.0
      %1597 = vmatpush1.msra.mxu0 0.0
      %1598 = vmatprep.subr.mxu0 0.0
      %1599 = vmatpush1.msra.mxu0 0.0
      %1600 = vmatprep.subr.mxu0 0.0
      %1601 = vmatpush1.msra.mxu0 0.0
      %1602 = vmatprep.subr.mxu0 0.0
      %1603 = vmatpush1.msra.mxu0 0.0
      %1604 = vmatprep.subr.mxu0 0.0
      %1605 = vmatpush1.msra.mxu0 0.0
      %1606 = vmatprep.subr.mxu0 0.0
      %1607 = vmatpush1.msra.mxu0 0.0
      %1608 = vmatprep.subr.mxu0 0.0
      %1609 = vmatpush1.msra.mxu0 0.0
      %1610 = vmatprep.subr.mxu0 0.0
      %1611 = vmatpush1.msra.mxu0 0.0
      %1612 = vmatprep.subr.mxu0 0.0
      %1613 = vmatpush1.msra.mxu0 0.0
      %1614 = vmatprep.subr.mxu0 0.0
      %1615 = vmatpush1.msra.mxu0 0.0
      %1616 = vmatprep.subr.mxu0 0.0
      %1617 = vmatpush1.msra.mxu0 0.0
      %1618 = vmatprep.subr.mxu0 0.0
      %1619 = vmatpush1.msra.mxu0 0.0
      %1620 = vmatprep.mubr.f32.mxu0 0.0
      %1621 = vmatmul.mubr.f32.gmra.mrb[0].mxu0 %v1554
      %v1622 = vpop.f32.mrb[0].mxu0
      %v1623 = vadd.f32 %v1552, %v1622
      %v1624 = vpop.f32.mrb[0].mxu0
      %1625 = vdwg.mxu0
      %v1626 = vmul.f32 %v1380, %v1541
      %v1627 = vld [vmem:[%s5] sm:$0xff]
      %v1628 = vld [vmem:[%s5 + $0x8] sm:$0xff]
      %v1629 = vld [vmem:[%s5 + $0x10] sm:$0xff]
      %v1630 = vld [vmem:[%s5 + $0x18] sm:$0xff]
      %v1631 = vld [vmem:[%s5 + $0x20] sm:$0xff]
      %v1632 = vld [vmem:[%s5 + $0x28] sm:$0xff]
      %v1633 = vld [vmem:[%s5 + $0x30] sm:$0xff]
      %v1634 = vld [vmem:[%s5 + $0x38] sm:$0xff]
      %v1635 = vld [vmem:[%s5 + $0x40] sm:$0xff]
      %v1636 = vld [vmem:[%s5 + $0x48] sm:$0xff]
      %v1637 = vld [vmem:[%s5 + $0x50] sm:$0xff]
      %v1638 = vld [vmem:[%s5 + $0x58] sm:$0xff]
      %v1639 = vld [vmem:[%s5 + $0x60] sm:$0xff]
      %v1640 = vld [vmem:[%s5 + $0x68] sm:$0xff]
      %v1641 = vld [vmem:[%s5 + $0x70] sm:$0xff]
      %v1642 = vld [vmem:[%s5 + $0x78] sm:$0xff]
      %v1643 = vlaneseq
      %v1644 = vshrl.u32 %v1643, 7
      %v1645 = vsub.s32 4, %v1644
      %v1646 = vrot.slane %v246, %v1645
      %1647 = vmatprep.subr.mxu0 0.0
      %1648 = vmatpush1.msra.mxu0 %v1627
      %1649 = vmatprep.subr.mxu0 0.0
      %1650 = vmatpush1.msra.mxu0 %v1628
      %1651 = vmatprep.subr.mxu0 0.0
      %1652 = vmatpush1.msra.mxu0 %v1629
      %1653 = vmatprep.subr.mxu0 0.0
      %1654 = vmatpush1.msra.mxu0 %v1630
      %1655 = vmatprep.subr.mxu0 0.0
      %1656 = vmatpush1.msra.mxu0 %v1631
      %1657 = vmatprep.subr.mxu0 0.0
      %1658 = vmatpush1.msra.mxu0 %v1632
      %1659 = vmatprep.subr.mxu0 0.0
      %1660 = vmatpush1.msra.mxu0 %v1633
      %1661 = vmatprep.subr.mxu0 0.0
      %1662 = vmatpush1.msra.mxu0 %v1634
      %1663 = vmatprep.subr.mxu0 0.0
      %1664 = vmatpush1.msra.mxu0 %v1635
      %1665 = vmatprep.subr.mxu0 0.0
      %1666 = vmatpush1.msra.mxu0 %v1636
      %1667 = vmatprep.subr.mxu0 0.0
      %1668 = vmatpush1.msra.mxu0 %v1637
      %1669 = vmatprep.subr.mxu0 0.0
      %1670 = vmatpush1.msra.mxu0 %v1638
      %1671 = vmatprep.subr.mxu0 0.0
      %1672 = vmatpush1.msra.mxu0 %v1639
      %1673 = vmatprep.subr.mxu0 0.0
      %1674 = vmatpush1.msra.mxu0 %v1640
      %1675 = vmatprep.subr.mxu0 0.0
      %1676 = vmatpush1.msra.mxu0 %v1641
      %1677 = vmatprep.subr.mxu0 0.0
      %1678 = vmatpush1.msra.mxu0 %v1642
      %1679 = vmatprep.subr.mxu0 0.0
      %1680 = vmatpush1.msra.mxu0 0.0
      %1681 = vmatprep.subr.mxu0 0.0
      %1682 = vmatpush1.msra.mxu0 0.0
      %1683 = vmatprep.subr.mxu0 0.0
      %1684 = vmatpush1.msra.mxu0 0.0
      %1685 = vmatprep.subr.mxu0 0.0
      %1686 = vmatpush1.msra.mxu0 0.0
      %1687 = vmatprep.subr.mxu0 0.0
      %1688 = vmatpush1.msra.mxu0 0.0
      %1689 = vmatprep.subr.mxu0 0.0
      %1690 = vmatpush1.msra.mxu0 0.0
      %1691 = vmatprep.subr.mxu0 0.0
      %1692 = vmatpush1.msra.mxu0 0.0
      %1693 = vmatprep.subr.mxu0 0.0
      %1694 = vmatpush1.msra.mxu0 0.0
      %1695 = vmatprep.subr.mxu0 0.0
      %1696 = vmatpush1.msra.mxu0 0.0
      %1697 = vmatprep.subr.mxu0 0.0
      %1698 = vmatpush1.msra.mxu0 0.0
      %1699 = vmatprep.subr.mxu0 0.0
      %1700 = vmatpush1.msra.mxu0 0.0
      %1701 = vmatprep.subr.mxu0 0.0
      %1702 = vmatpush1.msra.mxu0 0.0
      %1703 = vmatprep.subr.mxu0 0.0
      %1704 = vmatpush1.msra.mxu0 0.0
      %1705 = vmatprep.subr.mxu0 0.0
      %1706 = vmatpush1.msra.mxu0 0.0
      %1707 = vmatprep.subr.mxu0 0.0
      %1708 = vmatpush1.msra.mxu0 0.0
      %1709 = vmatprep.subr.mxu0 0.0
      %1710 = vmatpush1.msra.mxu0 0.0
      %1711 = vmatprep.mubr.f32.mxu0 0.0
      %1712 = vmatmul.mubr.f32.gmra.mrb[0].mxu0 %v1626
      %v1713 = vpop.f32.mrb[0].mxu0
      %v1714 = vadd.f32 %v1646, %v1713
      %v1715 = vpop.f32.mrb[0].mxu0
      %1716 = vdwg.mxu0
      %v1717 = vtanh.pop %v1714
      %v1718 = vmul.f32 %v1380, %v1623
      %s1719 = scalar_lea.vmem %s5, 128
      %v1720 = vld [vmem:[%s1719] sm:$0xff]
      %v1721 = vld [vmem:[%s1719 + $0x8] sm:$0xff]
      %v1722 = vld [vmem:[%s1719 + $0x10] sm:$0xff]
      %v1723 = vld [vmem:[%s1719 + $0x18] sm:$0xff]
      %v1724 = vld [vmem:[%s1719 + $0x20] sm:$0xff]
      %v1725 = vld [vmem:[%s1719 + $0x28] sm:$0xff]
      %v1726 = vld [vmem:[%s1719 + $0x30] sm:$0xff]
      %v1727 = vld [vmem:[%s1719 + $0x38] sm:$0xff]
      %v1728 = vld [vmem:[%s1719 + $0x40] sm:$0xff]
      %v1729 = vld [vmem:[%s1719 + $0x48] sm:$0xff]
      %v1730 = vld [vmem:[%s1719 + $0x50] sm:$0xff]
      %v1731 = vld [vmem:[%s1719 + $0x58] sm:$0xff]
      %v1732 = vld [vmem:[%s1719 + $0x60] sm:$0xff]
      %v1733 = vld [vmem:[%s1719 + $0x68] sm:$0xff]
      %v1734 = vld [vmem:[%s1719 + $0x70] sm:$0xff]
      %v1735 = vld [vmem:[%s1719 + $0x78] sm:$0xff]
      %v1736 = vlaneseq
      %v1737 = vshrl.u32 %v1736, 7
      %v1738 = vsub.s32 5, %v1737
      %v1739 = vrot.slane %v246, %v1738
      %1740 = vmatprep.subr.mxu0 0.0
      %1741 = vmatpush1.msra.mxu0 %v1720
      %1742 = vmatprep.subr.mxu0 0.0
      %1743 = vmatpush1.msra.mxu0 %v1721
      %1744 = vmatprep.subr.mxu0 0.0
      %1745 = vmatpush1.msra.mxu0 %v1722
      %1746 = vmatprep.subr.mxu0 0.0
      %1747 = vmatpush1.msra.mxu0 %v1723
      %1748 = vmatprep.subr.mxu0 0.0
      %1749 = vmatpush1.msra.mxu0 %v1724
      %1750 = vmatprep.subr.mxu0 0.0
      %1751 = vmatpush1.msra.mxu0 %v1725
      %1752 = vmatprep.subr.mxu0 0.0
      %1753 = vmatpush1.msra.mxu0 %v1726
      %1754 = vmatprep.subr.mxu0 0.0
      %1755 = vmatpush1.msra.mxu0 %v1727
      %1756 = vmatprep.subr.mxu0 0.0
      %1757 = vmatpush1.msra.mxu0 %v1728
      %1758 = vmatprep.subr.mxu0 0.0
      %1759 = vmatpush1.msra.mxu0 %v1729
      %1760 = vmatprep.subr.mxu0 0.0
      %1761 = vmatpush1.msra.mxu0 %v1730
      %1762 = vmatprep.subr.mxu0 0.0
      %1763 = vmatpush1.msra.mxu0 %v1731
      %1764 = vmatprep.subr.mxu0 0.0
      %1765 = vmatpush1.msra.mxu0 %v1732
      %1766 = vmatprep.subr.mxu0 0.0
      %1767 = vmatpush1.msra.mxu0 %v1733
      %1768 = vmatprep.subr.mxu0 0.0
      %1769 = vmatpush1.msra.mxu0 %v1734
      %1770 = vmatprep.subr.mxu0 0.0
      %1771 = vmatpush1.msra.mxu0 %v1735
      %1772 = vmatprep.subr.mxu0 0.0
      %1773 = vmatpush1.msra.mxu0 0.0
      %1774 = vmatprep.subr.mxu0 0.0
      %1775 = vmatpush1.msra.mxu0 0.0
      %1776 = vmatprep.subr.mxu0 0.0
      %1777 = vmatpush1.msra.mxu0 0.0
      %1778 = vmatprep.subr.mxu0 0.0
      %1779 = vmatpush1.msra.mxu0 0.0
      %1780 = vmatprep.subr.mxu0 0.0
      %1781 = vmatpush1.msra.mxu0 0.0
      %1782 = vmatprep.subr.mxu0 0.0
      %1783 = vmatpush1.msra.mxu0 0.0
      %1784 = vmatprep.subr.mxu0 0.0
      %1785 = vmatpush1.msra.mxu0 0.0
      %1786 = vmatprep.subr.mxu0 0.0
      %1787 = vmatpush1.msra.mxu0 0.0
      %1788 = vmatprep.subr.mxu0 0.0
      %1789 = vmatpush1.msra.mxu0 0.0
      %1790 = vmatprep.subr.mxu0 0.0
      %1791 = vmatpush1.msra.mxu0 0.0
      %1792 = vmatprep.subr.mxu0 0.0
      %1793 = vmatpush1.msra.mxu0 0.0
      %1794 = vmatprep.subr.mxu0 0.0
      %1795 = vmatpush1.msra.mxu0 0.0
      %1796 = vmatprep.subr.mxu0 0.0
      %1797 = vmatpush1.msra.mxu0 0.0
      %1798 = vmatprep.subr.mxu0 0.0
      %1799 = vmatpush1.msra.mxu0 0.0
      %1800 = vmatprep.subr.mxu0 0.0
      %1801 = vmatpush1.msra.mxu0 0.0
      %1802 = vmatprep.subr.mxu0 0.0
      %1803 = vmatpush1.msra.mxu0 0.0
      %1804 = vmatprep.mubr.f32.mxu0 0.0
      %1805 = vmatmul.mubr.f32.gmra.mrb[0].mxu0 %v1718
      %v1806 = vpop.f32.mrb[0].mxu0
      %v1807 = vadd.f32 %v1739, %v1806
      %v1808 = vpop.f32.mrb[0].mxu0
      %1809 = vdwg.mxu0
      %v1810 = vtanh.pop %v1807
      %v1811 = vmul.f32 %v1462, %v1623
      %s1812 = scalar_lea.vmem %s5, 256
      %v1813 = vld [vmem:[%s1812] sm:$0xff]
      %v1814 = vld [vmem:[%s1812 + $0x8] sm:$0xff]
      %v1815 = vld [vmem:[%s1812 + $0x10] sm:$0xff]
      %v1816 = vld [vmem:[%s1812 + $0x18] sm:$0xff]
      %v1817 = vld [vmem:[%s1812 + $0x20] sm:$0xff]
      %v1818 = vld [vmem:[%s1812 + $0x28] sm:$0xff]
      %v1819 = vld [vmem:[%s1812 + $0x30] sm:$0xff]
      %v1820 = vld [vmem:[%s1812 + $0x38] sm:$0xff]
      %v1821 = vld [vmem:[%s1812 + $0x40] sm:$0xff]
      %v1822 = vld [vmem:[%s1812 + $0x48] sm:$0xff]
      %v1823 = vld [vmem:[%s1812 + $0x50] sm:$0xff]
      %v1824 = vld [vmem:[%s1812 + $0x58] sm:$0xff]
      %v1825 = vld [vmem:[%s1812 + $0x60] sm:$0xff]
      %v1826 = vld [vmem:[%s1812 + $0x68] sm:$0xff]
      %v1827 = vld [vmem:[%s1812 + $0x70] sm:$0xff]
      %v1828 = vld [vmem:[%s1812 + $0x78] sm:$0xff]
      %v1829 = vlaneseq
      %v1830 = vshrl.u32 %v1829, 7
      %v1831 = vsub.s32 6, %v1830
      %v1832 = vrot.slane %v246, %v1831
      %1833 = vmatprep.subr.mxu0 0.0
      %1834 = vmatpush1.msra.mxu0 %v1813
      %1835 = vmatprep.subr.mxu0 0.0
      %1836 = vmatpush1.msra.mxu0 %v1814
      %1837 = vmatprep.subr.mxu0 0.0
      %1838 = vmatpush1.msra.mxu0 %v1815
      %1839 = vmatprep.subr.mxu0 0.0
      %1840 = vmatpush1.msra.mxu0 %v1816
      %1841 = vmatprep.subr.mxu0 0.0
      %1842 = vmatpush1.msra.mxu0 %v1817
      %1843 = vmatprep.subr.mxu0 0.0
      %1844 = vmatpush1.msra.mxu0 %v1818
      %1845 = vmatprep.subr.mxu0 0.0
      %1846 = vmatpush1.msra.mxu0 %v1819
      %1847 = vmatprep.subr.mxu0 0.0
      %1848 = vmatpush1.msra.mxu0 %v1820
      %1849 = vmatprep.subr.mxu0 0.0
      %1850 = vmatpush1.msra.mxu0 %v1821
      %1851 = vmatprep.subr.mxu0 0.0
      %1852 = vmatpush1.msra.mxu0 %v1822
      %1853 = vmatprep.subr.mxu0 0.0
      %1854 = vmatpush1.msra.mxu0 %v1823
      %1855 = vmatprep.subr.mxu0 0.0
      %1856 = vmatpush1.msra.mxu0 %v1824
      %1857 = vmatprep.subr.mxu0 0.0
      %1858 = vmatpush1.msra.mxu0 %v1825
      %1859 = vmatprep.subr.mxu0 0.0
      %1860 = vmatpush1.msra.mxu0 %v1826
      %1861 = vmatprep.subr.mxu0 0.0
      %1862 = vmatpush1.msra.mxu0 %v1827
      %1863 = vmatprep.subr.mxu0 0.0
      %1864 = vmatpush1.msra.mxu0 %v1828
      %1865 = vmatprep.subr.mxu0 0.0
      %1866 = vmatpush1.msra.mxu0 0.0
      %1867 = vmatprep.subr.mxu0 0.0
      %1868 = vmatpush1.msra.mxu0 0.0
      %1869 = vmatprep.subr.mxu0 0.0
      %1870 = vmatpush1.msra.mxu0 0.0
      %1871 = vmatprep.subr.mxu0 0.0
      %1872 = vmatpush1.msra.mxu0 0.0
      %1873 = vmatprep.subr.mxu0 0.0
      %1874 = vmatpush1.msra.mxu0 0.0
      %1875 = vmatprep.subr.mxu0 0.0
      %1876 = vmatpush1.msra.mxu0 0.0
      %1877 = vmatprep.subr.mxu0 0.0
      %1878 = vmatpush1.msra.mxu0 0.0
      %1879 = vmatprep.subr.mxu0 0.0
      %1880 = vmatpush1.msra.mxu0 0.0
      %1881 = vmatprep.subr.mxu0 0.0
      %1882 = vmatpush1.msra.mxu0 0.0
      %1883 = vmatprep.subr.mxu0 0.0
      %1884 = vmatpush1.msra.mxu0 0.0
      %1885 = vmatprep.subr.mxu0 0.0
      %1886 = vmatpush1.msra.mxu0 0.0
      %1887 = vmatprep.subr.mxu0 0.0
      %1888 = vmatpush1.msra.mxu0 0.0
      %1889 = vmatprep.subr.mxu0 0.0
      %1890 = vmatpush1.msra.mxu0 0.0
      %1891 = vmatprep.subr.mxu0 0.0
      %1892 = vmatpush1.msra.mxu0 0.0
      %1893 = vmatprep.subr.mxu0 0.0
      %1894 = vmatpush1.msra.mxu0 0.0
      %1895 = vmatprep.subr.mxu0 0.0
      %1896 = vmatpush1.msra.mxu0 0.0
      %1897 = vmatprep.mubr.f32.mxu0 0.0
      %1898 = vmatmul.mubr.f32.gmra.mrb[0].mxu0 %v1811
      %v1899 = vpop.f32.mrb[0].mxu0
      %v1900 = vadd.f32 %v1832, %v1899
      %v1901 = vpop.f32.mrb[0].mxu0
      %1902 = vdwg.mxu0
      %v1903 = vtanh.pop %v1900
      %v1904 = vld [vmem:[%s6] sm:$0xff]
      %v1905 = vld [vmem:[%s6 + $0x8] sm:$0xff]
      %v1906 = vld [vmem:[%s6 + $0x10] sm:$0xff]
      %v1907 = vld [vmem:[%s6 + $0x18] sm:$0xff]
      %v1908 = vld [vmem:[%s6 + $0x20] sm:$0xff]
      %v1909 = vld [vmem:[%s6 + $0x28] sm:$0xff]
      %v1910 = vld [vmem:[%s6 + $0x30] sm:$0xff]
      %v1911 = vld [vmem:[%s6 + $0x38] sm:$0xff]
      %v1912 = vld [vmem:[%s6 + $0x40] sm:$0xff]
      %v1913 = vld [vmem:[%s6 + $0x48] sm:$0xff]
      %v1914 = vld [vmem:[%s6 + $0x50] sm:$0xff]
      %v1915 = vld [vmem:[%s6 + $0x58] sm:$0xff]
      %v1916 = vld [vmem:[%s6 + $0x60] sm:$0xff]
      %v1917 = vld [vmem:[%s6 + $0x68] sm:$0xff]
      %v1918 = vld [vmem:[%s6 + $0x70] sm:$0xff]
      %v1919 = vld [vmem:[%s6 + $0x78] sm:$0xff]
      %v1920 = vld [vmem:[%s6 + $0x80] sm:$0xff]
      %v1921 = vld [vmem:[%s6 + $0x88] sm:$0xff]
      %v1922 = vld [vmem:[%s6 + $0x90] sm:$0xff]
      %v1923 = vld [vmem:[%s6 + $0x98] sm:$0xff]
      %v1924 = vld [vmem:[%s6 + $0xa0] sm:$0xff]
      %v1925 = vld [vmem:[%s6 + $0xa8] sm:$0xff]
      %v1926 = vld [vmem:[%s6 + $0xb0] sm:$0xff]
      %v1927 = vld [vmem:[%s6 + $0xb8] sm:$0xff]
      %v1928 = vld [vmem:[%s6 + $0xc0] sm:$0xff]
      %v1929 = vld [vmem:[%s6 + $0xc8] sm:$0xff]
      %v1930 = vld [vmem:[%s6 + $0xd0] sm:$0xff]
      %v1931 = vld [vmem:[%s6 + $0xd8] sm:$0xff]
      %v1932 = vld [vmem:[%s6 + $0xe0] sm:$0xff]
      %v1933 = vld [vmem:[%s6 + $0xe8] sm:$0xff]
      %v1934 = vld [vmem:[%s6 + $0xf0] sm:$0xff]
      %v1935 = vld [vmem:[%s6 + $0xf8] sm:$0xff]
      %v1936 = vld [vmem:[%s6 + $0x100] sm:$0xff]
      %v1937 = vld [vmem:[%s6 + $0x108] sm:$0xff]
      %v1938 = vld [vmem:[%s6 + $0x110] sm:$0xff]
      %v1939 = vld [vmem:[%s6 + $0x118] sm:$0xff]
      %v1940 = vld [vmem:[%s6 + $0x120] sm:$0xff]
      %v1941 = vld [vmem:[%s6 + $0x128] sm:$0xff]
      %v1942 = vld [vmem:[%s6 + $0x130] sm:$0xff]
      %v1943 = vld [vmem:[%s6 + $0x138] sm:$0xff]
      %v1944 = vld [vmem:[%s6 + $0x140] sm:$0xff]
      %v1945 = vld [vmem:[%s6 + $0x148] sm:$0xff]
      %v1946 = vld [vmem:[%s6 + $0x150] sm:$0xff]
      %v1947 = vld [vmem:[%s6 + $0x158] sm:$0xff]
      %v1948 = vld [vmem:[%s6 + $0x160] sm:$0xff]
      %v1949 = vld [vmem:[%s6 + $0x168] sm:$0xff]
      %v1950 = vld [vmem:[%s6 + $0x170] sm:$0xff]
      %v1951 = vld [vmem:[%s6 + $0x178] sm:$0xff]
      %v1952 = vlaneseq
      %v1953 = vshrl.u32 %v1952, 7
      %v1954 = vsub.s32 7, %v1953
      %v1955 = vrot.slane %v246, %v1954
      %1956 = vmatprep.subr.mxu0 0.0
      %1957 = vmatpush1.msra.mxu0 %v1904
      %1958 = vmatprep.subr.mxu0 0.0
      %1959 = vmatpush1.msra.mxu0 %v1905
      %1960 = vmatprep.subr.mxu0 0.0
      %1961 = vmatpush1.msra.mxu0 %v1906
      %1962 = vmatprep.subr.mxu0 0.0
      %1963 = vmatpush1.msra.mxu0 %v1907
      %1964 = vmatprep.subr.mxu0 0.0
      %1965 = vmatpush1.msra.mxu0 %v1908
      %1966 = vmatprep.subr.mxu0 0.0
      %1967 = vmatpush1.msra.mxu0 %v1909
      %1968 = vmatprep.subr.mxu0 0.0
      %1969 = vmatpush1.msra.mxu0 %v1910
      %1970 = vmatprep.subr.mxu0 0.0
      %1971 = vmatpush1.msra.mxu0 %v1911
      %1972 = vmatprep.subr.mxu0 0.0
      %1973 = vmatpush1.msra.mxu0 %v1912
      %1974 = vmatprep.subr.mxu0 0.0
      %1975 = vmatpush1.msra.mxu0 %v1913
      %1976 = vmatprep.subr.mxu0 0.0
      %1977 = vmatpush1.msra.mxu0 %v1914
      %1978 = vmatprep.subr.mxu0 0.0
      %1979 = vmatpush1.msra.mxu0 %v1915
      %1980 = vmatprep.subr.mxu0 0.0
      %1981 = vmatpush1.msra.mxu0 %v1916
      %1982 = vmatprep.subr.mxu0 0.0
      %1983 = vmatpush1.msra.mxu0 %v1917
      %1984 = vmatprep.subr.mxu0 0.0
      %1985 = vmatpush1.msra.mxu0 %v1918
      %1986 = vmatprep.subr.mxu0 0.0
      %1987 = vmatpush1.msra.mxu0 %v1919
      %1988 = vmatprep.subr.mxu0 0.0
      %1989 = vmatpush1.msra.mxu0 %v1920
      %1990 = vmatprep.subr.mxu0 0.0
      %1991 = vmatpush1.msra.mxu0 %v1921
      %1992 = vmatprep.subr.mxu0 0.0
      %1993 = vmatpush1.msra.mxu0 %v1922
      %1994 = vmatprep.subr.mxu0 0.0
      %1995 = vmatpush1.msra.mxu0 %v1923
      %1996 = vmatprep.subr.mxu0 0.0
      %1997 = vmatpush1.msra.mxu0 %v1924
      %1998 = vmatprep.subr.mxu0 0.0
      %1999 = vmatpush1.msra.mxu0 %v1925
      %2000 = vmatprep.subr.mxu0 0.0
      %2001 = vmatpush1.msra.mxu0 %v1926
      %2002 = vmatprep.subr.mxu0 0.0
      %2003 = vmatpush1.msra.mxu0 %v1927
      %2004 = vmatprep.subr.mxu0 0.0
      %2005 = vmatpush1.msra.mxu0 %v1928
      %2006 = vmatprep.subr.mxu0 0.0
      %2007 = vmatpush1.msra.mxu0 %v1929
      %2008 = vmatprep.subr.mxu0 0.0
      %2009 = vmatpush1.msra.mxu0 %v1930
      %2010 = vmatprep.subr.mxu0 0.0
      %2011 = vmatpush1.msra.mxu0 %v1931
      %2012 = vmatprep.subr.mxu0 0.0
      %2013 = vmatpush1.msra.mxu0 %v1932
      %2014 = vmatprep.subr.mxu0 0.0
      %2015 = vmatpush1.msra.mxu0 %v1933
      %2016 = vmatprep.subr.mxu0 0.0
      %2017 = vmatpush1.msra.mxu0 %v1934
      %2018 = vmatprep.subr.mxu0 0.0
      %2019 = vmatpush1.msra.mxu0 %v1935
      %2020 = vmatprep.mubr.f32.mxu0 %v1810
      %2021 = vmatmul.mubr.f32.gmra.mrb[0].mxu0 %v1717
      %v2022 = vpop.f32.mrb[0].mxu0
      %v2023 = vadd.f32 %v1955, %v2022
      %v2024 = vpop.f32.mrb[0].mxu0
      %2025 = vdwg.mxu0
      %2026 = vmatprep.subr.mxu0 0.0
      %2027 = vmatpush1.msra.mxu0 %v1936
      %2028 = vmatprep.subr.mxu0 0.0
      %2029 = vmatpush1.msra.mxu0 %v1937
      %2030 = vmatprep.subr.mxu0 0.0
      %2031 = vmatpush1.msra.mxu0 %v1938
      %2032 = vmatprep.subr.mxu0 0.0
      %2033 = vmatpush1.msra.mxu0 %v1939
      %2034 = vmatprep.subr.mxu0 0.0
      %2035 = vmatpush1.msra.mxu0 %v1940
      %2036 = vmatprep.subr.mxu0 0.0
      %2037 = vmatpush1.msra.mxu0 %v1941
      %2038 = vmatprep.subr.mxu0 0.0
      %2039 = vmatpush1.msra.mxu0 %v1942
      %2040 = vmatprep.subr.mxu0 0.0
      %2041 = vmatpush1.msra.mxu0 %v1943
      %2042 = vmatprep.subr.mxu0 0.0
      %2043 = vmatpush1.msra.mxu0 %v1944
      %2044 = vmatprep.subr.mxu0 0.0
      %2045 = vmatpush1.msra.mxu0 %v1945
      %2046 = vmatprep.subr.mxu0 0.0
      %2047 = vmatpush1.msra.mxu0 %v1946
      %2048 = vmatprep.subr.mxu0 0.0
      %2049 = vmatpush1.msra.mxu0 %v1947
      %2050 = vmatprep.subr.mxu0 0.0
      %2051 = vmatpush1.msra.mxu0 %v1948
      %2052 = vmatprep.subr.mxu0 0.0
      %2053 = vmatpush1.msra.mxu0 %v1949
      %2054 = vmatprep.subr.mxu0 0.0
      %2055 = vmatpush1.msra.mxu0 %v1950
      %2056 = vmatprep.subr.mxu0 0.0
      %2057 = vmatpush1.msra.mxu0 %v1951
      %2058 = vmatprep.subr.mxu0 0.0
      %2059 = vmatpush1.msra.mxu0 0.0
      %2060 = vmatprep.subr.mxu0 0.0
      %2061 = vmatpush1.msra.mxu0 0.0
      %2062 = vmatprep.subr.mxu0 0.0
      %2063 = vmatpush1.msra.mxu0 0.0
      %2064 = vmatprep.subr.mxu0 0.0
      %2065 = vmatpush1.msra.mxu0 0.0
      %2066 = vmatprep.subr.mxu0 0.0
      %2067 = vmatpush1.msra.mxu0 0.0
      %2068 = vmatprep.subr.mxu0 0.0
      %2069 = vmatpush1.msra.mxu0 0.0
      %2070 = vmatprep.subr.mxu0 0.0
      %2071 = vmatpush1.msra.mxu0 0.0
      %2072 = vmatprep.subr.mxu0 0.0
      %2073 = vmatpush1.msra.mxu0 0.0
      %2074 = vmatprep.subr.mxu0 0.0
      %2075 = vmatpush1.msra.mxu0 0.0
      %2076 = vmatprep.subr.mxu0 0.0
      %2077 = vmatpush1.msra.mxu0 0.0
      %2078 = vmatprep.subr.mxu0 0.0
      %2079 = vmatpush1.msra.mxu0 0.0
      %2080 = vmatprep.subr.mxu0 0.0
      %2081 = vmatpush1.msra.mxu0 0.0
      %2082 = vmatprep.subr.mxu0 0.0
      %2083 = vmatpush1.msra.mxu0 0.0
      %2084 = vmatprep.subr.mxu0 0.0
      %2085 = vmatpush1.msra.mxu0 0.0
      %2086 = vmatprep.subr.mxu0 0.0
      %2087 = vmatpush1.msra.mxu0 0.0
      %2088 = vmatprep.subr.mxu0 0.0
      %2089 = vmatpush1.msra.mxu0 0.0
      %2090 = vmatprep.mubr.f32.mxu0 0.0
      %2091 = vmatmul.mubr.f32.gmra.mrb[0].mxu0 %v1903
      %v2092 = vpop.f32.mrb[0].mxu0
      %v2093 = vadd.f32 %v2023, %v2092
      %v2094 = vpop.f32.mrb[0].mxu0
      %2095 = vdwg.mxu0
      %2096 = vst [vmem:[%s244] sm:$0xff] %v2093
      %p2097 = scmp.lt.s32.totalorder %s33, 1
      %s2098 = scalar_select %p2097, %s33, 1
      %s2099 = smul.addr %s2098, 8
      %s2100 = scalar_lea.vmem %s8, %s2099
      // Predicated region
      $region41: #{spert_pallas.1} parent=39 // pred_check
        %p2101 = pneg %p161
      $region42: #{spert_pallas.1} parent=39 // pred_check_branch
        %2103 = sbr.rel (%p2101) target = $region44
      $region43: #{spert_pallas.1} parent=39 // pred_region
        _
      $region44: #{spert_pallas.1} parent=39 // pred_fallthru
        _
    $region40: #{spert_pallas.1} parent=5 // pred_fallthru
      _
    %p2104 = scmp.le.s32.totalorder 2, %s28
    // Predicated region
    $region45: #{spert_pallas.1} parent=5 // pred_check
      %p2105 = pneg %p2104
    $region46: #{spert_pallas.1} parent=5 // pred_check_branch
      %2107 = sbr.rel (%p2105) target = $region48
    $region47: #{spert_pallas.1} parent=5 // pred_region
      %s2108 = ssub.s32 %s28, 2
      // Predicated region
      $region49: #{spert_pallas.1} parent=47 // pred_check
        %p2109 = pneg %p167
      $region50: #{spert_pallas.1} parent=47 // pred_check_branch
        %2111 = sbr.rel (%p2109) target = $region52
      $region51: #{spert_pallas.1} parent=47 // pred_region
        %p2112 = scmp.lt.s32.totalorder %s34, 1
        %s2113 = scalar_select %p2112, %s34, 1
        %s2114 = smul.addr %s2113, 8
        %s2115 = scalar_lea.vmem %s8, %s2114
      $region52: #{spert_pallas.1} parent=47 // pred_fallthru
        _
    $region48: #{spert_pallas.1} parent=5 // pred_fallthru
      _
  $region6: #{spert_pallas.1} parent=0 // loop_footer
    %s32 = sadd.s32 1, %s28
  $region7: #{spert_pallas.1} parent=0 // loop_footer_branch
    %27 = sbr.rel target = $region3
  $region8: #{spert_pallas.1} parent=0 // loop_exit
    _

</llo_original>
